<compile_context>
chip_gen: v6e
topology: v6e:2x2x1
jax: 0.10.0
libtpu: 0.0.40
codegen_flags: <defaults>
</compile_context>

<pallas_src>
import math
from functools import partial

import jax
import jax.numpy as jnp
from jax.experimental import pallas as pl
from jax.experimental.pallas import tpu as pltpu


# ------------------------------ Fused kernel --------------------------------

def _fused_bert_kernel(emb_ref, bias_ref, eg_ref, eb_ref,
                       wqkv_ref, bqkv_ref, wo_ref, bo_ref,
                       ln1g_ref, ln1b_ref, w1_ref, b1_ref,
                       w2_ref, b2_ref, ln2g_ref, ln2b_ref,
                       wc_ref, bc_ref, o_ref,
                       *, n_layers, n_heads, head_dim, eps):
    """One grid step = one batch element: full encoder + classifier in VMEM."""
    H = n_heads * head_dim
    scale = 1.0 / math.sqrt(head_dim)
    inv_sqrt2 = 1.0 / math.sqrt(2.0)

    def layer_norm(h, g, b):
        mean = jnp.mean(h, axis=-1, keepdims=True)
        var = jnp.mean(jnp.square(h - mean), axis=-1, keepdims=True)
        return (h - mean) * jax.lax.rsqrt(var + eps) * g + b

    # Embedding LayerNorm (no zero-residual add anymore).
    x = layer_norm(emb_ref[...], eg_ref[...], eb_ref[...])          # (S, H)
    key_bias = bias_ref[0]                                          # (1, S) additive mask

    for l in range(n_layers):                                       # static unroll (small L)
        # Fused QKV projection: one (S, H) @ (H, 3H) MXU matmul.
        qkv = jnp.dot(x, wqkv_ref[l], preferred_element_type=jnp.float32) + bqkv_ref[l]
        q = qkv[:, 0:H]
        k = qkv[:, H:2 * H]
        v = qkv[:, 2 * H:3 * H]

        # Multi-head attention: slice heads on the lane axis, no layout transposes.
        head_out = []
        for h in range(n_heads):
            lo, hi = h * head_dim, (h + 1) * head_dim
            qh, kh, vh = q[:, lo:hi], k[:, lo:hi], v[:, lo:hi]
            s = jnp.dot(qh, kh.T, preferred_element_type=jnp.float32) * scale + key_bias
            s = s - jnp.max(s, axis=-1, keepdims=True)
            p = jnp.exp(s)
            p = p * pl.reciprocal(jnp.sum(p, axis=-1, keepdims=True), approx=True)
            head_out.append(jnp.dot(p, vh, preferred_element_type=jnp.float32))
        ctx = jnp.concatenate(head_out, axis=-1)                    # (S, H)

        attn = jnp.dot(ctx, wo_ref[l], preferred_element_type=jnp.float32) + bo_ref[l]
        x = layer_norm(attn + x, ln1g_ref[l], ln1b_ref[l])

        ff = jnp.dot(x, w1_ref[l], preferred_element_type=jnp.float32) + b1_ref[l]
        ff = 0.5 * ff * (1.0 + jax.lax.erf(ff * inv_sqrt2))         # exact erf-GELU
        ff = jnp.dot(ff, w2_ref[l], preferred_element_type=jnp.float32) + b2_ref[l]
        x = layer_norm(ff + x, ln2g_ref[l], ln2b_ref[l])

    # CLS pooling + classifier head (nn.Dropout is identity at inference).
    # TODO(synk): training-mode stochastic dropout not implemented.
    cls = x[0:1, :]                                                 # (1, H)
    logits = jnp.dot(cls, wc_ref[...], preferred_element_type=jnp.float32) + bc_ref[...]
    o_ref[0] = logits                                               # lane-dense (1, 128) store


# ------------------------------ Model config --------------------------------

class Config:
    vocab_size = 64
    max_position = 16
    hidden = 32          # bert.config.hidden_size (small synthetic version)
    n_heads = 4
    n_layers = 2
    ffn_dim = 64
    n_classes = 2


def init_params(cfg, key):
    """Synthetic weights, pre-packed: QKV fused to (H, 3H), layers stacked on axis 0."""
    H, F, L = cfg.hidden, cfg.ffn_dim, cfg.n_layers
    keys = iter(jax.random.split(key, 32))

    def dense(shape):
        return 0.02 * jax.random.normal(next(keys), shape, jnp.float32)

    return {
        "word_emb": dense((cfg.vocab_size, H)),
        "pos_emb": dense((cfg.max_position, H)),
        "emb_ln_g": jnp.ones((1, H), jnp.float32),
        "emb_ln_b": jnp.zeros((1, H), jnp.float32),
        "wqkv": dense((L, H, 3 * H)),
        "bqkv": jnp.zeros((L, 1, 3 * H), jnp.float32),
        "wo": dense((L, H, H)),
        "bo": jnp.zeros((L, 1, H), jnp.float32),
        "ln1_g": jnp.ones((L, 1, H), jnp.float32),
        "ln1_b": jnp.zeros((L, 1, H), jnp.float32),
        "w1": dense((L, H, F)),
        "b1": jnp.zeros((L, 1, F), jnp.float32),
        "w2": dense((L, F, H)),
        "b2": jnp.zeros((L, 1, H), jnp.float32),
        "ln2_g": jnp.ones((L, 1, H), jnp.float32),
        "ln2_b": jnp.zeros((L, 1, H), jnp.float32),
        "wc": dense((H, cfg.n_classes)),
        "bc": jnp.zeros((cfg.n_classes,), jnp.float32),
    }


# ------------------------------- Forward pass --------------------------------

def bert_classifier_forward(params, input_ids, attention_mask, cfg):
    B, S = input_ids.shape
    H, NH, L, F = cfg.hidden, cfg.n_heads, cfg.n_layers, cfg.ffn_dim
    Dh = H // NH
    NPAD = 128  # lane-dense classifier output width

    # Embedding gather is glue (data-dependent lookup); everything else is in-kernel.
    tok = jnp.take(params["word_emb"], input_ids, axis=0)            # (B, S, H)
    pos = params["pos_emb"][:S][None, :, :]                          # (1, S, H)
    emb = (tok + pos).astype(jnp.float32).reshape(B * S, H)          # (B*S, H)

    # Precomputed additive key mask: 0.0 = attend, -1e9 = padding.
    mask_bias = jnp.where(attention_mask > 0, 0.0, -1e9).astype(jnp.float32)
    mask_bias = mask_bias.reshape(B, 1, S)

    # Lane-dense classifier head: zero-pad n_classes -> 128; slice after the call.
    wc_pad = jnp.zeros((H, NPAD), jnp.float32).at[:, :cfg.n_classes].set(params["wc"])
    bc_pad = jnp.zeros((1, NPAD), jnp.float32).at[0, :cfg.n_classes].set(params["bc"])

    def rep(shape):
        # Weight replicated across grid steps: same block index => DMA'd once.
        n = len(shape)
        return pl.BlockSpec(shape, lambda b, n=n: (0,) * n)

    logits_pad = pl.pallas_call(
        partial(_fused_bert_kernel,
                n_layers=L, n_heads=NH, head_dim=Dh, eps=1e-12),
        out_shape=jax.ShapeDtypeStruct((B, 1, NPAD), jnp.float32),
        grid=(B,),
        in_specs=[
            pl.BlockSpec((S, H), lambda b: (b, 0)),          # this batch's (S, H) embeddings
            pl.BlockSpec((1, 1, S), lambda b: (b, 0, 0)),    # this batch's additive key mask
            rep((1, H)), rep((1, H)),                        # embedding LayerNorm
            rep((L, H, 3 * H)), rep((L, 1, 3 * H)),          # fused QKV
            rep((L, H, H)), rep((L, 1, H)),                  # attention output proj
            rep((L, 1, H)), rep((L, 1, H)),                  # LayerNorm 1
            rep((L, H, F)), rep((L, 1, F)),                  # FFN in
            rep((L, F, H)), rep((L, 1, H)),                  # FFN out
            rep((L, 1, H)), rep((L, 1, H)),                  # LayerNorm 2
            rep((H, NPAD)), rep((1, NPAD)),                  # classifier (lane-padded)
        ],
        out_specs=pl.BlockSpec((1, 1, NPAD), lambda b: (b, 0, 0)),
        compiler_params=pltpu.CompilerParams(
            dimension_semantics=("parallel",)),
    )(emb, mask_bias,
      params["emb_ln_g"], params["emb_ln_b"],
      params["wqkv"], params["bqkv"],
      params["wo"], params["bo"],
      params["ln1_g"], params["ln1_b"],
      params["w1"], params["b1"],
      params["w2"], params["b2"],
      params["ln2_g"], params["ln2_b"],
      wc_pad, bc_pad)

    return logits_pad[:, 0, :cfg.n_classes]                          # (B, n_classes)


# ----------------------------------- Main ------------------------------------

if __name__ == "__main__":
    cfg = Config()
    B, S = 2, 8

    key = jax.random.PRNGKey(0)
    k_ids, k_params = jax.random.split(key)

    input_ids = jax.random.randint(k_ids, (B, S), 0, cfg.vocab_size, dtype=jnp.int32)
    attention_mask = jnp.array([[1, 1, 1, 1, 1, 1, 1, 1],
                                [1, 1, 1, 1, 1, 1, 0, 0]], dtype=jnp.int32)

    params = init_params(cfg, k_params)

    fwd = jax.jit(partial(bert_classifier_forward, cfg=cfg))
    logits = fwd(params, input_ids, attention_mask)
    jax.block_until_ready(logits)

    assert logits.shape == (B, cfg.n_classes)
    assert bool(jnp.all(jnp.isfinite(logits)))
    print("KERNEL_OK")
</pallas_src>

<mosaic_0001>
module attributes {stable_mosaic.version = 11 : i64} {
  func.func @_fused_bert_kernel(%arg0: i32, %arg1: memref<8x32xf32, #tpu.memory_space<vmem>>, %arg2: memref<1x1x8xf32, #tpu.memory_space<vmem>>, %arg3: memref<1x32xf32, #tpu.memory_space<vmem>>, %arg4: memref<1x32xf32, #tpu.memory_space<vmem>>, %arg5: memref<2x32x96xf32, #tpu.memory_space<vmem>>, %arg6: memref<2x1x96xf32, #tpu.memory_space<vmem>>, %arg7: memref<2x32x32xf32, #tpu.memory_space<vmem>>, %arg8: memref<2x1x32xf32, #tpu.memory_space<vmem>>, %arg9: memref<2x1x32xf32, #tpu.memory_space<vmem>>, %arg10: memref<2x1x32xf32, #tpu.memory_space<vmem>>, %arg11: memref<2x32x64xf32, #tpu.memory_space<vmem>>, %arg12: memref<2x1x64xf32, #tpu.memory_space<vmem>>, %arg13: memref<2x64x32xf32, #tpu.memory_space<vmem>>, %arg14: memref<2x1x32xf32, #tpu.memory_space<vmem>>, %arg15: memref<2x1x32xf32, #tpu.memory_space<vmem>>, %arg16: memref<2x1x32xf32, #tpu.memory_space<vmem>>, %arg17: memref<32x128xf32, #tpu.memory_space<vmem>>, %arg18: memref<1x128xf32, #tpu.memory_space<vmem>>, %arg19: memref<1x1x128xf32, #tpu.memory_space<vmem>>) attributes {dimension_semantics = [#tpu.dimension_semantics<parallel>], iteration_bounds = array<i64: 2>, scalar_prefetch = 0 : i64, scratch_operands = 0 : i64, tpu.core_type = #tpu.core_type<tc>, window_params = [{transform_indices = @transform_0, window_bounds = array<i64: 8, 32>}, {transform_indices = @transform_1, window_bounds = array<i64: 1, 1, 8>}, {pipeline_mode = #tpu.pipeline_mode<synchronous>, transform_indices = @transform_2, window_bounds = array<i64: 1, 32>}, {pipeline_mode = #tpu.pipeline_mode<synchronous>, transform_indices = @transform_3, window_bounds = array<i64: 1, 32>}, {pipeline_mode = #tpu.pipeline_mode<synchronous>, transform_indices = @transform_4, window_bounds = array<i64: 2, 32, 96>}, {pipeline_mode = #tpu.pipeline_mode<synchronous>, transform_indices = @transform_5, window_bounds = array<i64: 2, 1, 96>}, {pipeline_mode = #tpu.pipeline_mode<synchronous>, transform_indices = @transform_6, window_bounds = array<i64: 2, 32, 32>}, {pipeline_mode = #tpu.pipeline_mode<synchronous>, transform_indices = @transform_7, window_bounds = array<i64: 2, 1, 32>}, {pipeline_mode = #tpu.pipeline_mode<synchronous>, transform_indices = @transform_8, window_bounds = array<i64: 2, 1, 32>}, {pipeline_mode = #tpu.pipeline_mode<synchronous>, transform_indices = @transform_9, window_bounds = array<i64: 2, 1, 32>}, {pipeline_mode = #tpu.pipeline_mode<synchronous>, transform_indices = @transform_10, window_bounds = array<i64: 2, 32, 64>}, {pipeline_mode = #tpu.pipeline_mode<synchronous>, transform_indices = @transform_11, window_bounds = array<i64: 2, 1, 64>}, {pipeline_mode = #tpu.pipeline_mode<synchronous>, transform_indices = @transform_12, window_bounds = array<i64: 2, 64, 32>}, {pipeline_mode = #tpu.pipeline_mode<synchronous>, transform_indices = @transform_13, window_bounds = array<i64: 2, 1, 32>}, {pipeline_mode = #tpu.pipeline_mode<synchronous>, transform_indices = @transform_14, window_bounds = array<i64: 2, 1, 32>}, {pipeline_mode = #tpu.pipeline_mode<synchronous>, transform_indices = @transform_15, window_bounds = array<i64: 2, 1, 32>}, {pipeline_mode = #tpu.pipeline_mode<synchronous>, transform_indices = @transform_16, window_bounds = array<i64: 32, 128>}, {pipeline_mode = #tpu.pipeline_mode<synchronous>, transform_indices = @transform_17, window_bounds = array<i64: 1, 128>}, {transform_indices = @transform_18, window_bounds = array<i64: 1, 1, 128>}]} {
    %c0 = arith.constant 0 : index
    %c0_0 = arith.constant 0 : index
    %0 = vector.load %arg1[%c0, %c0_0] : memref<8x32xf32, #tpu.memory_space<vmem>>, vector<8x32xf32>
    %c0_1 = arith.constant 0 : index
    %c0_2 = arith.constant 0 : index
    %1 = vector.load %arg3[%c0_1, %c0_2] : memref<1x32xf32, #tpu.memory_space<vmem>>, vector<1x32xf32>
    %c0_3 = arith.constant 0 : index
    %c0_4 = arith.constant 0 : index
    %2 = vector.load %arg4[%c0_3, %c0_4] : memref<1x32xf32, #tpu.memory_space<vmem>>, vector<1x32xf32>
    %cst = arith.constant dense<0.000000e+00> : vector<8xf32>
    %3 = vector.multi_reduction <add>, %0, %cst [1] : vector<8x32xf32> to vector<8xf32>
    %4 = vector.shape_cast %3 : vector<8xf32> to vector<8x1xf32>
    %cst_5 = arith.constant 3.200000e+01 : f32
    %5 = vector.broadcast %cst_5 : f32 to vector<8x1xf32>
    %6 = arith.divf %4, %5 : vector<8x1xf32>
    %7 = vector.broadcast %6 : vector<8x1xf32> to vector<8x32xf32>
    %8 = arith.subf %0, %7 : vector<8x32xf32>
    %9 = arith.mulf %8, %8 : vector<8x32xf32>
    %cst_6 = arith.constant dense<0.000000e+00> : vector<8xf32>
    %10 = vector.multi_reduction <add>, %9, %cst_6 [1] : vector<8x32xf32> to vector<8xf32>
    %11 = vector.shape_cast %10 : vector<8xf32> to vector<8x1xf32>
    %cst_7 = arith.constant 3.200000e+01 : f32
    %12 = vector.broadcast %cst_7 : f32 to vector<8x1xf32>
    %13 = arith.divf %11, %12 : vector<8x1xf32>
    %14 = vector.broadcast %6 : vector<8x1xf32> to vector<8x32xf32>
    %15 = arith.subf %0, %14 : vector<8x32xf32>
    %cst_8 = arith.constant 9.99999996E-13 : f32
    %16 = vector.broadcast %cst_8 : f32 to vector<8x1xf32>
    %17 = arith.addf %13, %16 : vector<8x1xf32>
    %18 = math.rsqrt %17 : vector<8x1xf32>
    %19 = vector.broadcast %18 : vector<8x1xf32> to vector<8x32xf32>
    %20 = arith.mulf %15, %19 : vector<8x32xf32>
    %21 = vector.broadcast %1 : vector<1x32xf32> to vector<8x32xf32>
    %22 = arith.mulf %20, %21 : vector<8x32xf32>
    %23 = vector.broadcast %2 : vector<1x32xf32> to vector<8x32xf32>
    %24 = arith.addf %22, %23 : vector<8x32xf32>
    %c0_9 = arith.constant 0 : index
    %c0_10 = arith.constant 0 : index
    %c0_11 = arith.constant 0 : index
    %25 = vector.load %arg2[%c0_9, %c0_10, %c0_11] : memref<1x1x8xf32, #tpu.memory_space<vmem>>, vector<1x1x8xf32>
    %26 = vector.shape_cast %25 : vector<1x1x8xf32> to vector<1x8xf32>
    %c0_12 = arith.constant 0 : index
    %c0_13 = arith.constant 0 : index
    %c0_14 = arith.constant 0 : index
    %27 = vector.load %arg5[%c0_12, %c0_13, %c0_14] : memref<2x32x96xf32, #tpu.memory_space<vmem>>, vector<1x32x96xf32>
    %28 = vector.shape_cast %27 : vector<1x32x96xf32> to vector<32x96xf32>
    %cst_15 = arith.constant dense<0.000000e+00> : vector<8x96xf32>
    %29 = tpu.matmul %24, %28, %cst_15 {dimension_numbers = #tpu.dot_dimension_numbers<[1], [0], [0], [1], [0, 0, 1, 1], [], []>} : vector<8x32xf32>, vector<32x96xf32>, vector<8x96xf32> -> vector<8x96xf32>
    %c0_16 = arith.constant 0 : index
    %c0_17 = arith.constant 0 : index
    %c0_18 = arith.constant 0 : index
    %30 = vector.load %arg6[%c0_16, %c0_17, %c0_18] : memref<2x1x96xf32, #tpu.memory_space<vmem>>, vector<1x1x96xf32>
    %31 = vector.shape_cast %30 : vector<1x1x96xf32> to vector<1x96xf32>
    %32 = vector.broadcast %31 : vector<1x96xf32> to vector<8x96xf32>
    %33 = arith.addf %29, %32 : vector<8x96xf32>
    %34 = vector.extract_strided_slice %33 {offsets = [0, 0], sizes = [8, 32], strides = [1, 1]} : vector<8x96xf32> to vector<8x32xf32>
    %35 = vector.extract_strided_slice %33 {offsets = [0, 32], sizes = [8, 32], strides = [1, 1]} : vector<8x96xf32> to vector<8x32xf32>
    %36 = vector.extract_strided_slice %33 {offsets = [0, 64], sizes = [8, 32], strides = [1, 1]} : vector<8x96xf32> to vector<8x32xf32>
    %37 = vector.extract_strided_slice %34 {offsets = [0, 0], sizes = [8, 8], strides = [1, 1]} : vector<8x32xf32> to vector<8x8xf32>
    %38 = vector.extract_strided_slice %35 {offsets = [0, 0], sizes = [8, 8], strides = [1, 1]} : vector<8x32xf32> to vector<8x8xf32>
    %39 = vector.extract_strided_slice %36 {offsets = [0, 0], sizes = [8, 8], strides = [1, 1]} : vector<8x32xf32> to vector<8x8xf32>
    %40 = tpu.transpose %38, [1, 0] : vector<8x8xf32> -> vector<8x8xf32>
    %cst_19 = arith.constant dense<0.000000e+00> : vector<8x8xf32>
    %41 = tpu.matmul %37, %40, %cst_19 {dimension_numbers = #tpu.dot_dimension_numbers<[1], [0], [0], [1], [0, 0, 1, 1], [], []>} : vector<8x8xf32>, vector<8x8xf32>, vector<8x8xf32> -> vector<8x8xf32>
    %cst_20 = arith.constant 0.353553385 : f32
    %42 = vector.broadcast %cst_20 : f32 to vector<8x8xf32>
    %43 = arith.mulf %41, %42 : vector<8x8xf32>
    %44 = vector.broadcast %26 : vector<1x8xf32> to vector<8x8xf32>
    %45 = arith.addf %43, %44 : vector<8x8xf32>
    %cst_21 = arith.constant dense<0xFF800000> : vector<8xf32>
    %46 = vector.multi_reduction <maximumf>, %45, %cst_21 [1] : vector<8x8xf32> to vector<8xf32>
    %47 = vector.shape_cast %46 : vector<8xf32> to vector<8x1xf32>
    %48 = vector.broadcast %47 : vector<8x1xf32> to vector<8x8xf32>
    %49 = arith.subf %45, %48 : vector<8x8xf32>
    %50 = math.exp %49 : vector<8x8xf32>
    %cst_22 = arith.constant dense<0.000000e+00> : vector<8xf32>
    %51 = vector.multi_reduction <add>, %50, %cst_22 [1] : vector<8x8xf32> to vector<8xf32>
    %52 = vector.shape_cast %51 : vector<8xf32> to vector<8x1xf32>
    %53 = tpu.reciprocal %52 {approx = true} : vector<8x1xf32> -> vector<8x1xf32>
    %54 = vector.broadcast %53 : vector<8x1xf32> to vector<8x8xf32>
    %55 = arith.mulf %50, %54 : vector<8x8xf32>
    %cst_23 = arith.constant dense<0.000000e+00> : vector<8x8xf32>
    %56 = tpu.matmul %55, %39, %cst_23 {dimension_numbers = #tpu.dot_dimension_numbers<[1], [0], [0], [1], [0, 0, 1, 1], [], []>} : vector<8x8xf32>, vector<8x8xf32>, vector<8x8xf32> -> vector<8x8xf32>
    %57 = vector.extract_strided_slice %34 {offsets = [0, 8], sizes = [8, 8], strides = [1, 1]} : vector<8x32xf32> to vector<8x8xf32>
    %58 = vector.extract_strided_slice %35 {offsets = [0, 8], sizes = [8, 8], strides = [1, 1]} : vector<8x32xf32> to vector<8x8xf32>
    %59 = vector.extract_strided_slice %36 {offsets = [0, 8], sizes = [8, 8], strides = [1, 1]} : vector<8x32xf32> to vector<8x8xf32>
    %60 = tpu.transpose %58, [1, 0] : vector<8x8xf32> -> vector<8x8xf32>
    %cst_24 = arith.constant dense<0.000000e+00> : vector<8x8xf32>
    %61 = tpu.matmul %57, %60, %cst_24 {dimension_numbers = #tpu.dot_dimension_numbers<[1], [0], [0], [1], [0, 0, 1, 1], [], []>} : vector<8x8xf32>, vector<8x8xf32>, vector<8x8xf32> -> vector<8x8xf32>
    %cst_25 = arith.constant 0.353553385 : f32
    %62 = vector.broadcast %cst_25 : f32 to vector<8x8xf32>
    %63 = arith.mulf %61, %62 : vector<8x8xf32>
    %64 = vector.broadcast %26 : vector<1x8xf32> to vector<8x8xf32>
    %65 = arith.addf %63, %64 : vector<8x8xf32>
    %cst_26 = arith.constant dense<0xFF800000> : vector<8xf32>
    %66 = vector.multi_reduction <maximumf>, %65, %cst_26 [1] : vector<8x8xf32> to vector<8xf32>
    %67 = vector.shape_cast %66 : vector<8xf32> to vector<8x1xf32>
    %68 = vector.broadcast %67 : vector<8x1xf32> to vector<8x8xf32>
    %69 = arith.subf %65, %68 : vector<8x8xf32>
    %70 = math.exp %69 : vector<8x8xf32>
    %cst_27 = arith.constant dense<0.000000e+00> : vector<8xf32>
    %71 = vector.multi_reduction <add>, %70, %cst_27 [1] : vector<8x8xf32> to vector<8xf32>
    %72 = vector.shape_cast %71 : vector<8xf32> to vector<8x1xf32>
    %73 = tpu.reciprocal %72 {approx = true} : vector<8x1xf32> -> vector<8x1xf32>
    %74 = vector.broadcast %73 : vector<8x1xf32> to vector<8x8xf32>
    %75 = arith.mulf %70, %74 : vector<8x8xf32>
    %cst_28 = arith.constant dense<0.000000e+00> : vector<8x8xf32>
    %76 = tpu.matmul %75, %59, %cst_28 {dimension_numbers = #tpu.dot_dimension_numbers<[1], [0], [0], [1], [0, 0, 1, 1], [], []>} : vector<8x8xf32>, vector<8x8xf32>, vector<8x8xf32> -> vector<8x8xf32>
    %77 = vector.extract_strided_slice %34 {offsets = [0, 16], sizes = [8, 8], strides = [1, 1]} : vector<8x32xf32> to vector<8x8xf32>
    %78 = vector.extract_strided_slice %35 {offsets = [0, 16], sizes = [8, 8], strides = [1, 1]} : vector<8x32xf32> to vector<8x8xf32>
    %79 = vector.extract_strided_slice %36 {offsets = [0, 16], sizes = [8, 8], strides = [1, 1]} : vector<8x32xf32> to vector<8x8xf32>
    %80 = tpu.transpose %78, [1, 0] : vector<8x8xf32> -> vector<8x8xf32>
    %cst_29 = arith.constant dense<0.000000e+00> : vector<8x8xf32>
    %81 = tpu.matmul %77, %80, %cst_29 {dimension_numbers = #tpu.dot_dimension_numbers<[1], [0], [0], [1], [0, 0, 1, 1], [], []>} : vector<8x8xf32>, vector<8x8xf32>, vector<8x8xf32> -> vector<8x8xf32>
    %cst_30 = arith.constant 0.353553385 : f32
    %82 = vector.broadcast %cst_30 : f32 to vector<8x8xf32>
    %83 = arith.mulf %81, %82 : vector<8x8xf32>
    %84 = vector.broadcast %26 : vector<1x8xf32> to vector<8x8xf32>
    %85 = arith.addf %83, %84 : vector<8x8xf32>
    %cst_31 = arith.constant dense<0xFF800000> : vector<8xf32>
    %86 = vector.multi_reduction <maximumf>, %85, %cst_31 [1] : vector<8x8xf32> to vector<8xf32>
    %87 = vector.shape_cast %86 : vector<8xf32> to vector<8x1xf32>
    %88 = vector.broadcast %87 : vector<8x1xf32> to vector<8x8xf32>
    %89 = arith.subf %85, %88 : vector<8x8xf32>
    %90 = math.exp %89 : vector<8x8xf32>
    %cst_32 = arith.constant dense<0.000000e+00> : vector<8xf32>
    %91 = vector.multi_reduction <add>, %90, %cst_32 [1] : vector<8x8xf32> to vector<8xf32>
    %92 = vector.shape_cast %91 : vector<8xf32> to vector<8x1xf32>
    %93 = tpu.reciprocal %92 {approx = true} : vector<8x1xf32> -> vector<8x1xf32>
    %94 = vector.broadcast %93 : vector<8x1xf32> to vector<8x8xf32>
    %95 = arith.mulf %90, %94 : vector<8x8xf32>
    %cst_33 = arith.constant dense<0.000000e+00> : vector<8x8xf32>
    %96 = tpu.matmul %95, %79, %cst_33 {dimension_numbers = #tpu.dot_dimension_numbers<[1], [0], [0], [1], [0, 0, 1, 1], [], []>} : vector<8x8xf32>, vector<8x8xf32>, vector<8x8xf32> -> vector<8x8xf32>
    %97 = vector.extract_strided_slice %34 {offsets = [0, 24], sizes = [8, 8], strides = [1, 1]} : vector<8x32xf32> to vector<8x8xf32>
    %98 = vector.extract_strided_slice %35 {offsets = [0, 24], sizes = [8, 8], strides = [1, 1]} : vector<8x32xf32> to vector<8x8xf32>
    %99 = vector.extract_strided_slice %36 {offsets = [0, 24], sizes = [8, 8], strides = [1, 1]} : vector<8x32xf32> to vector<8x8xf32>
    %100 = tpu.transpose %98, [1, 0] : vector<8x8xf32> -> vector<8x8xf32>
    %cst_34 = arith.constant dense<0.000000e+00> : vector<8x8xf32>
    %101 = tpu.matmul %97, %100, %cst_34 {dimension_numbers = #tpu.dot_dimension_numbers<[1], [0], [0], [1], [0, 0, 1, 1], [], []>} : vector<8x8xf32>, vector<8x8xf32>, vector<8x8xf32> -> vector<8x8xf32>
    %cst_35 = arith.constant 0.353553385 : f32
    %102 = vector.broadcast %cst_35 : f32 to vector<8x8xf32>
    %103 = arith.mulf %101, %102 : vector<8x8xf32>
    %104 = vector.broadcast %26 : vector<1x8xf32> to vector<8x8xf32>
    %105 = arith.addf %103, %104 : vector<8x8xf32>
    %cst_36 = arith.constant dense<0xFF800000> : vector<8xf32>
    %106 = vector.multi_reduction <maximumf>, %105, %cst_36 [1] : vector<8x8xf32> to vector<8xf32>
    %107 = vector.shape_cast %106 : vector<8xf32> to vector<8x1xf32>
    %108 = vector.broadcast %107 : vector<8x1xf32> to vector<8x8xf32>
    %109 = arith.subf %105, %108 : vector<8x8xf32>
    %110 = math.exp %109 : vector<8x8xf32>
    %cst_37 = arith.constant dense<0.000000e+00> : vector<8xf32>
    %111 = vector.multi_reduction <add>, %110, %cst_37 [1] : vector<8x8xf32> to vector<8xf32>
    %112 = vector.shape_cast %111 : vector<8xf32> to vector<8x1xf32>
    %113 = tpu.reciprocal %112 {approx = true} : vector<8x1xf32> -> vector<8x1xf32>
    %114 = vector.broadcast %113 : vector<8x1xf32> to vector<8x8xf32>
    %115 = arith.mulf %110, %114 : vector<8x8xf32>
    %cst_38 = arith.constant dense<0.000000e+00> : vector<8x8xf32>
    %116 = tpu.matmul %115, %99, %cst_38 {dimension_numbers = #tpu.dot_dimension_numbers<[1], [0], [0], [1], [0, 0, 1, 1], [], []>} : vector<8x8xf32>, vector<8x8xf32>, vector<8x8xf32> -> vector<8x8xf32>
    %117 = tpu.concatenate %56, %76, %96, %116 in 1 : vector<8x8xf32>, vector<8x8xf32>, vector<8x8xf32>, vector<8x8xf32> -> vector<8x32xf32>
    %c0_39 = arith.constant 0 : index
    %c0_40 = arith.constant 0 : index
    %c0_41 = arith.constant 0 : index
    %118 = vector.load %arg7[%c0_39, %c0_40, %c0_41] : memref<2x32x32xf32, #tpu.memory_space<vmem>>, vector<1x32x32xf32>
    %119 = vector.shape_cast %118 : vector<1x32x32xf32> to vector<32x32xf32>
    %cst_42 = arith.constant dense<0.000000e+00> : vector<8x32xf32>
    %120 = tpu.matmul %117, %119, %cst_42 {dimension_numbers = #tpu.dot_dimension_numbers<[1], [0], [0], [1], [0, 0, 1, 1], [], []>} : vector<8x32xf32>, vector<32x32xf32>, vector<8x32xf32> -> vector<8x32xf32>
    %c0_43 = arith.constant 0 : index
    %c0_44 = arith.constant 0 : index
    %c0_45 = arith.constant 0 : index
    %121 = vector.load %arg8[%c0_43, %c0_44, %c0_45] : memref<2x1x32xf32, #tpu.memory_space<vmem>>, vector<1x1x32xf32>
    %122 = vector.shape_cast %121 : vector<1x1x32xf32> to vector<1x32xf32>
    %123 = vector.broadcast %122 : vector<1x32xf32> to vector<8x32xf32>
    %124 = arith.addf %120, %123 : vector<8x32xf32>
    %125 = arith.addf %124, %24 : vector<8x32xf32>
    %c0_46 = arith.constant 0 : index
    %c0_47 = arith.constant 0 : index
    %c0_48 = arith.constant 0 : index
    %126 = vector.load %arg9[%c0_46, %c0_47, %c0_48] : memref<2x1x32xf32, #tpu.memory_space<vmem>>, vector<1x1x32xf32>
    %127 = vector.shape_cast %126 : vector<1x1x32xf32> to vector<1x32xf32>
    %c0_49 = arith.constant 0 : index
    %c0_50 = arith.constant 0 : index
    %c0_51 = arith.constant 0 : index
    %128 = vector.load %arg10[%c0_49, %c0_50, %c0_51] : memref<2x1x32xf32, #tpu.memory_space<vmem>>, vector<1x1x32xf32>
    %129 = vector.shape_cast %128 : vector<1x1x32xf32> to vector<1x32xf32>
    %cst_52 = arith.constant dense<0.000000e+00> : vector<8xf32>
    %130 = vector.multi_reduction <add>, %125, %cst_52 [1] : vector<8x32xf32> to vector<8xf32>
    %131 = vector.shape_cast %130 : vector<8xf32> to vector<8x1xf32>
    %cst_53 = arith.constant 3.200000e+01 : f32
    %132 = vector.broadcast %cst_53 : f32 to vector<8x1xf32>
    %133 = arith.divf %131, %132 : vector<8x1xf32>
    %134 = vector.broadcast %133 : vector<8x1xf32> to vector<8x32xf32>
    %135 = arith.subf %125, %134 : vector<8x32xf32>
    %136 = arith.mulf %135, %135 : vector<8x32xf32>
    %cst_54 = arith.constant dense<0.000000e+00> : vector<8xf32>
    %137 = vector.multi_reduction <add>, %136, %cst_54 [1] : vector<8x32xf32> to vector<8xf32>
    %138 = vector.shape_cast %137 : vector<8xf32> to vector<8x1xf32>
    %cst_55 = arith.constant 3.200000e+01 : f32
    %139 = vector.broadcast %cst_55 : f32 to vector<8x1xf32>
    %140 = arith.divf %138, %139 : vector<8x1xf32>
    %141 = vector.broadcast %133 : vector<8x1xf32> to vector<8x32xf32>
    %142 = arith.subf %125, %141 : vector<8x32xf32>
    %cst_56 = arith.constant 9.99999996E-13 : f32
    %143 = vector.broadcast %cst_56 : f32 to vector<8x1xf32>
    %144 = arith.addf %140, %143 : vector<8x1xf32>
    %145 = math.rsqrt %144 : vector<8x1xf32>
    %146 = vector.broadcast %145 : vector<8x1xf32> to vector<8x32xf32>
    %147 = arith.mulf %142, %146 : vector<8x32xf32>
    %148 = vector.broadcast %127 : vector<1x32xf32> to vector<8x32xf32>
    %149 = arith.mulf %147, %148 : vector<8x32xf32>
    %150 = vector.broadcast %129 : vector<1x32xf32> to vector<8x32xf32>
    %151 = arith.addf %149, %150 : vector<8x32xf32>
    %c0_57 = arith.constant 0 : index
    %c0_58 = arith.constant 0 : index
    %c0_59 = arith.constant 0 : index
    %152 = vector.load %arg11[%c0_57, %c0_58, %c0_59] : memref<2x32x64xf32, #tpu.memory_space<vmem>>, vector<1x32x64xf32>
    %153 = vector.shape_cast %152 : vector<1x32x64xf32> to vector<32x64xf32>
    %cst_60 = arith.constant dense<0.000000e+00> : vector<8x64xf32>
    %154 = tpu.matmul %151, %153, %cst_60 {dimension_numbers = #tpu.dot_dimension_numbers<[1], [0], [0], [1], [0, 0, 1, 1], [], []>} : vector<8x32xf32>, vector<32x64xf32>, vector<8x64xf32> -> vector<8x64xf32>
    %c0_61 = arith.constant 0 : index
    %c0_62 = arith.constant 0 : index
    %c0_63 = arith.constant 0 : index
    %155 = vector.load %arg12[%c0_61, %c0_62, %c0_63] : memref<2x1x64xf32, #tpu.memory_space<vmem>>, vector<1x1x64xf32>
    %156 = vector.shape_cast %155 : vector<1x1x64xf32> to vector<1x64xf32>
    %157 = vector.broadcast %156 : vector<1x64xf32> to vector<8x64xf32>
    %158 = arith.addf %154, %157 : vector<8x64xf32>
    %cst_64 = arith.constant 5.000000e-01 : f32
    %159 = vector.broadcast %cst_64 : f32 to vector<8x64xf32>
    %160 = arith.mulf %159, %158 : vector<8x64xf32>
    %cst_65 = arith.constant 0.707106769 : f32
    %161 = vector.broadcast %cst_65 : f32 to vector<8x64xf32>
    %162 = arith.mulf %158, %161 : vector<8x64xf32>
    %163 = math.erf %162 : vector<8x64xf32>
    %cst_66 = arith.constant 1.000000e+00 : f32
    %164 = vector.broadcast %cst_66 : f32 to vector<8x64xf32>
    %165 = arith.addf %164, %163 : vector<8x64xf32>
    %166 = arith.mulf %160, %165 : vector<8x64xf32>
    %c0_67 = arith.constant 0 : index
    %c0_68 = arith.constant 0 : index
    %c0_69 = arith.constant 0 : index
    %167 = vector.load %arg13[%c0_67, %c0_68, %c0_69] : memref<2x64x32xf32, #tpu.memory_space<vmem>>, vector<1x64x32xf32>
    %168 = vector.shape_cast %167 : vector<1x64x32xf32> to vector<64x32xf32>
    %cst_70 = arith.constant dense<0.000000e+00> : vector<8x32xf32>
    %169 = tpu.matmul %166, %168, %cst_70 {dimension_numbers = #tpu.dot_dimension_numbers<[1], [0], [0], [1], [0, 0, 1, 1], [], []>} : vector<8x64xf32>, vector<64x32xf32>, vector<8x32xf32> -> vector<8x32xf32>
    %c0_71 = arith.constant 0 : index
    %c0_72 = arith.constant 0 : index
    %c0_73 = arith.constant 0 : index
    %170 = vector.load %arg14[%c0_71, %c0_72, %c0_73] : memref<2x1x32xf32, #tpu.memory_space<vmem>>, vector<1x1x32xf32>
    %171 = vector.shape_cast %170 : vector<1x1x32xf32> to vector<1x32xf32>
    %172 = vector.broadcast %171 : vector<1x32xf32> to vector<8x32xf32>
    %173 = arith.addf %169, %172 : vector<8x32xf32>
    %174 = arith.addf %173, %151 : vector<8x32xf32>
    %c0_74 = arith.constant 0 : index
    %c0_75 = arith.constant 0 : index
    %c0_76 = arith.constant 0 : index
    %175 = vector.load %arg15[%c0_74, %c0_75, %c0_76] : memref<2x1x32xf32, #tpu.memory_space<vmem>>, vector<1x1x32xf32>
    %176 = vector.shape_cast %175 : vector<1x1x32xf32> to vector<1x32xf32>
    %c0_77 = arith.constant 0 : index
    %c0_78 = arith.constant 0 : index
    %c0_79 = arith.constant 0 : index
    %177 = vector.load %arg16[%c0_77, %c0_78, %c0_79] : memref<2x1x32xf32, #tpu.memory_space<vmem>>, vector<1x1x32xf32>
    %178 = vector.shape_cast %177 : vector<1x1x32xf32> to vector<1x32xf32>
    %cst_80 = arith.constant dense<0.000000e+00> : vector<8xf32>
    %179 = vector.multi_reduction <add>, %174, %cst_80 [1] : vector<8x32xf32> to vector<8xf32>
    %180 = vector.shape_cast %179 : vector<8xf32> to vector<8x1xf32>
    %cst_81 = arith.constant 3.200000e+01 : f32
    %181 = vector.broadcast %cst_81 : f32 to vector<8x1xf32>
    %182 = arith.divf %180, %181 : vector<8x1xf32>
    %183 = vector.broadcast %182 : vector<8x1xf32> to vector<8x32xf32>
    %184 = arith.subf %174, %183 : vector<8x32xf32>
    %185 = arith.mulf %184, %184 : vector<8x32xf32>
    %cst_82 = arith.constant dense<0.000000e+00> : vector<8xf32>
    %186 = vector.multi_reduction <add>, %185, %cst_82 [1] : vector<8x32xf32> to vector<8xf32>
    %187 = vector.shape_cast %186 : vector<8xf32> to vector<8x1xf32>
    %cst_83 = arith.constant 3.200000e+01 : f32
    %188 = vector.broadcast %cst_83 : f32 to vector<8x1xf32>
    %189 = arith.divf %187, %188 : vector<8x1xf32>
    %190 = vector.broadcast %182 : vector<8x1xf32> to vector<8x32xf32>
    %191 = arith.subf %174, %190 : vector<8x32xf32>
    %cst_84 = arith.constant 9.99999996E-13 : f32
    %192 = vector.broadcast %cst_84 : f32 to vector<8x1xf32>
    %193 = arith.addf %189, %192 : vector<8x1xf32>
    %194 = math.rsqrt %193 : vector<8x1xf32>
    %195 = vector.broadcast %194 : vector<8x1xf32> to vector<8x32xf32>
    %196 = arith.mulf %191, %195 : vector<8x32xf32>
    %197 = vector.broadcast %176 : vector<1x32xf32> to vector<8x32xf32>
    %198 = arith.mulf %196, %197 : vector<8x32xf32>
    %199 = vector.broadcast %178 : vector<1x32xf32> to vector<8x32xf32>
    %200 = arith.addf %198, %199 : vector<8x32xf32>
    %c1 = arith.constant 1 : index
    %c0_85 = arith.constant 0 : index
    %c0_86 = arith.constant 0 : index
    %201 = vector.load %arg5[%c1, %c0_85, %c0_86] : memref<2x32x96xf32, #tpu.memory_space<vmem>>, vector<1x32x96xf32>
    %202 = vector.shape_cast %201 : vector<1x32x96xf32> to vector<32x96xf32>
    %cst_87 = arith.constant dense<0.000000e+00> : vector<8x96xf32>
    %203 = tpu.matmul %200, %202, %cst_87 {dimension_numbers = #tpu.dot_dimension_numbers<[1], [0], [0], [1], [0, 0, 1, 1], [], []>} : vector<8x32xf32>, vector<32x96xf32>, vector<8x96xf32> -> vector<8x96xf32>
    %c1_88 = arith.constant 1 : index
    %c0_89 = arith.constant 0 : index
    %c0_90 = arith.constant 0 : index
    %204 = vector.load %arg6[%c1_88, %c0_89, %c0_90] : memref<2x1x96xf32, #tpu.memory_space<vmem>>, vector<1x1x96xf32>
    %205 = vector.shape_cast %204 : vector<1x1x96xf32> to vector<1x96xf32>
    %206 = vector.broadcast %205 : vector<1x96xf32> to vector<8x96xf32>
    %207 = arith.addf %203, %206 : vector<8x96xf32>
    %208 = vector.extract_strided_slice %207 {offsets = [0, 0], sizes = [8, 32], strides = [1, 1]} : vector<8x96xf32> to vector<8x32xf32>
    %209 = vector.extract_strided_slice %207 {offsets = [0, 32], sizes = [8, 32], strides = [1, 1]} : vector<8x96xf32> to vector<8x32xf32>
    %210 = vector.extract_strided_slice %207 {offsets = [0, 64], sizes = [8, 32], strides = [1, 1]} : vector<8x96xf32> to vector<8x32xf32>
    %211 = vector.extract_strided_slice %208 {offsets = [0, 0], sizes = [8, 8], strides = [1, 1]} : vector<8x32xf32> to vector<8x8xf32>
    %212 = vector.extract_strided_slice %209 {offsets = [0, 0], sizes = [8, 8], strides = [1, 1]} : vector<8x32xf32> to vector<8x8xf32>
    %213 = vector.extract_strided_slice %210 {offsets = [0, 0], sizes = [8, 8], strides = [1, 1]} : vector<8x32xf32> to vector<8x8xf32>
    %214 = tpu.transpose %212, [1, 0] : vector<8x8xf32> -> vector<8x8xf32>
    %cst_91 = arith.constant dense<0.000000e+00> : vector<8x8xf32>
    %215 = tpu.matmul %211, %214, %cst_91 {dimension_numbers = #tpu.dot_dimension_numbers<[1], [0], [0], [1], [0, 0, 1, 1], [], []>} : vector<8x8xf32>, vector<8x8xf32>, vector<8x8xf32> -> vector<8x8xf32>
    %cst_92 = arith.constant 0.353553385 : f32
    %216 = vector.broadcast %cst_92 : f32 to vector<8x8xf32>
    %217 = arith.mulf %215, %216 : vector<8x8xf32>
    %218 = vector.broadcast %26 : vector<1x8xf32> to vector<8x8xf32>
    %219 = arith.addf %217, %218 : vector<8x8xf32>
    %cst_93 = arith.constant dense<0xFF800000> : vector<8xf32>
    %220 = vector.multi_reduction <maximumf>, %219, %cst_93 [1] : vector<8x8xf32> to vector<8xf32>
    %221 = vector.shape_cast %220 : vector<8xf32> to vector<8x1xf32>
    %222 = vector.broadcast %221 : vector<8x1xf32> to vector<8x8xf32>
    %223 = arith.subf %219, %222 : vector<8x8xf32>
    %224 = math.exp %223 : vector<8x8xf32>
    %cst_94 = arith.constant dense<0.000000e+00> : vector<8xf32>
    %225 = vector.multi_reduction <add>, %224, %cst_94 [1] : vector<8x8xf32> to vector<8xf32>
    %226 = vector.shape_cast %225 : vector<8xf32> to vector<8x1xf32>
    %227 = tpu.reciprocal %226 {approx = true} : vector<8x1xf32> -> vector<8x1xf32>
    %228 = vector.broadcast %227 : vector<8x1xf32> to vector<8x8xf32>
    %229 = arith.mulf %224, %228 : vector<8x8xf32>
    %cst_95 = arith.constant dense<0.000000e+00> : vector<8x8xf32>
    %230 = tpu.matmul %229, %213, %cst_95 {dimension_numbers = #tpu.dot_dimension_numbers<[1], [0], [0], [1], [0, 0, 1, 1], [], []>} : vector<8x8xf32>, vector<8x8xf32>, vector<8x8xf32> -> vector<8x8xf32>
    %231 = vector.extract_strided_slice %208 {offsets = [0, 8], sizes = [8, 8], strides = [1, 1]} : vector<8x32xf32> to vector<8x8xf32>
    %232 = vector.extract_strided_slice %209 {offsets = [0, 8], sizes = [8, 8], strides = [1, 1]} : vector<8x32xf32> to vector<8x8xf32>
    %233 = vector.extract_strided_slice %210 {offsets = [0, 8], sizes = [8, 8], strides = [1, 1]} : vector<8x32xf32> to vector<8x8xf32>
    %234 = tpu.transpose %232, [1, 0] : vector<8x8xf32> -> vector<8x8xf32>
    %cst_96 = arith.constant dense<0.000000e+00> : vector<8x8xf32>
    %235 = tpu.matmul %231, %234, %cst_96 {dimension_numbers = #tpu.dot_dimension_numbers<[1], [0], [0], [1], [0, 0, 1, 1], [], []>} : vector<8x8xf32>, vector<8x8xf32>, vector<8x8xf32> -> vector<8x8xf32>
    %cst_97 = arith.constant 0.353553385 : f32
    %236 = vector.broadcast %cst_97 : f32 to vector<8x8xf32>
    %237 = arith.mulf %235, %236 : vector<8x8xf32>
    %238 = vector.broadcast %26 : vector<1x8xf32> to vector<8x8xf32>
    %239 = arith.addf %237, %238 : vector<8x8xf32>
    %cst_98 = arith.constant dense<0xFF800000> : vector<8xf32>
    %240 = vector.multi_reduction <maximumf>, %239, %cst_98 [1] : vector<8x8xf32> to vector<8xf32>
    %241 = vector.shape_cast %240 : vector<8xf32> to vector<8x1xf32>
    %242 = vector.broadcast %241 : vector<8x1xf32> to vector<8x8xf32>
    %243 = arith.subf %239, %242 : vector<8x8xf32>
    %244 = math.exp %243 : vector<8x8xf32>
    %cst_99 = arith.constant dense<0.000000e+00> : vector<8xf32>
    %245 = vector.multi_reduction <add>, %244, %cst_99 [1] : vector<8x8xf32> to vector<8xf32>
    %246 = vector.shape_cast %245 : vector<8xf32> to vector<8x1xf32>
    %247 = tpu.reciprocal %246 {approx = true} : vector<8x1xf32> -> vector<8x1xf32>
    %248 = vector.broadcast %247 : vector<8x1xf32> to vector<8x8xf32>
    %249 = arith.mulf %244, %248 : vector<8x8xf32>
    %cst_100 = arith.constant dense<0.000000e+00> : vector<8x8xf32>
    %250 = tpu.matmul %249, %233, %cst_100 {dimension_numbers = #tpu.dot_dimension_numbers<[1], [0], [0], [1], [0, 0, 1, 1], [], []>} : vector<8x8xf32>, vector<8x8xf32>, vector<8x8xf32> -> vector<8x8xf32>
    %251 = vector.extract_strided_slice %208 {offsets = [0, 16], sizes = [8, 8], strides = [1, 1]} : vector<8x32xf32> to vector<8x8xf32>
    %252 = vector.extract_strided_slice %209 {offsets = [0, 16], sizes = [8, 8], strides = [1, 1]} : vector<8x32xf32> to vector<8x8xf32>
    %253 = vector.extract_strided_slice %210 {offsets = [0, 16], sizes = [8, 8], strides = [1, 1]} : vector<8x32xf32> to vector<8x8xf32>
    %254 = tpu.transpose %252, [1, 0] : vector<8x8xf32> -> vector<8x8xf32>
    %cst_101 = arith.constant dense<0.000000e+00> : vector<8x8xf32>
    %255 = tpu.matmul %251, %254, %cst_101 {dimension_numbers = #tpu.dot_dimension_numbers<[1], [0], [0], [1], [0, 0, 1, 1], [], []>} : vector<8x8xf32>, vector<8x8xf32>, vector<8x8xf32> -> vector<8x8xf32>
    %cst_102 = arith.constant 0.353553385 : f32
    %256 = vector.broadcast %cst_102 : f32 to vector<8x8xf32>
    %257 = arith.mulf %255, %256 : vector<8x8xf32>
    %258 = vector.broadcast %26 : vector<1x8xf32> to vector<8x8xf32>
    %259 = arith.addf %257, %258 : vector<8x8xf32>
    %cst_103 = arith.constant dense<0xFF800000> : vector<8xf32>
    %260 = vector.multi_reduction <maximumf>, %259, %cst_103 [1] : vector<8x8xf32> to vector<8xf32>
    %261 = vector.shape_cast %260 : vector<8xf32> to vector<8x1xf32>
    %262 = vector.broadcast %261 : vector<8x1xf32> to vector<8x8xf32>
    %263 = arith.subf %259, %262 : vector<8x8xf32>
    %264 = math.exp %263 : vector<8x8xf32>
    %cst_104 = arith.constant dense<0.000000e+00> : vector<8xf32>
    %265 = vector.multi_reduction <add>, %264, %cst_104 [1] : vector<8x8xf32> to vector<8xf32>
    %266 = vector.shape_cast %265 : vector<8xf32> to vector<8x1xf32>
    %267 = tpu.reciprocal %266 {approx = true} : vector<8x1xf32> -> vector<8x1xf32>
    %268 = vector.broadcast %267 : vector<8x1xf32> to vector<8x8xf32>
    %269 = arith.mulf %264, %268 : vector<8x8xf32>
    %cst_105 = arith.constant dense<0.000000e+00> : vector<8x8xf32>
    %270 = tpu.matmul %269, %253, %cst_105 {dimension_numbers = #tpu.dot_dimension_numbers<[1], [0], [0], [1], [0, 0, 1, 1], [], []>} : vector<8x8xf32>, vector<8x8xf32>, vector<8x8xf32> -> vector<8x8xf32>
    %271 = vector.extract_strided_slice %208 {offsets = [0, 24], sizes = [8, 8], strides = [1, 1]} : vector<8x32xf32> to vector<8x8xf32>
    %272 = vector.extract_strided_slice %209 {offsets = [0, 24], sizes = [8, 8], strides = [1, 1]} : vector<8x32xf32> to vector<8x8xf32>
    %273 = vector.extract_strided_slice %210 {offsets = [0, 24], sizes = [8, 8], strides = [1, 1]} : vector<8x32xf32> to vector<8x8xf32>
    %274 = tpu.transpose %272, [1, 0] : vector<8x8xf32> -> vector<8x8xf32>
    %cst_106 = arith.constant dense<0.000000e+00> : vector<8x8xf32>
    %275 = tpu.matmul %271, %274, %cst_106 {dimension_numbers = #tpu.dot_dimension_numbers<[1], [0], [0], [1], [0, 0, 1, 1], [], []>} : vector<8x8xf32>, vector<8x8xf32>, vector<8x8xf32> -> vector<8x8xf32>
    %cst_107 = arith.constant 0.353553385 : f32
    %276 = vector.broadcast %cst_107 : f32 to vector<8x8xf32>
    %277 = arith.mulf %275, %276 : vector<8x8xf32>
    %278 = vector.broadcast %26 : vector<1x8xf32> to vector<8x8xf32>
    %279 = arith.addf %277, %278 : vector<8x8xf32>
    %cst_108 = arith.constant dense<0xFF800000> : vector<8xf32>
    %280 = vector.multi_reduction <maximumf>, %279, %cst_108 [1] : vector<8x8xf32> to vector<8xf32>
    %281 = vector.shape_cast %280 : vector<8xf32> to vector<8x1xf32>
    %282 = vector.broadcast %281 : vector<8x1xf32> to vector<8x8xf32>
    %283 = arith.subf %279, %282 : vector<8x8xf32>
    %284 = math.exp %283 : vector<8x8xf32>
    %cst_109 = arith.constant dense<0.000000e+00> : vector<8xf32>
    %285 = vector.multi_reduction <add>, %284, %cst_109 [1] : vector<8x8xf32> to vector<8xf32>
    %286 = vector.shape_cast %285 : vector<8xf32> to vector<8x1xf32>
    %287 = tpu.reciprocal %286 {approx = true} : vector<8x1xf32> -> vector<8x1xf32>
    %288 = vector.broadcast %287 : vector<8x1xf32> to vector<8x8xf32>
    %289 = arith.mulf %284, %288 : vector<8x8xf32>
    %cst_110 = arith.constant dense<0.000000e+00> : vector<8x8xf32>
    %290 = tpu.matmul %289, %273, %cst_110 {dimension_numbers = #tpu.dot_dimension_numbers<[1], [0], [0], [1], [0, 0, 1, 1], [], []>} : vector<8x8xf32>, vector<8x8xf32>, vector<8x8xf32> -> vector<8x8xf32>
    %291 = tpu.concatenate %230, %250, %270, %290 in 1 : vector<8x8xf32>, vector<8x8xf32>, vector<8x8xf32>, vector<8x8xf32> -> vector<8x32xf32>
    %c1_111 = arith.constant 1 : index
    %c0_112 = arith.constant 0 : index
    %c0_113 = arith.constant 0 : index
    %292 = vector.load %arg7[%c1_111, %c0_112, %c0_113] : memref<2x32x32xf32, #tpu.memory_space<vmem>>, vector<1x32x32xf32>
    %293 = vector.shape_cast %292 : vector<1x32x32xf32> to vector<32x32xf32>
    %cst_114 = arith.constant dense<0.000000e+00> : vector<8x32xf32>
    %294 = tpu.matmul %291, %293, %cst_114 {dimension_numbers = #tpu.dot_dimension_numbers<[1], [0], [0], [1], [0, 0, 1, 1], [], []>} : vector<8x32xf32>, vector<32x32xf32>, vector<8x32xf32> -> vector<8x32xf32>
    %c1_115 = arith.constant 1 : index
    %c0_116 = arith.constant 0 : index
    %c0_117 = arith.constant 0 : index
    %295 = vector.load %arg8[%c1_115, %c0_116, %c0_117] : memref<2x1x32xf32, #tpu.memory_space<vmem>>, vector<1x1x32xf32>
    %296 = vector.shape_cast %295 : vector<1x1x32xf32> to vector<1x32xf32>
    %297 = vector.broadcast %296 : vector<1x32xf32> to vector<8x32xf32>
    %298 = arith.addf %294, %297 : vector<8x32xf32>
    %299 = arith.addf %298, %200 : vector<8x32xf32>
    %c1_118 = arith.constant 1 : index
    %c0_119 = arith.constant 0 : index
    %c0_120 = arith.constant 0 : index
    %300 = vector.load %arg9[%c1_118, %c0_119, %c0_120] : memref<2x1x32xf32, #tpu.memory_space<vmem>>, vector<1x1x32xf32>
    %301 = vector.shape_cast %300 : vector<1x1x32xf32> to vector<1x32xf32>
    %c1_121 = arith.constant 1 : index
    %c0_122 = arith.constant 0 : index
    %c0_123 = arith.constant 0 : index
    %302 = vector.load %arg10[%c1_121, %c0_122, %c0_123] : memref<2x1x32xf32, #tpu.memory_space<vmem>>, vector<1x1x32xf32>
    %303 = vector.shape_cast %302 : vector<1x1x32xf32> to vector<1x32xf32>
    %cst_124 = arith.constant dense<0.000000e+00> : vector<8xf32>
    %304 = vector.multi_reduction <add>, %299, %cst_124 [1] : vector<8x32xf32> to vector<8xf32>
    %305 = vector.shape_cast %304 : vector<8xf32> to vector<8x1xf32>
    %cst_125 = arith.constant 3.200000e+01 : f32
    %306 = vector.broadcast %cst_125 : f32 to vector<8x1xf32>
    %307 = arith.divf %305, %306 : vector<8x1xf32>
    %308 = vector.broadcast %307 : vector<8x1xf32> to vector<8x32xf32>
    %309 = arith.subf %299, %308 : vector<8x32xf32>
    %310 = arith.mulf %309, %309 : vector<8x32xf32>
    %cst_126 = arith.constant dense<0.000000e+00> : vector<8xf32>
    %311 = vector.multi_reduction <add>, %310, %cst_126 [1] : vector<8x32xf32> to vector<8xf32>
    %312 = vector.shape_cast %311 : vector<8xf32> to vector<8x1xf32>
    %cst_127 = arith.constant 3.200000e+01 : f32
    %313 = vector.broadcast %cst_127 : f32 to vector<8x1xf32>
    %314 = arith.divf %312, %313 : vector<8x1xf32>
    %315 = vector.broadcast %307 : vector<8x1xf32> to vector<8x32xf32>
    %316 = arith.subf %299, %315 : vector<8x32xf32>
    %cst_128 = arith.constant 9.99999996E-13 : f32
    %317 = vector.broadcast %cst_128 : f32 to vector<8x1xf32>
    %318 = arith.addf %314, %317 : vector<8x1xf32>
    %319 = math.rsqrt %318 : vector<8x1xf32>
    %320 = vector.broadcast %319 : vector<8x1xf32> to vector<8x32xf32>
    %321 = arith.mulf %316, %320 : vector<8x32xf32>
    %322 = vector.broadcast %301 : vector<1x32xf32> to vector<8x32xf32>
    %323 = arith.mulf %321, %322 : vector<8x32xf32>
    %324 = vector.broadcast %303 : vector<1x32xf32> to vector<8x32xf32>
    %325 = arith.addf %323, %324 : vector<8x32xf32>
    %c1_129 = arith.constant 1 : index
    %c0_130 = arith.constant 0 : index
    %c0_131 = arith.constant 0 : index
    %326 = vector.load %arg11[%c1_129, %c0_130, %c0_131] : memref<2x32x64xf32, #tpu.memory_space<vmem>>, vector<1x32x64xf32>
    %327 = vector.shape_cast %326 : vector<1x32x64xf32> to vector<32x64xf32>
    %cst_132 = arith.constant dense<0.000000e+00> : vector<8x64xf32>
    %328 = tpu.matmul %325, %327, %cst_132 {dimension_numbers = #tpu.dot_dimension_numbers<[1], [0], [0], [1], [0, 0, 1, 1], [], []>} : vector<8x32xf32>, vector<32x64xf32>, vector<8x64xf32> -> vector<8x64xf32>
    %c1_133 = arith.constant 1 : index
    %c0_134 = arith.constant 0 : index
    %c0_135 = arith.constant 0 : index
    %329 = vector.load %arg12[%c1_133, %c0_134, %c0_135] : memref<2x1x64xf32, #tpu.memory_space<vmem>>, vector<1x1x64xf32>
    %330 = vector.shape_cast %329 : vector<1x1x64xf32> to vector<1x64xf32>
    %331 = vector.broadcast %330 : vector<1x64xf32> to vector<8x64xf32>
    %332 = arith.addf %328, %331 : vector<8x64xf32>
    %cst_136 = arith.constant 5.000000e-01 : f32
    %333 = vector.broadcast %cst_136 : f32 to vector<8x64xf32>
    %334 = arith.mulf %333, %332 : vector<8x64xf32>
    %cst_137 = arith.constant 0.707106769 : f32
    %335 = vector.broadcast %cst_137 : f32 to vector<8x64xf32>
    %336 = arith.mulf %332, %335 : vector<8x64xf32>
    %337 = math.erf %336 : vector<8x64xf32>
    %cst_138 = arith.constant 1.000000e+00 : f32
    %338 = vector.broadcast %cst_138 : f32 to vector<8x64xf32>
    %339 = arith.addf %338, %337 : vector<8x64xf32>
    %340 = arith.mulf %334, %339 : vector<8x64xf32>
    %c1_139 = arith.constant 1 : index
    %c0_140 = arith.constant 0 : index
    %c0_141 = arith.constant 0 : index
    %341 = vector.load %arg13[%c1_139, %c0_140, %c0_141] : memref<2x64x32xf32, #tpu.memory_space<vmem>>, vector<1x64x32xf32>
    %342 = vector.shape_cast %341 : vector<1x64x32xf32> to vector<64x32xf32>
    %cst_142 = arith.constant dense<0.000000e+00> : vector<8x32xf32>
    %343 = tpu.matmul %340, %342, %cst_142 {dimension_numbers = #tpu.dot_dimension_numbers<[1], [0], [0], [1], [0, 0, 1, 1], [], []>} : vector<8x64xf32>, vector<64x32xf32>, vector<8x32xf32> -> vector<8x32xf32>
    %c1_143 = arith.constant 1 : index
    %c0_144 = arith.constant 0 : index
    %c0_145 = arith.constant 0 : index
    %344 = vector.load %arg14[%c1_143, %c0_144, %c0_145] : memref<2x1x32xf32, #tpu.memory_space<vmem>>, vector<1x1x32xf32>
    %345 = vector.shape_cast %344 : vector<1x1x32xf32> to vector<1x32xf32>
    %346 = vector.broadcast %345 : vector<1x32xf32> to vector<8x32xf32>
    %347 = arith.addf %343, %346 : vector<8x32xf32>
    %348 = arith.addf %347, %325 : vector<8x32xf32>
    %c1_146 = arith.constant 1 : index
    %c0_147 = arith.constant 0 : index
    %c0_148 = arith.constant 0 : index
    %349 = vector.load %arg15[%c1_146, %c0_147, %c0_148] : memref<2x1x32xf32, #tpu.memory_space<vmem>>, vector<1x1x32xf32>
    %350 = vector.shape_cast %349 : vector<1x1x32xf32> to vector<1x32xf32>
    %c1_149 = arith.constant 1 : index
    %c0_150 = arith.constant 0 : index
    %c0_151 = arith.constant 0 : index
    %351 = vector.load %arg16[%c1_149, %c0_150, %c0_151] : memref<2x1x32xf32, #tpu.memory_space<vmem>>, vector<1x1x32xf32>
    %352 = vector.shape_cast %351 : vector<1x1x32xf32> to vector<1x32xf32>
    %cst_152 = arith.constant dense<0.000000e+00> : vector<8xf32>
    %353 = vector.multi_reduction <add>, %348, %cst_152 [1] : vector<8x32xf32> to vector<8xf32>
    %354 = vector.shape_cast %353 : vector<8xf32> to vector<8x1xf32>
    %cst_153 = arith.constant 3.200000e+01 : f32
    %355 = vector.broadcast %cst_153 : f32 to vector<8x1xf32>
    %356 = arith.divf %354, %355 : vector<8x1xf32>
    %357 = vector.broadcast %356 : vector<8x1xf32> to vector<8x32xf32>
    %358 = arith.subf %348, %357 : vector<8x32xf32>
    %359 = arith.mulf %358, %358 : vector<8x32xf32>
    %cst_154 = arith.constant dense<0.000000e+00> : vector<8xf32>
    %360 = vector.multi_reduction <add>, %359, %cst_154 [1] : vector<8x32xf32> to vector<8xf32>
    %361 = vector.shape_cast %360 : vector<8xf32> to vector<8x1xf32>
    %cst_155 = arith.constant 3.200000e+01 : f32
    %362 = vector.broadcast %cst_155 : f32 to vector<8x1xf32>
    %363 = arith.divf %361, %362 : vector<8x1xf32>
    %364 = vector.broadcast %356 : vector<8x1xf32> to vector<8x32xf32>
    %365 = arith.subf %348, %364 : vector<8x32xf32>
    %cst_156 = arith.constant 9.99999996E-13 : f32
    %366 = vector.broadcast %cst_156 : f32 to vector<8x1xf32>
    %367 = arith.addf %363, %366 : vector<8x1xf32>
    %368 = math.rsqrt %367 : vector<8x1xf32>
    %369 = vector.broadcast %368 : vector<8x1xf32> to vector<8x32xf32>
    %370 = arith.mulf %365, %369 : vector<8x32xf32>
    %371 = vector.broadcast %350 : vector<1x32xf32> to vector<8x32xf32>
    %372 = arith.mulf %370, %371 : vector<8x32xf32>
    %373 = vector.broadcast %352 : vector<1x32xf32> to vector<8x32xf32>
    %374 = arith.addf %372, %373 : vector<8x32xf32>
    %375 = vector.extract_strided_slice %374 {offsets = [0, 0], sizes = [1, 32], strides = [1, 1]} : vector<8x32xf32> to vector<1x32xf32>
    %c0_157 = arith.constant 0 : index
    %c0_158 = arith.constant 0 : index
    %376 = vector.load %arg17[%c0_157, %c0_158] : memref<32x128xf32, #tpu.memory_space<vmem>>, vector<32x128xf32>
    %cst_159 = arith.constant dense<0.000000e+00> : vector<1x128xf32>
    %377 = tpu.matmul %375, %376, %cst_159 {dimension_numbers = #tpu.dot_dimension_numbers<[1], [0], [0], [1], [0, 0, 1, 1], [], []>} : vector<1x32xf32>, vector<32x128xf32>, vector<1x128xf32> -> vector<1x128xf32>
    %c0_160 = arith.constant 0 : index
    %c0_161 = arith.constant 0 : index
    %378 = vector.load %arg18[%c0_160, %c0_161] : memref<1x128xf32, #tpu.memory_space<vmem>>, vector<1x128xf32>
    %379 = arith.addf %377, %378 : vector<1x128xf32>
    %c0_162 = arith.constant 0 : index
    %c0_163 = arith.constant 0 : index
    %c0_164 = arith.constant 0 : index
    %380 = vector.load %arg19[%c0_162, %c0_163, %c0_164] : memref<1x1x128xf32, #tpu.memory_space<vmem>>, vector<1x1x128xf32>
    %381 = vector.shape_cast %380 : vector<1x1x128xf32> to vector<1x128xf32>
    %382 = vector.shape_cast %379 : vector<1x128xf32> to vector<1x1x128xf32>
    tpu.vector_store %arg19[%c0_162, %c0_163, %c0_164], %382 {strides = array<i32>} : memref<1x1x128xf32, #tpu.memory_space<vmem>>, vector<1x1x128xf32>,
    return
  }
  func.func @transform_0(%arg0: i32) -> (i32, i32) {
    %c0_i32 = arith.constant 0 : i32
    %c0_i32_0 = arith.constant 0 : i32
    return %arg0, %c0_i32 : i32, i32
  }
  func.func @transform_1(%arg0: i32) -> (i32, i32, i32) {
    %c0_i32 = arith.constant 0 : i32
    %c0_i32_0 = arith.constant 0 : i32
    %c0_i32_1 = arith.constant 0 : i32
    return %arg0, %c0_i32, %c0_i32_0 : i32, i32, i32
  }
  func.func @transform_2(%arg0: i32) -> (i32, i32) {
    %c0_i32 = arith.constant 0 : i32
    %c0_i32_0 = arith.constant 0 : i32
    %c0_i32_1 = arith.constant 0 : i32
    return %c0_i32, %c0_i32_0 : i32, i32
  }
  func.func @transform_3(%arg0: i32) -> (i32, i32) {
    %c0_i32 = arith.constant 0 : i32
    %c0_i32_0 = arith.constant 0 : i32
    %c0_i32_1 = arith.constant 0 : i32
    return %c0_i32, %c0_i32_0 : i32, i32
  }
  func.func @transform_4(%arg0: i32) -> (i32, i32, i32) {
    %c0_i32 = arith.constant 0 : i32
    %c0_i32_0 = arith.constant 0 : i32
    %c0_i32_1 = arith.constant 0 : i32
    %c0_i32_2 = arith.constant 0 : i32
    return %c0_i32, %c0_i32_0, %c0_i32_1 : i32, i32, i32
  }
  func.func @transform_5(%arg0: i32) -> (i32, i32, i32) {
    %c0_i32 = arith.constant 0 : i32
    %c0_i32_0 = arith.constant 0 : i32
    %c0_i32_1 = arith.constant 0 : i32
    %c0_i32_2 = arith.constant 0 : i32
    return %c0_i32, %c0_i32_0, %c0_i32_1 : i32, i32, i32
  }
  func.func @transform_6(%arg0: i32) -> (i32, i32, i32) {
    %c0_i32 = arith.constant 0 : i32
    %c0_i32_0 = arith.constant 0 : i32
    %c0_i32_1 = arith.constant 0 : i32
    %c0_i32_2 = arith.constant 0 : i32
    return %c0_i32, %c0_i32_0, %c0_i32_1 : i32, i32, i32
  }
  func.func @transform_7(%arg0: i32) -> (i32, i32, i32) {
    %c0_i32 = arith.constant 0 : i32
    %c0_i32_0 = arith.constant 0 : i32
    %c0_i32_1 = arith.constant 0 : i32
    %c0_i32_2 = arith.constant 0 : i32
    return %c0_i32, %c0_i32_0, %c0_i32_1 : i32, i32, i32
  }
  func.func @transform_8(%arg0: i32) -> (i32, i32, i32) {
    %c0_i32 = arith.constant 0 : i32
    %c0_i32_0 = arith.constant 0 : i32
    %c0_i32_1 = arith.constant 0 : i32
    %c0_i32_2 = arith.constant 0 : i32
    return %c0_i32, %c0_i32_0, %c0_i32_1 : i32, i32, i32
  }
  func.func @transform_9(%arg0: i32) -> (i32, i32, i32) {
    %c0_i32 = arith.constant 0 : i32
    %c0_i32_0 = arith.constant 0 : i32
    %c0_i32_1 = arith.constant 0 : i32
    %c0_i32_2 = arith.constant 0 : i32
    return %c0_i32, %c0_i32_0, %c0_i32_1 : i32, i32, i32
  }
  func.func @transform_10(%arg0: i32) -> (i32, i32, i32) {
    %c0_i32 = arith.constant 0 : i32
    %c0_i32_0 = arith.constant 0 : i32
    %c0_i32_1 = arith.constant 0 : i32
    %c0_i32_2 = arith.constant 0 : i32
    return %c0_i32, %c0_i32_0, %c0_i32_1 : i32, i32, i32
  }
  func.func @transform_11(%arg0: i32) -> (i32, i32, i32) {
    %c0_i32 = arith.constant 0 : i32
    %c0_i32_0 = arith.constant 0 : i32
    %c0_i32_1 = arith.constant 0 : i32
    %c0_i32_2 = arith.constant 0 : i32
    return %c0_i32, %c0_i32_0, %c0_i32_1 : i32, i32, i32
  }
  func.func @transform_12(%arg0: i32) -> (i32, i32, i32) {
    %c0_i32 = arith.constant 0 : i32
    %c0_i32_0 = arith.constant 0 : i32
    %c0_i32_1 = arith.constant 0 : i32
    %c0_i32_2 = arith.constant 0 : i32
    return %c0_i32, %c0_i32_0, %c0_i32_1 : i32, i32, i32
  }
  func.func @transform_13(%arg0: i32) -> (i32, i32, i32) {
    %c0_i32 = arith.constant 0 : i32
    %c0_i32_0 = arith.constant 0 : i32
    %c0_i32_1 = arith.constant 0 : i32
    %c0_i32_2 = arith.constant 0 : i32
    return %c0_i32, %c0_i32_0, %c0_i32_1 : i32, i32, i32
  }
  func.func @transform_14(%arg0: i32) -> (i32, i32, i32) {
    %c0_i32 = arith.constant 0 : i32
    %c0_i32_0 = arith.constant 0 : i32
    %c0_i32_1 = arith.constant 0 : i32
    %c0_i32_2 = arith.constant 0 : i32
    return %c0_i32, %c0_i32_0, %c0_i32_1 : i32, i32, i32
  }
  func.func @transform_15(%arg0: i32) -> (i32, i32, i32) {
    %c0_i32 = arith.constant 0 : i32
    %c0_i32_0 = arith.constant 0 : i32
    %c0_i32_1 = arith.constant 0 : i32
    %c0_i32_2 = arith.constant 0 : i32
    return %c0_i32, %c0_i32_0, %c0_i32_1 : i32, i32, i32
  }
  func.func @transform_16(%arg0: i32) -> (i32, i32) {
    %c0_i32 = arith.constant 0 : i32
    %c0_i32_0 = arith.constant 0 : i32
    %c0_i32_1 = arith.constant 0 : i32
    return %c0_i32, %c0_i32_0 : i32, i32
  }
  func.func @transform_17(%arg0: i32) -> (i32, i32) {
    %c0_i32 = arith.constant 0 : i32
    %c0_i32_0 = arith.constant 0 : i32
    %c0_i32_1 = arith.constant 0 : i32
    return %c0_i32, %c0_i32_0 : i32, i32
  }
  func.func @transform_18(%arg0: i32) -> (i32, i32, i32) {
    %c0_i32 = arith.constant 0 : i32
    %c0_i32_0 = arith.constant 0 : i32
    %c0_i32_1 = arith.constant 0 : i32
    return %arg0, %c0_i32, %c0_i32_0 : i32, i32, i32
  }
}

</mosaic_0001>

<llo_original>
// kernel: bert_classifier_forward.1
$region0: #{bert_classifier_forward.1}
  #allocation0 [shape = 'u32[]', space=smem, size = 0x4, offset = 0x4, fixed_abs, tag = 'smem constant byte address 0x4 - core index']
  #allocation1 [shape = 'u32[144,128]{1,0:T(1,128)}', space=vmem, size = 0x12000, scoped, tag = 'internal scratch']
  %s0 = inlined_call_operand.vmem [shape: f32[16,32], index: 0, kind: input, shape index: {}]
  %s1 = inlined_call_operand.vmem [shape: f32[2,1,8], index: 1, kind: input, shape index: {}]
  %s2 = inlined_call_operand.vmem [shape: f32[1,32], index: 2, kind: input, shape index: {}]
  %s3 = inlined_call_operand.vmem [shape: f32[1,32], index: 3, kind: input, shape index: {}]
  %s4 = inlined_call_operand.vmem [shape: f32[2,32,96], index: 4, kind: input, shape index: {}]
  %s5 = inlined_call_operand.vmem [shape: f32[2,1,96], index: 5, kind: input, shape index: {}]
  %s6 = inlined_call_operand.vmem [shape: f32[2,32,32], index: 6, kind: input, shape index: {}]
  %s7 = inlined_call_operand.vmem [shape: f32[2,1,32], index: 7, kind: input, shape index: {}]
  %s8 = inlined_call_operand.vmem [shape: f32[2,1,32], index: 8, kind: input, shape index: {}]
  %s9 = inlined_call_operand.vmem [shape: f32[2,1,32], index: 9, kind: input, shape index: {}]
  %s10 = inlined_call_operand.vmem [shape: f32[2,32,64], index: 10, kind: input, shape index: {}]
  %s11 = inlined_call_operand.vmem [shape: f32[2,1,64], index: 11, kind: input, shape index: {}]
  %s12 = inlined_call_operand.vmem [shape: f32[2,64,32], index: 12, kind: input, shape index: {}]
  %s13 = inlined_call_operand.vmem [shape: f32[2,1,32], index: 13, kind: input, shape index: {}]
  %s14 = inlined_call_operand.vmem [shape: f32[2,1,32], index: 14, kind: input, shape index: {}]
  %s15 = inlined_call_operand.vmem [shape: f32[2,1,32], index: 15, kind: input, shape index: {}]
  %s16 = inlined_call_operand.vmem [shape: f32[32,128], index: 16, kind: input, shape index: {}]
  %s17 = inlined_call_operand.vmem [shape: f32[1,128], index: 17, kind: input, shape index: {}]
  %s18 = inlined_call_operand.hbm [shape: f32[2,1,128], index: 18, kind: output, shape index: {}]
  %s19 = sld [smem:[#allocation0]]
  $region105: #{bert_classifier_forward.1} parent=0
    _
  %s21 = ssub.s32 1, %s19
  %s22 = scalar_select 0, %s21, %s19
  $region1: #{bert_classifier_forward.1} parent=0
    #allocation2 [shape = 'u8[1024]{0}', space=vmem, size = 0x400, scoped, tag = 'output window, operand 0']
    #allocation3 [shape = 's32[2]{0}', space=sflag, size = 0x8, scoped, tag = 'scoped memory for bert_classifier_forward.1']
    %23 = vsyncpa [#allocation3], 0
    %s24 = scalar_lea.sflag [#allocation3], 1
    %25 = vsyncpa %s24, 0
    loop: start=0, step=1, limit=4
    $region2: #{bert_classifier_forward.1} parent=1 // loop_pre_header
      _
    $region3: #{bert_classifier_forward.1} parent=1 // loop_header
      %s27 = sphi 0, %s31
      %p28 = scmp.ge.s32.totalorder %s27, 4
      %s37 = sphi 0, %s39
      %s40 = sphi 0, %s37
      %s41 = sphi 0, %s40
      %s57 = sphi 0, %s41
      %s63 = sphi 0, %s65
      %s66 = sphi 0, %s63
      %s67 = sphi 0, %s66
      %s83 = sphi 0, %s67
      %s87 = sphi 0, %s87
      %s89 = sphi 0, %s87
      %s90 = sphi 0, %s89
      %s104 = sphi 0, %s90
      %s108 = sphi 0, %s108
      %s110 = sphi 0, %s108
      %s111 = sphi 0, %s110
      %s125 = sphi 0, %s111
      %s129 = sphi 0, %s129
      %s131 = sphi 0, %s129
      %s132 = sphi 0, %s131
      %s146 = sphi 0, %s132
      %s150 = sphi 0, %s150
      %s152 = sphi 0, %s150
      %s153 = sphi 0, %s152
      %s167 = sphi 0, %s153
      %s171 = sphi 0, %s171
      %s173 = sphi 0, %s171
      %s174 = sphi 0, %s173
      %s188 = sphi 0, %s174
      %s192 = sphi 0, %s192
      %s194 = sphi 0, %s192
      %s195 = sphi 0, %s194
      %s209 = sphi 0, %s195
      %s213 = sphi 0, %s213
      %s215 = sphi 0, %s213
      %s216 = sphi 0, %s215
      %s230 = sphi 0, %s216
      %s234 = sphi 0, %s234
      %s236 = sphi 0, %s234
      %s237 = sphi 0, %s236
      %s251 = sphi 0, %s237
      %s255 = sphi 0, %s255
      %s257 = sphi 0, %s255
      %s258 = sphi 0, %s257
      %s272 = sphi 0, %s258
      %s276 = sphi 0, %s276
      %s278 = sphi 0, %s276
      %s279 = sphi 0, %s278
      %s293 = sphi 0, %s279
      %s297 = sphi 0, %s297
      %s299 = sphi 0, %s297
      %s300 = sphi 0, %s299
      %s314 = sphi 0, %s300
      %s318 = sphi 0, %s318
      %s320 = sphi 0, %s318
      %s321 = sphi 0, %s320
      %s335 = sphi 0, %s321
      %s339 = sphi 0, %s339
      %s341 = sphi 0, %s339
      %s342 = sphi 0, %s341
      %s356 = sphi 0, %s342
      %s360 = sphi 0, %s360
      %s362 = sphi 0, %s360
      %s363 = sphi 0, %s362
      %s377 = sphi 0, %s363
      %s381 = sphi 0, %s381
      %s383 = sphi 0, %s381
      %s384 = sphi 0, %s383
      %s398 = sphi 0, %s384
      %s402 = sphi 0, %s402
      %s404 = sphi 0, %s402
      %s405 = sphi 0, %s404
      %s419 = sphi 0, %s405
      %s425 = sphi 0, %s427
      %s428 = sphi 0, %s425
      %s429 = sphi 0, %s428
      %s445 = sphi 0, %s429
    $region4: #{bert_classifier_forward.1} parent=1 // loop_header_branch
      %30 = sbr.rel (%p28) target = $region8
    $region5: #{bert_classifier_forward.1} parent=1 // loop_body
      %s32 = ssub.s32 %s27, 1
      %s33 = ssub.s32 %s27, 2
      %s34 = sadd.s32 %s27, 1
      %s35 = ssub.s32 %s27, %s34
      %p36 = scmp.eq.s32.totalorder %s35, 0
      %s38 = sadd.s32 %s37, 1
      %s39 = scalar_select %p36, %s37, %s38
      %p42 = pneg %p36
      %p43 = scmp.eq.s32.totalorder %s27, 1
      %p44 = por %p42, %p43
      %p45 = scmp.ne.s32.totalorder %s37, %s40
      %p46 = scmp.eq.s32.totalorder %s27, 0
      %p47 = por %p45, %p46
      %p48 = scmp.ne.s32.totalorder %s37, %s40
      %p49 = scmp.eq.s32.totalorder %s32, 1
      %p50 = por %p48, %p49
      %p51 = scmp.ne.s32.totalorder %s40, %s41
      %p52 = scmp.eq.s32.totalorder %s32, 0
      %p53 = por %p51, %p52
      %p54 = scmp.ne.s32.totalorder %s40, %s41
      %p55 = scmp.eq.s32.totalorder %s33, 1
      %p56 = por %p54, %p55
      %p58 = scmp.ne.s32.totalorder %s41, %s57
      %p59 = scmp.eq.s32.totalorder %s33, 0
      %p60 = por %p58, %p59
      %s61 = ssub.s32 %s27, %s34
      %p62 = scmp.eq.s32.totalorder %s61, 0
      %s64 = sadd.s32 %s63, 1
      %s65 = scalar_select %p62, %s63, %s64
      %p68 = pneg %p62
      %p69 = scmp.eq.s32.totalorder %s27, 1
      %p70 = por %p68, %p69
      %p71 = scmp.ne.s32.totalorder %s63, %s66
      %p72 = scmp.eq.s32.totalorder %s27, 0
      %p73 = por %p71, %p72
      %p74 = scmp.ne.s32.totalorder %s63, %s66
      %p75 = scmp.eq.s32.totalorder %s32, 1
      %p76 = por %p74, %p75
      %p77 = scmp.ne.s32.totalorder %s66, %s67
      %p78 = scmp.eq.s32.totalorder %s32, 0
      %p79 = por %p77, %p78
      %p80 = scmp.ne.s32.totalorder %s66, %s67
      %p81 = scmp.eq.s32.totalorder %s33, 1
      %p82 = por %p80, %p81
      %p84 = scmp.ne.s32.totalorder %s67, %s83
      %p85 = scmp.eq.s32.totalorder %s33, 0
      %p86 = por %p84, %p85
      %s88 = sadd.s32 %s87, 1
      %p91 = scmp.eq.s32.totalorder %s27, 1
      %p92 = scmp.ne.s32.totalorder %s87, %s89
      %p93 = scmp.eq.s32.totalorder %s27, 0
      %p94 = por %p92, %p93
      %p95 = scmp.ne.s32.totalorder %s87, %s89
      %p96 = scmp.eq.s32.totalorder %s32, 1
      %p97 = por %p95, %p96
      %p98 = scmp.ne.s32.totalorder %s89, %s90
      %p99 = scmp.eq.s32.totalorder %s32, 0
      %p100 = por %p98, %p99
      %p101 = scmp.ne.s32.totalorder %s89, %s90
      %p102 = scmp.eq.s32.totalorder %s33, 1
      %p103 = por %p101, %p102
      %p105 = scmp.ne.s32.totalorder %s90, %s104
      %p106 = scmp.eq.s32.totalorder %s33, 0
      %p107 = por %p105, %p106
      %s109 = sadd.s32 %s108, 1
      %p112 = scmp.eq.s32.totalorder %s27, 1
      %p113 = scmp.ne.s32.totalorder %s108, %s110
      %p114 = scmp.eq.s32.totalorder %s27, 0
      %p115 = por %p113, %p114
      %p116 = scmp.ne.s32.totalorder %s108, %s110
      %p117 = scmp.eq.s32.totalorder %s32, 1
      %p118 = por %p116, %p117
      %p119 = scmp.ne.s32.totalorder %s110, %s111
      %p120 = scmp.eq.s32.totalorder %s32, 0
      %p121 = por %p119, %p120
      %p122 = scmp.ne.s32.totalorder %s110, %s111
      %p123 = scmp.eq.s32.totalorder %s33, 1
      %p124 = por %p122, %p123
      %p126 = scmp.ne.s32.totalorder %s111, %s125
      %p127 = scmp.eq.s32.totalorder %s33, 0
      %p128 = por %p126, %p127
      %s130 = sadd.s32 %s129, 1
      %p133 = scmp.eq.s32.totalorder %s27, 1
      %p134 = scmp.ne.s32.totalorder %s129, %s131
      %p135 = scmp.eq.s32.totalorder %s27, 0
      %p136 = por %p134, %p135
      %p137 = scmp.ne.s32.totalorder %s129, %s131
      %p138 = scmp.eq.s32.totalorder %s32, 1
      %p139 = por %p137, %p138
      %p140 = scmp.ne.s32.totalorder %s131, %s132
      %p141 = scmp.eq.s32.totalorder %s32, 0
      %p142 = por %p140, %p141
      %p143 = scmp.ne.s32.totalorder %s131, %s132
      %p144 = scmp.eq.s32.totalorder %s33, 1
      %p145 = por %p143, %p144
      %p147 = scmp.ne.s32.totalorder %s132, %s146
      %p148 = scmp.eq.s32.totalorder %s33, 0
      %p149 = por %p147, %p148
      %s151 = sadd.s32 %s150, 1
      %p154 = scmp.eq.s32.totalorder %s27, 1
      %p155 = scmp.ne.s32.totalorder %s150, %s152
      %p156 = scmp.eq.s32.totalorder %s27, 0
      %p157 = por %p155, %p156
      %p158 = scmp.ne.s32.totalorder %s150, %s152
      %p159 = scmp.eq.s32.totalorder %s32, 1
      %p160 = por %p158, %p159
      %p161 = scmp.ne.s32.totalorder %s152, %s153
      %p162 = scmp.eq.s32.totalorder %s32, 0
      %p163 = por %p161, %p162
      %p164 = scmp.ne.s32.totalorder %s152, %s153
      %p165 = scmp.eq.s32.totalorder %s33, 1
      %p166 = por %p164, %p165
      %p168 = scmp.ne.s32.totalorder %s153, %s167
      %p169 = scmp.eq.s32.totalorder %s33, 0
      %p170 = por %p168, %p169
      %s172 = sadd.s32 %s171, 1
      %p175 = scmp.eq.s32.totalorder %s27, 1
      %p176 = scmp.ne.s32.totalorder %s171, %s173
      %p177 = scmp.eq.s32.totalorder %s27, 0
      %p178 = por %p176, %p177
      %p179 = scmp.ne.s32.totalorder %s171, %s173
      %p180 = scmp.eq.s32.totalorder %s32, 1
      %p181 = por %p179, %p180
      %p182 = scmp.ne.s32.totalorder %s173, %s174
      %p183 = scmp.eq.s32.totalorder %s32, 0
      %p184 = por %p182, %p183
      %p185 = scmp.ne.s32.totalorder %s173, %s174
      %p186 = scmp.eq.s32.totalorder %s33, 1
      %p187 = por %p185, %p186
      %p189 = scmp.ne.s32.totalorder %s174, %s188
      %p190 = scmp.eq.s32.totalorder %s33, 0
      %p191 = por %p189, %p190
      %s193 = sadd.s32 %s192, 1
      %p196 = scmp.eq.s32.totalorder %s27, 1
      %p197 = scmp.ne.s32.totalorder %s192, %s194
      %p198 = scmp.eq.s32.totalorder %s27, 0
      %p199 = por %p197, %p198
      %p200 = scmp.ne.s32.totalorder %s192, %s194
      %p201 = scmp.eq.s32.totalorder %s32, 1
      %p202 = por %p200, %p201
      %p203 = scmp.ne.s32.totalorder %s194, %s195
      %p204 = scmp.eq.s32.totalorder %s32, 0
      %p205 = por %p203, %p204
      %p206 = scmp.ne.s32.totalorder %s194, %s195
      %p207 = scmp.eq.s32.totalorder %s33, 1
      %p208 = por %p206, %p207
      %p210 = scmp.ne.s32.totalorder %s195, %s209
      %p211 = scmp.eq.s32.totalorder %s33, 0
      %p212 = por %p210, %p211
      %s214 = sadd.s32 %s213, 1
      %p217 = scmp.eq.s32.totalorder %s27, 1
      %p218 = scmp.ne.s32.totalorder %s213, %s215
      %p219 = scmp.eq.s32.totalorder %s27, 0
      %p220 = por %p218, %p219
      %p221 = scmp.ne.s32.totalorder %s213, %s215
      %p222 = scmp.eq.s32.totalorder %s32, 1
      %p223 = por %p221, %p222
      %p224 = scmp.ne.s32.totalorder %s215, %s216
      %p225 = scmp.eq.s32.totalorder %s32, 0
      %p226 = por %p224, %p225
      %p227 = scmp.ne.s32.totalorder %s215, %s216
      %p228 = scmp.eq.s32.totalorder %s33, 1
      %p229 = por %p227, %p228
      %p231 = scmp.ne.s32.totalorder %s216, %s230
      %p232 = scmp.eq.s32.totalorder %s33, 0
      %p233 = por %p231, %p232
      %s235 = sadd.s32 %s234, 1
      %p238 = scmp.eq.s32.totalorder %s27, 1
      %p239 = scmp.ne.s32.totalorder %s234, %s236
      %p240 = scmp.eq.s32.totalorder %s27, 0
      %p241 = por %p239, %p240
      %p242 = scmp.ne.s32.totalorder %s234, %s236
      %p243 = scmp.eq.s32.totalorder %s32, 1
      %p244 = por %p242, %p243
      %p245 = scmp.ne.s32.totalorder %s236, %s237
      %p246 = scmp.eq.s32.totalorder %s32, 0
      %p247 = por %p245, %p246
      %p248 = scmp.ne.s32.totalorder %s236, %s237
      %p249 = scmp.eq.s32.totalorder %s33, 1
      %p250 = por %p248, %p249
      %p252 = scmp.ne.s32.totalorder %s237, %s251
      %p253 = scmp.eq.s32.totalorder %s33, 0
      %p254 = por %p252, %p253
      %s256 = sadd.s32 %s255, 1
      %p259 = scmp.eq.s32.totalorder %s27, 1
      %p260 = scmp.ne.s32.totalorder %s255, %s257
      %p261 = scmp.eq.s32.totalorder %s27, 0
      %p262 = por %p260, %p261
      %p263 = scmp.ne.s32.totalorder %s255, %s257
      %p264 = scmp.eq.s32.totalorder %s32, 1
      %p265 = por %p263, %p264
      %p266 = scmp.ne.s32.totalorder %s257, %s258
      %p267 = scmp.eq.s32.totalorder %s32, 0
      %p268 = por %p266, %p267
      %p269 = scmp.ne.s32.totalorder %s257, %s258
      %p270 = scmp.eq.s32.totalorder %s33, 1
      %p271 = por %p269, %p270
      %p273 = scmp.ne.s32.totalorder %s258, %s272
      %p274 = scmp.eq.s32.totalorder %s33, 0
      %p275 = por %p273, %p274
      %s277 = sadd.s32 %s276, 1
      %p280 = scmp.eq.s32.totalorder %s27, 1
      %p281 = scmp.ne.s32.totalorder %s276, %s278
      %p282 = scmp.eq.s32.totalorder %s27, 0
      %p283 = por %p281, %p282
      %p284 = scmp.ne.s32.totalorder %s276, %s278
      %p285 = scmp.eq.s32.totalorder %s32, 1
      %p286 = por %p284, %p285
      %p287 = scmp.ne.s32.totalorder %s278, %s279
      %p288 = scmp.eq.s32.totalorder %s32, 0
      %p289 = por %p287, %p288
      %p290 = scmp.ne.s32.totalorder %s278, %s279
      %p291 = scmp.eq.s32.totalorder %s33, 1
      %p292 = por %p290, %p291
      %p294 = scmp.ne.s32.totalorder %s279, %s293
      %p295 = scmp.eq.s32.totalorder %s33, 0
      %p296 = por %p294, %p295
      %s298 = sadd.s32 %s297, 1
      %p301 = scmp.eq.s32.totalorder %s27, 1
      %p302 = scmp.ne.s32.totalorder %s297, %s299
      %p303 = scmp.eq.s32.totalorder %s27, 0
      %p304 = por %p302, %p303
      %p305 = scmp.ne.s32.totalorder %s297, %s299
      %p306 = scmp.eq.s32.totalorder %s32, 1
      %p307 = por %p305, %p306
      %p308 = scmp.ne.s32.totalorder %s299, %s300
      %p309 = scmp.eq.s32.totalorder %s32, 0
      %p310 = por %p308, %p309
      %p311 = scmp.ne.s32.totalorder %s299, %s300
      %p312 = scmp.eq.s32.totalorder %s33, 1
      %p313 = por %p311, %p312
      %p315 = scmp.ne.s32.totalorder %s300, %s314
      %p316 = scmp.eq.s32.totalorder %s33, 0
      %p317 = por %p315, %p316
      %s319 = sadd.s32 %s318, 1
      %p322 = scmp.eq.s32.totalorder %s27, 1
      %p323 = scmp.ne.s32.totalorder %s318, %s320
      %p324 = scmp.eq.s32.totalorder %s27, 0
      %p325 = por %p323, %p324
      %p326 = scmp.ne.s32.totalorder %s318, %s320
      %p327 = scmp.eq.s32.totalorder %s32, 1
      %p328 = por %p326, %p327
      %p329 = scmp.ne.s32.totalorder %s320, %s321
      %p330 = scmp.eq.s32.totalorder %s32, 0
      %p331 = por %p329, %p330
      %p332 = scmp.ne.s32.totalorder %s320, %s321
      %p333 = scmp.eq.s32.totalorder %s33, 1
      %p334 = por %p332, %p333
      %p336 = scmp.ne.s32.totalorder %s321, %s335
      %p337 = scmp.eq.s32.totalorder %s33, 0
      %p338 = por %p336, %p337
      %s340 = sadd.s32 %s339, 1
      %p343 = scmp.eq.s32.totalorder %s27, 1
      %p344 = scmp.ne.s32.totalorder %s339, %s341
      %p345 = scmp.eq.s32.totalorder %s27, 0
      %p346 = por %p344, %p345
      %p347 = scmp.ne.s32.totalorder %s339, %s341
      %p348 = scmp.eq.s32.totalorder %s32, 1
      %p349 = por %p347, %p348
      %p350 = scmp.ne.s32.totalorder %s341, %s342
      %p351 = scmp.eq.s32.totalorder %s32, 0
      %p352 = por %p350, %p351
      %p353 = scmp.ne.s32.totalorder %s341, %s342
      %p354 = scmp.eq.s32.totalorder %s33, 1
      %p355 = por %p353, %p354
      %p357 = scmp.ne.s32.totalorder %s342, %s356
      %p358 = scmp.eq.s32.totalorder %s33, 0
      %p359 = por %p357, %p358
      %s361 = sadd.s32 %s360, 1
      %p364 = scmp.eq.s32.totalorder %s27, 1
      %p365 = scmp.ne.s32.totalorder %s360, %s362
      %p366 = scmp.eq.s32.totalorder %s27, 0
      %p367 = por %p365, %p366
      %p368 = scmp.ne.s32.totalorder %s360, %s362
      %p369 = scmp.eq.s32.totalorder %s32, 1
      %p370 = por %p368, %p369
      %p371 = scmp.ne.s32.totalorder %s362, %s363
      %p372 = scmp.eq.s32.totalorder %s32, 0
      %p373 = por %p371, %p372
      %p374 = scmp.ne.s32.totalorder %s362, %s363
      %p375 = scmp.eq.s32.totalorder %s33, 1
      %p376 = por %p374, %p375
      %p378 = scmp.ne.s32.totalorder %s363, %s377
      %p379 = scmp.eq.s32.totalorder %s33, 0
      %p380 = por %p378, %p379
      %s382 = sadd.s32 %s381, 1
      %p385 = scmp.eq.s32.totalorder %s27, 1
      %p386 = scmp.ne.s32.totalorder %s381, %s383
      %p387 = scmp.eq.s32.totalorder %s27, 0
      %p388 = por %p386, %p387
      %p389 = scmp.ne.s32.totalorder %s381, %s383
      %p390 = scmp.eq.s32.totalorder %s32, 1
      %p391 = por %p389, %p390
      %p392 = scmp.ne.s32.totalorder %s383, %s384
      %p393 = scmp.eq.s32.totalorder %s32, 0
      %p394 = por %p392, %p393
      %p395 = scmp.ne.s32.totalorder %s383, %s384
      %p396 = scmp.eq.s32.totalorder %s33, 1
      %p397 = por %p395, %p396
      %p399 = scmp.ne.s32.totalorder %s384, %s398
      %p400 = scmp.eq.s32.totalorder %s33, 0
      %p401 = por %p399, %p400
      %s403 = sadd.s32 %s402, 1
      %p406 = scmp.eq.s32.totalorder %s27, 1
      %p407 = scmp.ne.s32.totalorder %s402, %s404
      %p408 = scmp.eq.s32.totalorder %s27, 0
      %p409 = por %p407, %p408
      %p410 = scmp.ne.s32.totalorder %s402, %s404
      %p411 = scmp.eq.s32.totalorder %s32, 1
      %p412 = por %p410, %p411
      %p413 = scmp.ne.s32.totalorder %s404, %s405
      %p414 = scmp.eq.s32.totalorder %s32, 0
      %p415 = por %p413, %p414
      %p416 = scmp.ne.s32.totalorder %s404, %s405
      %p417 = scmp.eq.s32.totalorder %s33, 1
      %p418 = por %p416, %p417
      %p420 = scmp.ne.s32.totalorder %s405, %s419
      %p421 = scmp.eq.s32.totalorder %s33, 0
      %p422 = por %p420, %p421
      %s423 = ssub.s32 %s27, %s34
      %p424 = scmp.eq.s32.totalorder %s423, 0
      %s426 = sadd.s32 %s425, 1
      %s427 = scalar_select %p424, %s425, %s426
      %p430 = pneg %p424
      %p431 = scmp.eq.s32.totalorder %s27, 1
      %p432 = por %p430, %p431
      %p433 = scmp.ne.s32.totalorder %s425, %s428
      %p434 = scmp.eq.s32.totalorder %s27, 0
      %p435 = por %p433, %p434
      %p436 = scmp.ne.s32.totalorder %s425, %s428
      %p437 = scmp.eq.s32.totalorder %s32, 1
      %p438 = por %p436, %p437
      %p439 = scmp.ne.s32.totalorder %s428, %s429
      %p440 = scmp.eq.s32.totalorder %s32, 0
      %p441 = por %p439, %p440
      %p442 = scmp.ne.s32.totalorder %s428, %s429
      %p443 = scmp.eq.s32.totalorder %s33, 1
      %p444 = por %p442, %p443
      %p446 = scmp.ne.s32.totalorder %s429, %s445
      %p447 = scmp.eq.s32.totalorder %s33, 0
      %p448 = por %p446, %p447
      %p449 = scmp.le.s32.totalorder 1, %s27
      %p450 = scmp.lt.s32.totalorder %s27, 3
      %p451 = pnand %p449, %p450
      %p452 = pneg %p451
      // Predicated region
      $region9: #{bert_classifier_forward.1} parent=5 // pred_check
        _
      $region10: #{bert_classifier_forward.1} parent=5 // pred_check_branch
        %454 = sbr.rel (%p451) target = $region12
      $region11: #{bert_classifier_forward.1} parent=5 // pred_region
        %s455 = ssub.s32 %s27, 1
        // Predicated region
        $region13: #{bert_classifier_forward.1} parent=11 // pred_check
          %p456 = pneg %p100
        $region14: #{bert_classifier_forward.1} parent=11 // pred_check_branch
          %458 = sbr.rel (%p456) target = $region16
        $region15: #{bert_classifier_forward.1} parent=11 // pred_region
          _
        $region16: #{bert_classifier_forward.1} parent=11 // pred_fallthru
          _
        // Predicated region
        $region17: #{bert_classifier_forward.1} parent=11 // pred_check
          %p459 = pneg %p121
        $region18: #{bert_classifier_forward.1} parent=11 // pred_check_branch
          %461 = sbr.rel (%p459) target = $region20
        $region19: #{bert_classifier_forward.1} parent=11 // pred_region
          _
        $region20: #{bert_classifier_forward.1} parent=11 // pred_fallthru
          _
        // Predicated region
        $region21: #{bert_classifier_forward.1} parent=11 // pred_check
          %p462 = pneg %p142
        $region22: #{bert_classifier_forward.1} parent=11 // pred_check_branch
          %464 = sbr.rel (%p462) target = $region24
        $region23: #{bert_classifier_forward.1} parent=11 // pred_region
          _
        $region24: #{bert_classifier_forward.1} parent=11 // pred_fallthru
          _
        // Predicated region
        $region25: #{bert_classifier_forward.1} parent=11 // pred_check
          %p465 = pneg %p163
        $region26: #{bert_classifier_forward.1} parent=11 // pred_check_branch
          %467 = sbr.rel (%p465) target = $region28
        $region27: #{bert_classifier_forward.1} parent=11 // pred_region
          _
        $region28: #{bert_classifier_forward.1} parent=11 // pred_fallthru
          _
        // Predicated region
        $region29: #{bert_classifier_forward.1} parent=11 // pred_check
          %p468 = pneg %p184
        $region30: #{bert_classifier_forward.1} parent=11 // pred_check_branch
          %470 = sbr.rel (%p468) target = $region32
        $region31: #{bert_classifier_forward.1} parent=11 // pred_region
          _
        $region32: #{bert_classifier_forward.1} parent=11 // pred_fallthru
          _
        // Predicated region
        $region33: #{bert_classifier_forward.1} parent=11 // pred_check
          %p471 = pneg %p205
        $region34: #{bert_classifier_forward.1} parent=11 // pred_check_branch
          %473 = sbr.rel (%p471) target = $region36
        $region35: #{bert_classifier_forward.1} parent=11 // pred_region
          _
        $region36: #{bert_classifier_forward.1} parent=11 // pred_fallthru
          _
        // Predicated region
        $region37: #{bert_classifier_forward.1} parent=11 // pred_check
          %p474 = pneg %p226
        $region38: #{bert_classifier_forward.1} parent=11 // pred_check_branch
          %476 = sbr.rel (%p474) target = $region40
        $region39: #{bert_classifier_forward.1} parent=11 // pred_region
          _
        $region40: #{bert_classifier_forward.1} parent=11 // pred_fallthru
          _
        // Predicated region
        $region41: #{bert_classifier_forward.1} parent=11 // pred_check
          %p477 = pneg %p247
        $region42: #{bert_classifier_forward.1} parent=11 // pred_check_branch
          %479 = sbr.rel (%p477) target = $region44
        $region43: #{bert_classifier_forward.1} parent=11 // pred_region
          _
        $region44: #{bert_classifier_forward.1} parent=11 // pred_fallthru
          _
        // Predicated region
        $region45: #{bert_classifier_forward.1} parent=11 // pred_check
          %p480 = pneg %p268
        $region46: #{bert_classifier_forward.1} parent=11 // pred_check_branch
          %482 = sbr.rel (%p480) target = $region48
        $region47: #{bert_classifier_forward.1} parent=11 // pred_region
          _
        $region48: #{bert_classifier_forward.1} parent=11 // pred_fallthru
          _
        // Predicated region
        $region49: #{bert_classifier_forward.1} parent=11 // pred_check
          %p483 = pneg %p289
        $region50: #{bert_classifier_forward.1} parent=11 // pred_check_branch
          %485 = sbr.rel (%p483) target = $region52
        $region51: #{bert_classifier_forward.1} parent=11 // pred_region
          _
        $region52: #{bert_classifier_forward.1} parent=11 // pred_fallthru
          _
        // Predicated region
        $region53: #{bert_classifier_forward.1} parent=11 // pred_check
          %p486 = pneg %p310
        $region54: #{bert_classifier_forward.1} parent=11 // pred_check_branch
          %488 = sbr.rel (%p486) target = $region56
        $region55: #{bert_classifier_forward.1} parent=11 // pred_region
          _
        $region56: #{bert_classifier_forward.1} parent=11 // pred_fallthru
          _
        // Predicated region
        $region57: #{bert_classifier_forward.1} parent=11 // pred_check
          %p489 = pneg %p331
        $region58: #{bert_classifier_forward.1} parent=11 // pred_check_branch
          %491 = sbr.rel (%p489) target = $region60
        $region59: #{bert_classifier_forward.1} parent=11 // pred_region
          _
        $region60: #{bert_classifier_forward.1} parent=11 // pred_fallthru
          _
        // Predicated region
        $region61: #{bert_classifier_forward.1} parent=11 // pred_check
          %p492 = pneg %p352
        $region62: #{bert_classifier_forward.1} parent=11 // pred_check_branch
          %494 = sbr.rel (%p492) target = $region64
        $region63: #{bert_classifier_forward.1} parent=11 // pred_region
          _
        $region64: #{bert_classifier_forward.1} parent=11 // pred_fallthru
          _
        // Predicated region
        $region65: #{bert_classifier_forward.1} parent=11 // pred_check
          %p495 = pneg %p373
        $region66: #{bert_classifier_forward.1} parent=11 // pred_check_branch
          %497 = sbr.rel (%p495) target = $region68
        $region67: #{bert_classifier_forward.1} parent=11 // pred_region
          _
        $region68: #{bert_classifier_forward.1} parent=11 // pred_fallthru
          _
        // Predicated region
        $region69: #{bert_classifier_forward.1} parent=11 // pred_check
          %p498 = pneg %p394
        $region70: #{bert_classifier_forward.1} parent=11 // pred_check_branch
          %500 = sbr.rel (%p498) target = $region72
        $region71: #{bert_classifier_forward.1} parent=11 // pred_region
          _
        $region72: #{bert_classifier_forward.1} parent=11 // pred_fallthru
          _
        // Predicated region
        $region73: #{bert_classifier_forward.1} parent=11 // pred_check
          %p501 = pneg %p415
        $region74: #{bert_classifier_forward.1} parent=11 // pred_check_branch
          %503 = sbr.rel (%p501) target = $region76
        $region75: #{bert_classifier_forward.1} parent=11 // pred_region
          _
        $region76: #{bert_classifier_forward.1} parent=11 // pred_fallthru
          _
      $region12: #{bert_classifier_forward.1} parent=5 // pred_fallthru
        _
      %p504 = scmp.lt.s32.totalorder %s27, 2
      // Predicated region
      $region77: #{bert_classifier_forward.1} parent=5 // pred_check
        %p505 = pneg %p504
      $region78: #{bert_classifier_forward.1} parent=5 // pred_check_branch
        %507 = sbr.rel (%p505) target = $region80
      $region79: #{bert_classifier_forward.1} parent=5 // pred_region
        // Predicated region
        $region81: #{bert_classifier_forward.1} parent=79 // pred_check
          %p508 = pneg %p47
        $region82: #{bert_classifier_forward.1} parent=79 // pred_check_branch
          %510 = sbr.rel (%p508) target = $region84
        $region83: #{bert_classifier_forward.1} parent=79 // pred_region
          %p511 = scmp.lt.s32.totalorder %s27, 1
          %s512 = scalar_select %p511, %s27, 1
          %s513 = smul.addr %s512, 8
          %s514 = scalar_lea.vmem %s0, %s513
        $region84: #{bert_classifier_forward.1} parent=79 // pred_fallthru
          _
        // Predicated region
        $region85: #{bert_classifier_forward.1} parent=79 // pred_check
          %p515 = pneg %p73
        $region86: #{bert_classifier_forward.1} parent=79 // pred_check_branch
          %517 = sbr.rel (%p515) target = $region88
        $region87: #{bert_classifier_forward.1} parent=79 // pred_region
          %p518 = scmp.lt.s32.totalorder %s27, 1
          %s519 = scalar_select %p518, %s27, 1
          %s520 = scalar_lea.vmem %s1, %s519
        $region88: #{bert_classifier_forward.1} parent=79 // pred_fallthru
          _
      $region80: #{bert_classifier_forward.1} parent=5 // pred_fallthru
        _
      %p521 = scmp.le.s32.totalorder 1, %s27
      %p522 = scmp.lt.s32.totalorder %s27, 3
      %p523 = pnand %p521, %p522
      %p524 = pneg %p523
      // Predicated region
      $region89: #{bert_classifier_forward.1} parent=5 // pred_check
        _
      $region90: #{bert_classifier_forward.1} parent=5 // pred_check_branch
        %526 = sbr.rel (%p523) target = $region92
      $region91: #{bert_classifier_forward.1} parent=5 // pred_region
        %s527 = ssub.s32 %s27, 1
        %p528 = scmp.lt.s32.totalorder %s32, 1
        %s529 = scalar_select %p528, %s32, 1
        %s530 = smul.addr %s529, 8
        %s531 = scalar_lea.vmem %s0, %s530
        %p532 = pneg %p53
        %p533 = pneg %p50
        %p534 = scmp.lt.s32.totalorder %s32, 1
        %s535 = scalar_select %p534, %s32, 1
        %s536 = scalar_lea.vmem %s1, %s535
        %p537 = pneg %p79
        %p538 = pneg %p76
        %p539 = pneg %p100
        %p540 = pneg %p97
        %p541 = pneg %p121
        %p542 = pneg %p118
        %p543 = pneg %p142
        %p544 = pneg %p139
        %p545 = pneg %p163
        %p546 = pneg %p160
        %p547 = pneg %p184
        %p548 = pneg %p181
        %p549 = pneg %p205
        %p550 = pneg %p202
        %p551 = pneg %p226
        %p552 = pneg %p223
        %p553 = pneg %p247
        %p554 = pneg %p244
        %p555 = pneg %p268
        %p556 = pneg %p265
        %p557 = pneg %p289
        %p558 = pneg %p286
        %p559 = pneg %p310
        %p560 = pneg %p307
        %p561 = pneg %p331
        %p562 = pneg %p328
        %p563 = pneg %p352
        %p564 = pneg %p349
        %p565 = pneg %p373
        %p566 = pneg %p370
        %p567 = pneg %p394
        %p568 = pneg %p391
        %p569 = pneg %p415
        %p570 = pneg %p412
        %p571 = pneg %p441
        %p572 = pneg %p438
        %s573 = sand.u32 %s428, 1
        %s574 = scalar_lea.sflag [#allocation3], %s573
        %s575 = sand.u32 %s428, 1
        %s576 = scalar_lea.vmem [#allocation2], %s575
        %p577 = scmp.lt.s32.totalorder %s32, 1
        %s578 = scalar_select %p577, %s32, 1
        %s579 = smul.addr %s578, 8
        %s580 = scalar_lea.vmem %s0, %s579
        %p581 = scmp.lt.s32.totalorder %s32, 1
        %s582 = scalar_select %p581, %s32, 1
        %s583 = scalar_lea.vmem %s1, %s582
        %v584 = vld [vmem:[%s580] sm:$0xff]
        %v585 = vld [vmem:[%s2] sm:$0x1]
        %v586 = vld [vmem:[%s3] sm:$0x1]
        %vm587 = vcmask 261120
        %v588 = vsel %vm587, %v584, 0.0
        %589 = vadd.xlane.f32.xlu0 %v588
        %v590 = vpop.xlane.xlu0 %589
        %v591 = vrcp.pop 32.0
        %v592 = vmul.f32 %v590, %v591
        %v593 = vsub.f32 %v584, %v592
        %v594 = vmul.f32 %v593, %v593
        %v595 = vsel %vm587, %v594, 0.0
        %596 = vadd.xlane.f32.xlu0 %v595
        %v597 = vpop.xlane.xlu0 %596
        %v598 = vmul.f32 %v597, %v591
        %v599 = vadd.f32 %v598, 1e-12
        %v600 = vrsqrt.pop %v599
        %v601 = vmul.f32 %v593, %v600
        %v603 = vlaneseq
        %v604 = vshrl.u32 %v603, 7
        %v605 = vsub.s32 0, %v604
        %v606 = vrot.slane %v585, %v605
        %v608 = vmul.f32 %v601, %v606
        %v610 = vlaneseq
        %v611 = vshrl.u32 %v610, 7
        %v612 = vsub.s32 0, %v611
        %v613 = vrot.slane %v586, %v612
        %v615 = vadd.f32 %v608, %v613
        %v616 = vld [vmem:[%s583] sm:$0x1]
        %v617 = vld [vmem:[%s4] sm:$0xff]
        %v618 = vld [vmem:[%s4 + $0x8] sm:$0xff]
        %v619 = vld [vmem:[%s4 + $0x10] sm:$0xff]
        %v620 = vld [vmem:[%s4 + $0x18] sm:$0xff]
        %v621 = vld [vmem:[%s5] sm:$0x1]
        %v623 = vlaneseq
        %v624 = vshrl.u32 %v623, 7
        %v625 = vsub.s32 0, %v624
        %v626 = vrot.slane %v621, %v625
        %v629 = vsel %vm587, %v615, 0
        %631 = vmatprep.subr.mxu0 0.0
        %632 = vmatpush1.msra.mxu0 0.0
        %633 = vmatprep.subr.mxu0 0.0
        %634 = vmatpush1.msra.mxu0 0.0
        %635 = vmatprep.subr.mxu0 0.0
        %636 = vmatpush1.msra.mxu0 0.0
        %637 = vmatprep.subr.mxu0 0.0
        %638 = vmatpush1.msra.mxu0 0.0
        %639 = vmatprep.subr.mxu0 0.0
        %640 = vmatpush1.msra.mxu0 0.0
        %641 = vmatprep.subr.mxu0 0.0
        %642 = vmatpush1.msra.mxu0 0.0
        %643 = vmatprep.subr.mxu0 0.0
        %644 = vmatpush1.msra.mxu0 0.0
        %645 = vmatprep.subr.mxu0 0.0
        %646 = vmatpush1.msra.mxu0 0.0
        %647 = vmatprep.subr.mxu0 0.0
        %648 = vmatpush1.msra.mxu0 0.0
        %649 = vmatprep.subr.mxu0 0.0
        %650 = vmatpush1.msra.mxu0 0.0
        %651 = vmatprep.subr.mxu0 0.0
        %652 = vmatpush1.msra.mxu0 0.0
        %653 = vmatprep.subr.mxu0 0.0
        %654 = vmatpush1.msra.mxu0 0.0
        %655 = vmatprep.subr.mxu0 0.0
        %656 = vmatpush1.msra.mxu0 %v620
        %657 = vmatprep.subr.mxu0 0.0
        %658 = vmatpush1.msra.mxu0 %v619
        %659 = vmatprep.subr.mxu0 0.0
        %660 = vmatpush1.msra.mxu0 %v618
        %661 = vmatprep.subr.mxu0 0.0
        %662 = vmatpush1.msra.mxu0 %v617
        %663 = vmatprep.subr.mxu0 0.0
        %664 = vmatpush2.msra.mxu0 0.0
        %665 = vmatprep.subr.mxu0 0.0
        %666 = vmatpush2.msra.mxu0 0.0
        %667 = vmatprep.subr.mxu0 0.0
        %668 = vmatpush2.msra.mxu0 0.0
        %669 = vmatprep.subr.mxu0 0.0
        %670 = vmatpush2.msra.mxu0 0.0
        %671 = vmatprep.subr.mxu0 0.0
        %672 = vmatpush2.msra.mxu0 0.0
        %673 = vmatprep.subr.mxu0 0.0
        %674 = vmatpush2.msra.mxu0 0.0
        %675 = vmatprep.subr.mxu0 0.0
        %676 = vmatpush2.msra.mxu0 0.0
        %677 = vmatprep.subr.mxu0 0.0
        %678 = vmatpush2.msra.mxu0 0.0
        %679 = vmatprep.subr.mxu0 0.0
        %680 = vmatpush2.msra.mxu0 0.0
        %681 = vmatprep.subr.mxu0 0.0
        %682 = vmatpush2.msra.mxu0 0.0
        %683 = vmatprep.subr.mxu0 0.0
        %684 = vmatpush2.msra.mxu0 0.0
        %685 = vmatprep.subr.mxu0 0.0
        %686 = vmatpush2.msra.mxu0 0.0
        %687 = vmatprep.subr.mxu0 0.0
        %688 = vmatpush2.msra.mxu0 0.0
        %689 = vmatprep.subr.mxu0 0.0
        %690 = vmatpush2.msra.mxu0 0.0
        %691 = vmatprep.subr.mxu0 0.0
        %692 = vmatpush2.msra.mxu0 0.0
        %693 = vmatprep.subr.mxu0 0.0
        %694 = vmatpush2.msra.mxu0 0.0
        %695 = vmatprep.mubr.f32.mxu0 0.0
        %696 = vmatmul.mubr.f32.gmra.mxu0 %v629
        %v697 = vpop.f32.mrf.mxu0
        %v698 = vadd.f32 %v626, %v697
        %v699 = vpop.f32.mrf.mxu0
        %700 = vdwg.mxu0
        %702 = vrot.lane.b32.xlu0 %v698, 96
        %v703 = vpop.permute.xlu0 %702
        %vm704 = vcmask 64512
        %v705 = vsel %vm704, %v698, 0
        %v707 = vsel %vm704, %v703, 0
        %709 = vmatprep.subr.mxu0 0.0
        %710 = vmatpush1.xpose.msra.mxu0 0.0
        %711 = vmatprep.subr.mxu0 0.0
        %712 = vmatpush1.xpose.msra.mxu0 0.0
        %713 = vmatprep.subr.mxu0 0.0
        %714 = vmatpush1.xpose.msra.mxu0 0.0
        %715 = vmatprep.subr.mxu0 0.0
        %716 = vmatpush1.xpose.msra.mxu0 0.0
        %717 = vmatprep.subr.mxu0 0.0
        %718 = vmatpush1.xpose.msra.mxu0 0.0
        %719 = vmatprep.subr.mxu0 0.0
        %720 = vmatpush1.xpose.msra.mxu0 0.0
        %721 = vmatprep.subr.mxu0 0.0
        %722 = vmatpush1.xpose.msra.mxu0 0.0
        %723 = vmatprep.subr.mxu0 0.0
        %724 = vmatpush1.xpose.msra.mxu0 0.0
        %725 = vmatprep.subr.mxu0 0.0
        %726 = vmatpush1.xpose.msra.mxu0 0.0
        %727 = vmatprep.subr.mxu0 0.0
        %728 = vmatpush1.xpose.msra.mxu0 0.0
        %729 = vmatprep.subr.mxu0 0.0
        %730 = vmatpush1.xpose.msra.mxu0 0.0
        %731 = vmatprep.subr.mxu0 0.0
        %732 = vmatpush1.xpose.msra.mxu0 0.0
        %733 = vmatprep.subr.mxu0 0.0
        %734 = vmatpush1.xpose.msra.mxu0 0.0
        %735 = vmatprep.subr.mxu0 0.0
        %736 = vmatpush1.xpose.msra.mxu0 0.0
        %737 = vmatprep.subr.mxu0 0.0
        %738 = vmatpush1.xpose.msra.mxu0 0.0
        %739 = vmatprep.subr.mxu0 0.0
        %740 = vmatpush1.xpose.msra.mxu0 %v707
        %741 = vmatprep.subr.mxu0 0.0
        %742 = vmatpush2.xpose.msra.mxu0 0.0
        %743 = vmatprep.subr.mxu0 0.0
        %744 = vmatpush2.xpose.msra.mxu0 0.0
        %745 = vmatprep.subr.mxu0 0.0
        %746 = vmatpush2.xpose.msra.mxu0 0.0
        %747 = vmatprep.subr.mxu0 0.0
        %748 = vmatpush2.xpose.msra.mxu0 0.0
        %749 = vmatprep.subr.mxu0 0.0
        %750 = vmatpush2.xpose.msra.mxu0 0.0
        %751 = vmatprep.subr.mxu0 0.0
        %752 = vmatpush2.xpose.msra.mxu0 0.0
        %753 = vmatprep.subr.mxu0 0.0
        %754 = vmatpush2.xpose.msra.mxu0 0.0
        %755 = vmatprep.subr.mxu0 0.0
        %756 = vmatpush2.xpose.msra.mxu0 0.0
        %757 = vmatprep.subr.mxu0 0.0
        %758 = vmatpush2.xpose.msra.mxu0 0.0
        %759 = vmatprep.subr.mxu0 0.0
        %760 = vmatpush2.xpose.msra.mxu0 0.0
        %761 = vmatprep.subr.mxu0 0.0
        %762 = vmatpush2.xpose.msra.mxu0 0.0
        %763 = vmatprep.subr.mxu0 0.0
        %764 = vmatpush2.xpose.msra.mxu0 0.0
        %765 = vmatprep.subr.mxu0 0.0
        %766 = vmatpush2.xpose.msra.mxu0 0.0
        %767 = vmatprep.subr.mxu0 0.0
        %768 = vmatpush2.xpose.msra.mxu0 0.0
        %769 = vmatprep.subr.mxu0 0.0
        %770 = vmatpush2.xpose.msra.mxu0 0.0
        %771 = vmatprep.subr.mxu0 0.0
        %772 = vmatpush2.xpose.msra.mxu0 0.0
        %773 = vmatprep.mubr.f32.mxu0 0.0
        %774 = vmatmul.mubr.f32.gmra.mxu0 %v705
        %v775 = vpop.f32.mrf.mxu0
        %v776 = vadd.f32 0.0, %v775
        %v777 = vpop.f32.mrf.mxu0
        %778 = vdwg.mxu0
        %v779 = vmul.f32 %v776, 0.35355338
        %v781 = vlaneseq
        %v782 = vshrl.u32 %v781, 7
        %v783 = vsub.s32 0, %v782
        %v784 = vrot.slane %v616, %v783
        %v786 = vadd.f32 %v779, %v784
        %v787 = vsel %vm704, %v786, -inf
        %788 = vmax.xlane.f32.xlu0 %v787
        %v789 = vpop.xlane.xlu0 %788
        %v790 = vsub.f32 %v786, %v789
        %v791 = vmul.f32 %v790, 1.442695
        %v792 = vpow.pop %v791
        %v793 = vsel %vm704, %v792, 0.0
        %794 = vadd.xlane.f32.xlu0 %v793
        %v795 = vpop.xlane.xlu0 %794
        %v796 = vrcp.pop %v795
        %v797 = vmul.f32 %v792, %v796
        %798 = vrot.lane.b32.xlu0 %v698, 64
        %v799 = vpop.permute.xlu0 %798
        %v802 = vsel %vm704, %v797, 0
        %804 = vmatprep.subr.mxu0 0.0
        %805 = vmatpush1.msra.mxu0 0.0
        %806 = vmatprep.subr.mxu0 0.0
        %807 = vmatpush1.msra.mxu0 0.0
        %808 = vmatprep.subr.mxu0 0.0
        %809 = vmatpush1.msra.mxu0 0.0
        %810 = vmatprep.subr.mxu0 0.0
        %811 = vmatpush1.msra.mxu0 0.0
        %812 = vmatprep.subr.mxu0 0.0
        %813 = vmatpush1.msra.mxu0 0.0
        %814 = vmatprep.subr.mxu0 0.0
        %815 = vmatpush1.msra.mxu0 0.0
        %816 = vmatprep.subr.mxu0 0.0
        %817 = vmatpush1.msra.mxu0 0.0
        %818 = vmatprep.subr.mxu0 0.0
        %819 = vmatpush1.msra.mxu0 0.0
        %820 = vmatprep.subr.mxu0 0.0
        %821 = vmatpush1.msra.mxu0 0.0
        %822 = vmatprep.subr.mxu0 0.0
        %823 = vmatpush1.msra.mxu0 0.0
        %824 = vmatprep.subr.mxu0 0.0
        %825 = vmatpush1.msra.mxu0 0.0
        %826 = vmatprep.subr.mxu0 0.0
        %827 = vmatpush1.msra.mxu0 0.0
        %828 = vmatprep.subr.mxu0 0.0
        %829 = vmatpush1.msra.mxu0 0.0
        %830 = vmatprep.subr.mxu0 0.0
        %831 = vmatpush1.msra.mxu0 0.0
        %832 = vmatprep.subr.mxu0 0.0
        %833 = vmatpush1.msra.mxu0 0.0
        %834 = vmatprep.subr.mxu0 0.0
        %835 = vmatpush1.msra.mxu0 %v799
        %836 = vmatprep.subr.mxu0 0.0
        %837 = vmatpush2.msra.mxu0 0.0
        %838 = vmatprep.subr.mxu0 0.0
        %839 = vmatpush2.msra.mxu0 0.0
        %840 = vmatprep.subr.mxu0 0.0
        %841 = vmatpush2.msra.mxu0 0.0
        %842 = vmatprep.subr.mxu0 0.0
        %843 = vmatpush2.msra.mxu0 0.0
        %844 = vmatprep.subr.mxu0 0.0
        %845 = vmatpush2.msra.mxu0 0.0
        %846 = vmatprep.subr.mxu0 0.0
        %847 = vmatpush2.msra.mxu0 0.0
        %848 = vmatprep.subr.mxu0 0.0
        %849 = vmatpush2.msra.mxu0 0.0
        %850 = vmatprep.subr.mxu0 0.0
        %851 = vmatpush2.msra.mxu0 0.0
        %852 = vmatprep.subr.mxu0 0.0
        %853 = vmatpush2.msra.mxu0 0.0
        %854 = vmatprep.subr.mxu0 0.0
        %855 = vmatpush2.msra.mxu0 0.0
        %856 = vmatprep.subr.mxu0 0.0
        %857 = vmatpush2.msra.mxu0 0.0
        %858 = vmatprep.subr.mxu0 0.0
        %859 = vmatpush2.msra.mxu0 0.0
        %860 = vmatprep.subr.mxu0 0.0
        %861 = vmatpush2.msra.mxu0 0.0
        %862 = vmatprep.subr.mxu0 0.0
        %863 = vmatpush2.msra.mxu0 0.0
        %864 = vmatprep.subr.mxu0 0.0
        %865 = vmatpush2.msra.mxu0 0.0
        %866 = vmatprep.subr.mxu0 0.0
        %867 = vmatpush2.msra.mxu0 0.0
        %868 = vmatprep.mubr.f32.mxu0 0.0
        %869 = vmatmul.mubr.f32.gmra.mxu0 %v802
        %v870 = vpop.f32.mrf.mxu0
        %v871 = vadd.f32 0.0, %v870
        %v872 = vpop.f32.mrf.mxu0
        %873 = vdwg.mxu0
        %874 = vrot.lane.b32.xlu0 %v698, 120
        %v875 = vpop.permute.xlu0 %874
        %876 = vrot.lane.b32.xlu0 %v698, 88
        %v877 = vpop.permute.xlu0 %876
        %v878 = vsel %vm704, %v875, 0
        %v880 = vsel %vm704, %v877, 0
        %882 = vmatprep.subr.mxu0 0.0
        %883 = vmatpush1.xpose.msra.mxu0 0.0
        %884 = vmatprep.subr.mxu0 0.0
        %885 = vmatpush1.xpose.msra.mxu0 0.0
        %886 = vmatprep.subr.mxu0 0.0
        %887 = vmatpush1.xpose.msra.mxu0 0.0
        %888 = vmatprep.subr.mxu0 0.0
        %889 = vmatpush1.xpose.msra.mxu0 0.0
        %890 = vmatprep.subr.mxu0 0.0
        %891 = vmatpush1.xpose.msra.mxu0 0.0
        %892 = vmatprep.subr.mxu0 0.0
        %893 = vmatpush1.xpose.msra.mxu0 0.0
        %894 = vmatprep.subr.mxu0 0.0
        %895 = vmatpush1.xpose.msra.mxu0 0.0
        %896 = vmatprep.subr.mxu0 0.0
        %897 = vmatpush1.xpose.msra.mxu0 0.0
        %898 = vmatprep.subr.mxu0 0.0
        %899 = vmatpush1.xpose.msra.mxu0 0.0
        %900 = vmatprep.subr.mxu0 0.0
        %901 = vmatpush1.xpose.msra.mxu0 0.0
        %902 = vmatprep.subr.mxu0 0.0
        %903 = vmatpush1.xpose.msra.mxu0 0.0
        %904 = vmatprep.subr.mxu0 0.0
        %905 = vmatpush1.xpose.msra.mxu0 0.0
        %906 = vmatprep.subr.mxu0 0.0
        %907 = vmatpush1.xpose.msra.mxu0 0.0
        %908 = vmatprep.subr.mxu0 0.0
        %909 = vmatpush1.xpose.msra.mxu0 0.0
        %910 = vmatprep.subr.mxu0 0.0
        %911 = vmatpush1.xpose.msra.mxu0 0.0
        %912 = vmatprep.subr.mxu0 0.0
        %913 = vmatpush1.xpose.msra.mxu0 %v880
        %914 = vmatprep.subr.mxu0 0.0
        %915 = vmatpush2.xpose.msra.mxu0 0.0
        %916 = vmatprep.subr.mxu0 0.0
        %917 = vmatpush2.xpose.msra.mxu0 0.0
        %918 = vmatprep.subr.mxu0 0.0
        %919 = vmatpush2.xpose.msra.mxu0 0.0
        %920 = vmatprep.subr.mxu0 0.0
        %921 = vmatpush2.xpose.msra.mxu0 0.0
        %922 = vmatprep.subr.mxu0 0.0
        %923 = vmatpush2.xpose.msra.mxu0 0.0
        %924 = vmatprep.subr.mxu0 0.0
        %925 = vmatpush2.xpose.msra.mxu0 0.0
        %926 = vmatprep.subr.mxu0 0.0
        %927 = vmatpush2.xpose.msra.mxu0 0.0
        %928 = vmatprep.subr.mxu0 0.0
        %929 = vmatpush2.xpose.msra.mxu0 0.0
        %930 = vmatprep.subr.mxu0 0.0
        %931 = vmatpush2.xpose.msra.mxu0 0.0
        %932 = vmatprep.subr.mxu0 0.0
        %933 = vmatpush2.xpose.msra.mxu0 0.0
        %934 = vmatprep.subr.mxu0 0.0
        %935 = vmatpush2.xpose.msra.mxu0 0.0
        %936 = vmatprep.subr.mxu0 0.0
        %937 = vmatpush2.xpose.msra.mxu0 0.0
        %938 = vmatprep.subr.mxu0 0.0
        %939 = vmatpush2.xpose.msra.mxu0 0.0
        %940 = vmatprep.subr.mxu0 0.0
        %941 = vmatpush2.xpose.msra.mxu0 0.0
        %942 = vmatprep.subr.mxu0 0.0
        %943 = vmatpush2.xpose.msra.mxu0 0.0
        %944 = vmatprep.subr.mxu0 0.0
        %945 = vmatpush2.xpose.msra.mxu0 0.0
        %946 = vmatprep.mubr.f32.mxu0 0.0
        %947 = vmatmul.mubr.f32.gmra.mxu0 %v878
        %v948 = vpop.f32.mrf.mxu0
        %v949 = vadd.f32 0.0, %v948
        %v950 = vpop.f32.mrf.mxu0
        %951 = vdwg.mxu0
        %v952 = vmul.f32 %v949, 0.35355338
        %v953 = vadd.f32 %v952, %v784
        %v954 = vsel %vm704, %v953, -inf
        %955 = vmax.xlane.f32.xlu0 %v954
        %v956 = vpop.xlane.xlu0 %955
        %v957 = vsub.f32 %v953, %v956
        %v958 = vmul.f32 %v957, 1.442695
        %v959 = vpow.pop %v958
        %v960 = vsel %vm704, %v959, 0.0
        %961 = vadd.xlane.f32.xlu0 %v960
        %v962 = vpop.xlane.xlu0 %961
        %v963 = vrcp.pop %v962
        %v964 = vmul.f32 %v959, %v963
        %965 = vrot.lane.b32.xlu0 %v698, 56
        %v966 = vpop.permute.xlu0 %965
        %v969 = vsel %vm704, %v964, 0
        %971 = vmatprep.subr.mxu0 0.0
        %972 = vmatpush1.msra.mxu0 0.0
        %973 = vmatprep.subr.mxu0 0.0
        %974 = vmatpush1.msra.mxu0 0.0
        %975 = vmatprep.subr.mxu0 0.0
        %976 = vmatpush1.msra.mxu0 0.0
        %977 = vmatprep.subr.mxu0 0.0
        %978 = vmatpush1.msra.mxu0 0.0
        %979 = vmatprep.subr.mxu0 0.0
        %980 = vmatpush1.msra.mxu0 0.0
        %981 = vmatprep.subr.mxu0 0.0
        %982 = vmatpush1.msra.mxu0 0.0
        %983 = vmatprep.subr.mxu0 0.0
        %984 = vmatpush1.msra.mxu0 0.0
        %985 = vmatprep.subr.mxu0 0.0
        %986 = vmatpush1.msra.mxu0 0.0
        %987 = vmatprep.subr.mxu0 0.0
        %988 = vmatpush1.msra.mxu0 0.0
        %989 = vmatprep.subr.mxu0 0.0
        %990 = vmatpush1.msra.mxu0 0.0
        %991 = vmatprep.subr.mxu0 0.0
        %992 = vmatpush1.msra.mxu0 0.0
        %993 = vmatprep.subr.mxu0 0.0
        %994 = vmatpush1.msra.mxu0 0.0
        %995 = vmatprep.subr.mxu0 0.0
        %996 = vmatpush1.msra.mxu0 0.0
        %997 = vmatprep.subr.mxu0 0.0
        %998 = vmatpush1.msra.mxu0 0.0
        %999 = vmatprep.subr.mxu0 0.0
        %1000 = vmatpush1.msra.mxu0 0.0
        %1001 = vmatprep.subr.mxu0 0.0
        %1002 = vmatpush1.msra.mxu0 %v966
        %1003 = vmatprep.subr.mxu0 0.0
        %1004 = vmatpush2.msra.mxu0 0.0
        %1005 = vmatprep.subr.mxu0 0.0
        %1006 = vmatpush2.msra.mxu0 0.0
        %1007 = vmatprep.subr.mxu0 0.0
        %1008 = vmatpush2.msra.mxu0 0.0
        %1009 = vmatprep.subr.mxu0 0.0
        %1010 = vmatpush2.msra.mxu0 0.0
        %1011 = vmatprep.subr.mxu0 0.0
        %1012 = vmatpush2.msra.mxu0 0.0
        %1013 = vmatprep.subr.mxu0 0.0
        %1014 = vmatpush2.msra.mxu0 0.0
        %1015 = vmatprep.subr.mxu0 0.0
        %1016 = vmatpush2.msra.mxu0 0.0
        %1017 = vmatprep.subr.mxu0 0.0
        %1018 = vmatpush2.msra.mxu0 0.0
        %1019 = vmatprep.subr.mxu0 0.0
        %1020 = vmatpush2.msra.mxu0 0.0
        %1021 = vmatprep.subr.mxu0 0.0
        %1022 = vmatpush2.msra.mxu0 0.0
        %1023 = vmatprep.subr.mxu0 0.0
        %1024 = vmatpush2.msra.mxu0 0.0
        %1025 = vmatprep.subr.mxu0 0.0
        %1026 = vmatpush2.msra.mxu0 0.0
        %1027 = vmatprep.subr.mxu0 0.0
        %1028 = vmatpush2.msra.mxu0 0.0
        %1029 = vmatprep.subr.mxu0 0.0
        %1030 = vmatpush2.msra.mxu0 0.0
        %1031 = vmatprep.subr.mxu0 0.0
        %1032 = vmatpush2.msra.mxu0 0.0
        %1033 = vmatprep.subr.mxu0 0.0
        %1034 = vmatpush2.msra.mxu0 0.0
        %1035 = vmatprep.mubr.f32.mxu0 0.0
        %1036 = vmatmul.mubr.f32.gmra.mxu0 %v969
        %v1037 = vpop.f32.mrf.mxu0
        %v1038 = vadd.f32 0.0, %v1037
        %v1039 = vpop.f32.mrf.mxu0
        %1040 = vdwg.mxu0
        %1041 = vrot.lane.b32.xlu0 %v698, 112
        %v1042 = vpop.permute.xlu0 %1041
        %1043 = vrot.lane.b32.xlu0 %v698, 80
        %v1044 = vpop.permute.xlu0 %1043
        %v1045 = vsel %vm704, %v1042, 0
        %v1047 = vsel %vm704, %v1044, 0
        %1049 = vmatprep.subr.mxu0 0.0
        %1050 = vmatpush1.xpose.msra.mxu0 0.0
        %1051 = vmatprep.subr.mxu0 0.0
        %1052 = vmatpush1.xpose.msra.mxu0 0.0
        %1053 = vmatprep.subr.mxu0 0.0
        %1054 = vmatpush1.xpose.msra.mxu0 0.0
        %1055 = vmatprep.subr.mxu0 0.0
        %1056 = vmatpush1.xpose.msra.mxu0 0.0
        %1057 = vmatprep.subr.mxu0 0.0
        %1058 = vmatpush1.xpose.msra.mxu0 0.0
        %1059 = vmatprep.subr.mxu0 0.0
        %1060 = vmatpush1.xpose.msra.mxu0 0.0
        %1061 = vmatprep.subr.mxu0 0.0
        %1062 = vmatpush1.xpose.msra.mxu0 0.0
        %1063 = vmatprep.subr.mxu0 0.0
        %1064 = vmatpush1.xpose.msra.mxu0 0.0
        %1065 = vmatprep.subr.mxu0 0.0
        %1066 = vmatpush1.xpose.msra.mxu0 0.0
        %1067 = vmatprep.subr.mxu0 0.0
        %1068 = vmatpush1.xpose.msra.mxu0 0.0
        %1069 = vmatprep.subr.mxu0 0.0
        %1070 = vmatpush1.xpose.msra.mxu0 0.0
        %1071 = vmatprep.subr.mxu0 0.0
        %1072 = vmatpush1.xpose.msra.mxu0 0.0
        %1073 = vmatprep.subr.mxu0 0.0
        %1074 = vmatpush1.xpose.msra.mxu0 0.0
        %1075 = vmatprep.subr.mxu0 0.0
        %1076 = vmatpush1.xpose.msra.mxu0 0.0
        %1077 = vmatprep.subr.mxu0 0.0
        %1078 = vmatpush1.xpose.msra.mxu0 0.0
        %1079 = vmatprep.subr.mxu0 0.0
        %1080 = vmatpush1.xpose.msra.mxu0 %v1047
        %1081 = vmatprep.subr.mxu0 0.0
        %1082 = vmatpush2.xpose.msra.mxu0 0.0
        %1083 = vmatprep.subr.mxu0 0.0
        %1084 = vmatpush2.xpose.msra.mxu0 0.0
        %1085 = vmatprep.subr.mxu0 0.0
        %1086 = vmatpush2.xpose.msra.mxu0 0.0
        %1087 = vmatprep.subr.mxu0 0.0
        %1088 = vmatpush2.xpose.msra.mxu0 0.0
        %1089 = vmatprep.subr.mxu0 0.0
        %1090 = vmatpush2.xpose.msra.mxu0 0.0
        %1091 = vmatprep.subr.mxu0 0.0
        %1092 = vmatpush2.xpose.msra.mxu0 0.0
        %1093 = vmatprep.subr.mxu0 0.0
        %1094 = vmatpush2.xpose.msra.mxu0 0.0
        %1095 = vmatprep.subr.mxu0 0.0
        %1096 = vmatpush2.xpose.msra.mxu0 0.0
        %1097 = vmatprep.subr.mxu0 0.0
        %1098 = vmatpush2.xpose.msra.mxu0 0.0
        %1099 = vmatprep.subr.mxu0 0.0
        %1100 = vmatpush2.xpose.msra.mxu0 0.0
        %1101 = vmatprep.subr.mxu0 0.0
        %1102 = vmatpush2.xpose.msra.mxu0 0.0
        %1103 = vmatprep.subr.mxu0 0.0
        %1104 = vmatpush2.xpose.msra.mxu0 0.0
        %1105 = vmatprep.subr.mxu0 0.0
        %1106 = vmatpush2.xpose.msra.mxu0 0.0
        %1107 = vmatprep.subr.mxu0 0.0
        %1108 = vmatpush2.xpose.msra.mxu0 0.0
        %1109 = vmatprep.subr.mxu0 0.0
        %1110 = vmatpush2.xpose.msra.mxu0 0.0
        %1111 = vmatprep.subr.mxu0 0.0
        %1112 = vmatpush2.xpose.msra.mxu0 0.0
        %1113 = vmatprep.mubr.f32.mxu0 0.0
        %1114 = vmatmul.mubr.f32.gmra.mxu0 %v1045
        %v1115 = vpop.f32.mrf.mxu0
        %v1116 = vadd.f32 0.0, %v1115
        %v1117 = vpop.f32.mrf.mxu0
        %1118 = vdwg.mxu0
        %v1119 = vmul.f32 %v1116, 0.35355338
        %v1120 = vadd.f32 %v1119, %v784
        %v1121 = vsel %vm704, %v1120, -inf
        %1122 = vmax.xlane.f32.xlu0 %v1121
        %v1123 = vpop.xlane.xlu0 %1122
        %v1124 = vsub.f32 %v1120, %v1123
        %v1125 = vmul.f32 %v1124, 1.442695
        %v1126 = vpow.pop %v1125
        %v1127 = vsel %vm704, %v1126, 0.0
        %1128 = vadd.xlane.f32.xlu0 %v1127
        %v1129 = vpop.xlane.xlu0 %1128
        %v1130 = vrcp.pop %v1129
        %v1131 = vmul.f32 %v1126, %v1130
        %1132 = vrot.lane.b32.xlu0 %v698, 48
        %v1133 = vpop.permute.xlu0 %1132
        %v1136 = vsel %vm704, %v1131, 0
        %1138 = vmatprep.subr.mxu0 0.0
        %1139 = vmatpush1.msra.mxu0 0.0
        %1140 = vmatprep.subr.mxu0 0.0
        %1141 = vmatpush1.msra.mxu0 0.0
        %1142 = vmatprep.subr.mxu0 0.0
        %1143 = vmatpush1.msra.mxu0 0.0
        %1144 = vmatprep.subr.mxu0 0.0
        %1145 = vmatpush1.msra.mxu0 0.0
        %1146 = vmatprep.subr.mxu0 0.0
        %1147 = vmatpush1.msra.mxu0 0.0
        %1148 = vmatprep.subr.mxu0 0.0
        %1149 = vmatpush1.msra.mxu0 0.0
        %1150 = vmatprep.subr.mxu0 0.0
        %1151 = vmatpush1.msra.mxu0 0.0
        %1152 = vmatprep.subr.mxu0 0.0
        %1153 = vmatpush1.msra.mxu0 0.0
        %1154 = vmatprep.subr.mxu0 0.0
        %1155 = vmatpush1.msra.mxu0 0.0
        %1156 = vmatprep.subr.mxu0 0.0
        %1157 = vmatpush1.msra.mxu0 0.0
        %1158 = vmatprep.subr.mxu0 0.0
        %1159 = vmatpush1.msra.mxu0 0.0
        %1160 = vmatprep.subr.mxu0 0.0
        %1161 = vmatpush1.msra.mxu0 0.0
        %1162 = vmatprep.subr.mxu0 0.0
        %1163 = vmatpush1.msra.mxu0 0.0
        %1164 = vmatprep.subr.mxu0 0.0
        %1165 = vmatpush1.msra.mxu0 0.0
        %1166 = vmatprep.subr.mxu0 0.0
        %1167 = vmatpush1.msra.mxu0 0.0
        %1168 = vmatprep.subr.mxu0 0.0
        %1169 = vmatpush1.msra.mxu0 %v1133
        %1170 = vmatprep.subr.mxu0 0.0
        %1171 = vmatpush2.msra.mxu0 0.0
        %1172 = vmatprep.subr.mxu0 0.0
        %1173 = vmatpush2.msra.mxu0 0.0
        %1174 = vmatprep.subr.mxu0 0.0
        %1175 = vmatpush2.msra.mxu0 0.0
        %1176 = vmatprep.subr.mxu0 0.0
        %1177 = vmatpush2.msra.mxu0 0.0
        %1178 = vmatprep.subr.mxu0 0.0
        %1179 = vmatpush2.msra.mxu0 0.0
        %1180 = vmatprep.subr.mxu0 0.0
        %1181 = vmatpush2.msra.mxu0 0.0
        %1182 = vmatprep.subr.mxu0 0.0
        %1183 = vmatpush2.msra.mxu0 0.0
        %1184 = vmatprep.subr.mxu0 0.0
        %1185 = vmatpush2.msra.mxu0 0.0
        %1186 = vmatprep.subr.mxu0 0.0
        %1187 = vmatpush2.msra.mxu0 0.0
        %1188 = vmatprep.subr.mxu0 0.0
        %1189 = vmatpush2.msra.mxu0 0.0
        %1190 = vmatprep.subr.mxu0 0.0
        %1191 = vmatpush2.msra.mxu0 0.0
        %1192 = vmatprep.subr.mxu0 0.0
        %1193 = vmatpush2.msra.mxu0 0.0
        %1194 = vmatprep.subr.mxu0 0.0
        %1195 = vmatpush2.msra.mxu0 0.0
        %1196 = vmatprep.subr.mxu0 0.0
        %1197 = vmatpush2.msra.mxu0 0.0
        %1198 = vmatprep.subr.mxu0 0.0
        %1199 = vmatpush2.msra.mxu0 0.0
        %1200 = vmatprep.subr.mxu0 0.0
        %1201 = vmatpush2.msra.mxu0 0.0
        %1202 = vmatprep.mubr.f32.mxu0 0.0
        %1203 = vmatmul.mubr.f32.gmra.mxu0 %v1136
        %v1204 = vpop.f32.mrf.mxu0
        %v1205 = vadd.f32 0.0, %v1204
        %v1206 = vpop.f32.mrf.mxu0
        %1207 = vdwg.mxu0
        %1208 = vrot.lane.b32.xlu0 %v698, 104
        %v1209 = vpop.permute.xlu0 %1208
        %1210 = vrot.lane.b32.xlu0 %v698, 72
        %v1211 = vpop.permute.xlu0 %1210
        %v1212 = vsel %vm704, %v1209, 0
        %v1214 = vsel %vm704, %v1211, 0
        %1216 = vmatprep.subr.mxu0 0.0
        %1217 = vmatpush1.xpose.msra.mxu0 0.0
        %1218 = vmatprep.subr.mxu0 0.0
        %1219 = vmatpush1.xpose.msra.mxu0 0.0
        %1220 = vmatprep.subr.mxu0 0.0
        %1221 = vmatpush1.xpose.msra.mxu0 0.0
        %1222 = vmatprep.subr.mxu0 0.0
        %1223 = vmatpush1.xpose.msra.mxu0 0.0
        %1224 = vmatprep.subr.mxu0 0.0
        %1225 = vmatpush1.xpose.msra.mxu0 0.0
        %1226 = vmatprep.subr.mxu0 0.0
        %1227 = vmatpush1.xpose.msra.mxu0 0.0
        %1228 = vmatprep.subr.mxu0 0.0
        %1229 = vmatpush1.xpose.msra.mxu0 0.0
        %1230 = vmatprep.subr.mxu0 0.0
        %1231 = vmatpush1.xpose.msra.mxu0 0.0
        %1232 = vmatprep.subr.mxu0 0.0
        %1233 = vmatpush1.xpose.msra.mxu0 0.0
        %1234 = vmatprep.subr.mxu0 0.0
        %1235 = vmatpush1.xpose.msra.mxu0 0.0
        %1236 = vmatprep.subr.mxu0 0.0
        %1237 = vmatpush1.xpose.msra.mxu0 0.0
        %1238 = vmatprep.subr.mxu0 0.0
        %1239 = vmatpush1.xpose.msra.mxu0 0.0
        %1240 = vmatprep.subr.mxu0 0.0
        %1241 = vmatpush1.xpose.msra.mxu0 0.0
        %1242 = vmatprep.subr.mxu0 0.0
        %1243 = vmatpush1.xpose.msra.mxu0 0.0
        %1244 = vmatprep.subr.mxu0 0.0
        %1245 = vmatpush1.xpose.msra.mxu0 0.0
        %1246 = vmatprep.subr.mxu0 0.0
        %1247 = vmatpush1.xpose.msra.mxu0 %v1214
        %1248 = vmatprep.subr.mxu0 0.0
        %1249 = vmatpush2.xpose.msra.mxu0 0.0
        %1250 = vmatprep.subr.mxu0 0.0
        %1251 = vmatpush2.xpose.msra.mxu0 0.0
        %1252 = vmatprep.subr.mxu0 0.0
        %1253 = vmatpush2.xpose.msra.mxu0 0.0
        %1254 = vmatprep.subr.mxu0 0.0
        %1255 = vmatpush2.xpose.msra.mxu0 0.0
        %1256 = vmatprep.subr.mxu0 0.0
        %1257 = vmatpush2.xpose.msra.mxu0 0.0
        %1258 = vmatprep.subr.mxu0 0.0
        %1259 = vmatpush2.xpose.msra.mxu0 0.0
        %1260 = vmatprep.subr.mxu0 0.0
        %1261 = vmatpush2.xpose.msra.mxu0 0.0
        %1262 = vmatprep.subr.mxu0 0.0
        %1263 = vmatpush2.xpose.msra.mxu0 0.0
        %1264 = vmatprep.subr.mxu0 0.0
        %1265 = vmatpush2.xpose.msra.mxu0 0.0
        %1266 = vmatprep.subr.mxu0 0.0
        %1267 = vmatpush2.xpose.msra.mxu0 0.0
        %1268 = vmatprep.subr.mxu0 0.0
        %1269 = vmatpush2.xpose.msra.mxu0 0.0
        %1270 = vmatprep.subr.mxu0 0.0
        %1271 = vmatpush2.xpose.msra.mxu0 0.0
        %1272 = vmatprep.subr.mxu0 0.0
        %1273 = vmatpush2.xpose.msra.mxu0 0.0
        %1274 = vmatprep.subr.mxu0 0.0
        %1275 = vmatpush2.xpose.msra.mxu0 0.0
        %1276 = vmatprep.subr.mxu0 0.0
        %1277 = vmatpush2.xpose.msra.mxu0 0.0
        %1278 = vmatprep.subr.mxu0 0.0
        %1279 = vmatpush2.xpose.msra.mxu0 0.0
        %1280 = vmatprep.mubr.f32.mxu0 0.0
        %1281 = vmatmul.mubr.f32.gmra.mxu0 %v1212
        %v1282 = vpop.f32.mrf.mxu0
        %v1283 = vadd.f32 0.0, %v1282
        %v1284 = vpop.f32.mrf.mxu0
        %1285 = vdwg.mxu0
        %v1286 = vmul.f32 %v1283, 0.35355338
        %v1287 = vadd.f32 %v1286, %v784
        %v1288 = vsel %vm704, %v1287, -inf
        %1289 = vmax.xlane.f32.xlu0 %v1288
        %v1290 = vpop.xlane.xlu0 %1289
        %v1291 = vsub.f32 %v1287, %v1290
        %v1292 = vmul.f32 %v1291, 1.442695
        %v1293 = vpow.pop %v1292
        %v1294 = vsel %vm704, %v1293, 0.0
        %1295 = vadd.xlane.f32.xlu0 %v1294
        %v1296 = vpop.xlane.xlu0 %1295
        %v1297 = vrcp.pop %v1296
        %v1298 = vmul.f32 %v1293, %v1297
        %1299 = vrot.lane.b32.xlu0 %v698, 40
        %v1300 = vpop.permute.xlu0 %1299
        %v1303 = vsel %vm704, %v1298, 0
        %1305 = vmatprep.subr.mxu0 0.0
        %1306 = vmatpush1.msra.mxu0 0.0
        %1307 = vmatprep.subr.mxu0 0.0
        %1308 = vmatpush1.msra.mxu0 0.0
        %1309 = vmatprep.subr.mxu0 0.0
        %1310 = vmatpush1.msra.mxu0 0.0
        %1311 = vmatprep.subr.mxu0 0.0
        %1312 = vmatpush1.msra.mxu0 0.0
        %1313 = vmatprep.subr.mxu0 0.0
        %1314 = vmatpush1.msra.mxu0 0.0
        %1315 = vmatprep.subr.mxu0 0.0
        %1316 = vmatpush1.msra.mxu0 0.0
        %1317 = vmatprep.subr.mxu0 0.0
        %1318 = vmatpush1.msra.mxu0 0.0
        %1319 = vmatprep.subr.mxu0 0.0
        %1320 = vmatpush1.msra.mxu0 0.0
        %1321 = vmatprep.subr.mxu0 0.0
        %1322 = vmatpush1.msra.mxu0 0.0
        %1323 = vmatprep.subr.mxu0 0.0
        %1324 = vmatpush1.msra.mxu0 0.0
        %1325 = vmatprep.subr.mxu0 0.0
        %1326 = vmatpush1.msra.mxu0 0.0
        %1327 = vmatprep.subr.mxu0 0.0
        %1328 = vmatpush1.msra.mxu0 0.0
        %1329 = vmatprep.subr.mxu0 0.0
        %1330 = vmatpush1.msra.mxu0 0.0
        %1331 = vmatprep.subr.mxu0 0.0
        %1332 = vmatpush1.msra.mxu0 0.0
        %1333 = vmatprep.subr.mxu0 0.0
        %1334 = vmatpush1.msra.mxu0 0.0
        %1335 = vmatprep.subr.mxu0 0.0
        %1336 = vmatpush1.msra.mxu0 %v1300
        %1337 = vmatprep.subr.mxu0 0.0
        %1338 = vmatpush2.msra.mxu0 0.0
        %1339 = vmatprep.subr.mxu0 0.0
        %1340 = vmatpush2.msra.mxu0 0.0
        %1341 = vmatprep.subr.mxu0 0.0
        %1342 = vmatpush2.msra.mxu0 0.0
        %1343 = vmatprep.subr.mxu0 0.0
        %1344 = vmatpush2.msra.mxu0 0.0
        %1345 = vmatprep.subr.mxu0 0.0
        %1346 = vmatpush2.msra.mxu0 0.0
        %1347 = vmatprep.subr.mxu0 0.0
        %1348 = vmatpush2.msra.mxu0 0.0
        %1349 = vmatprep.subr.mxu0 0.0
        %1350 = vmatpush2.msra.mxu0 0.0
        %1351 = vmatprep.subr.mxu0 0.0
        %1352 = vmatpush2.msra.mxu0 0.0
        %1353 = vmatprep.subr.mxu0 0.0
        %1354 = vmatpush2.msra.mxu0 0.0
        %1355 = vmatprep.subr.mxu0 0.0
        %1356 = vmatpush2.msra.mxu0 0.0
        %1357 = vmatprep.subr.mxu0 0.0
        %1358 = vmatpush2.msra.mxu0 0.0
        %1359 = vmatprep.subr.mxu0 0.0
        %1360 = vmatpush2.msra.mxu0 0.0
        %1361 = vmatprep.subr.mxu0 0.0
        %1362 = vmatpush2.msra.mxu0 0.0
        %1363 = vmatprep.subr.mxu0 0.0
        %1364 = vmatpush2.msra.mxu0 0.0
        %1365 = vmatprep.subr.mxu0 0.0
        %1366 = vmatpush2.msra.mxu0 0.0
        %1367 = vmatprep.subr.mxu0 0.0
        %1368 = vmatpush2.msra.mxu0 0.0
        %1369 = vmatprep.mubr.f32.mxu0 0.0
        %1370 = vmatmul.mubr.f32.gmra.mxu0 %v1303
        %v1371 = vpop.f32.mrf.mxu0
        %v1372 = vadd.f32 0.0, %v1371
        %v1373 = vpop.f32.mrf.mxu0
        %1374 = vdwg.mxu0
        %1376 = vrot.lane.b32.xlu0 %v1038, 8
        %v1377 = vpop.permute.xlu0 %1376
        %1380 = vrot.lane.b32.xlu0 %v1205, 16
        %v1381 = vpop.permute.xlu0 %1380
        %1384 = vrot.lane.b32.xlu0 %v1372, 24
        %v1385 = vpop.permute.xlu0 %1384
        %v1387 = vsel %vm704, %v871, %v1377
        %vm1388 = vcmask 130048
        %v1389 = vsel %vm1388, %v1387, %v1381
        %vm1390 = vcmask 195584
        %v1391 = vsel %vm1390, %v1389, %v1385
        %v1392 = vld [vmem:[%s6] sm:$0xff]
        %v1393 = vld [vmem:[%s6 + $0x8] sm:$0xff]
        %v1394 = vld [vmem:[%s6 + $0x10] sm:$0xff]
        %v1395 = vld [vmem:[%s6 + $0x18] sm:$0xff]
        %v1396 = vld [vmem:[%s7] sm:$0x1]
        %v1398 = vlaneseq
        %v1399 = vshrl.u32 %v1398, 7
        %v1400 = vsub.s32 0, %v1399
        %v1401 = vrot.slane %v1396, %v1400
        %v1404 = vsel %vm587, %v1391, 0
        %1406 = vmatprep.subr.mxu0 0.0
        %1407 = vmatpush1.msra.mxu0 0.0
        %1408 = vmatprep.subr.mxu0 0.0
        %1409 = vmatpush1.msra.mxu0 0.0
        %1410 = vmatprep.subr.mxu0 0.0
        %1411 = vmatpush1.msra.mxu0 0.0
        %1412 = vmatprep.subr.mxu0 0.0
        %1413 = vmatpush1.msra.mxu0 0.0
        %1414 = vmatprep.subr.mxu0 0.0
        %1415 = vmatpush1.msra.mxu0 0.0
        %1416 = vmatprep.subr.mxu0 0.0
        %1417 = vmatpush1.msra.mxu0 0.0
        %1418 = vmatprep.subr.mxu0 0.0
        %1419 = vmatpush1.msra.mxu0 0.0
        %1420 = vmatprep.subr.mxu0 0.0
        %1421 = vmatpush1.msra.mxu0 0.0
        %1422 = vmatprep.subr.mxu0 0.0
        %1423 = vmatpush1.msra.mxu0 0.0
        %1424 = vmatprep.subr.mxu0 0.0
        %1425 = vmatpush1.msra.mxu0 0.0
        %1426 = vmatprep.subr.mxu0 0.0
        %1427 = vmatpush1.msra.mxu0 0.0
        %1428 = vmatprep.subr.mxu0 0.0
        %1429 = vmatpush1.msra.mxu0 0.0
        %1430 = vmatprep.subr.mxu0 0.0
        %1431 = vmatpush1.msra.mxu0 %v1395
        %1432 = vmatprep.subr.mxu0 0.0
        %1433 = vmatpush1.msra.mxu0 %v1394
        %1434 = vmatprep.subr.mxu0 0.0
        %1435 = vmatpush1.msra.mxu0 %v1393
        %1436 = vmatprep.subr.mxu0 0.0
        %1437 = vmatpush1.msra.mxu0 %v1392
        %1438 = vmatprep.subr.mxu0 0.0
        %1439 = vmatpush2.msra.mxu0 0.0
        %1440 = vmatprep.subr.mxu0 0.0
        %1441 = vmatpush2.msra.mxu0 0.0
        %1442 = vmatprep.subr.mxu0 0.0
        %1443 = vmatpush2.msra.mxu0 0.0
        %1444 = vmatprep.subr.mxu0 0.0
        %1445 = vmatpush2.msra.mxu0 0.0
        %1446 = vmatprep.subr.mxu0 0.0
        %1447 = vmatpush2.msra.mxu0 0.0
        %1448 = vmatprep.subr.mxu0 0.0
        %1449 = vmatpush2.msra.mxu0 0.0
        %1450 = vmatprep.subr.mxu0 0.0
        %1451 = vmatpush2.msra.mxu0 0.0
        %1452 = vmatprep.subr.mxu0 0.0
        %1453 = vmatpush2.msra.mxu0 0.0
        %1454 = vmatprep.subr.mxu0 0.0
        %1455 = vmatpush2.msra.mxu0 0.0
        %1456 = vmatprep.subr.mxu0 0.0
        %1457 = vmatpush2.msra.mxu0 0.0
        %1458 = vmatprep.subr.mxu0 0.0
        %1459 = vmatpush2.msra.mxu0 0.0
        %1460 = vmatprep.subr.mxu0 0.0
        %1461 = vmatpush2.msra.mxu0 0.0
        %1462 = vmatprep.subr.mxu0 0.0
        %1463 = vmatpush2.msra.mxu0 0.0
        %1464 = vmatprep.subr.mxu0 0.0
        %1465 = vmatpush2.msra.mxu0 0.0
        %1466 = vmatprep.subr.mxu0 0.0
        %1467 = vmatpush2.msra.mxu0 0.0
        %1468 = vmatprep.subr.mxu0 0.0
        %1469 = vmatpush2.msra.mxu0 0.0
        %1470 = vmatprep.mubr.f32.mxu0 0.0
        %1471 = vmatmul.mubr.f32.gmra.mxu0 %v1404
        %v1472 = vpop.f32.mrf.mxu0
        %v1473 = vadd.f32 %v1401, %v1472
        %v1474 = vpop.f32.mrf.mxu0
        %1475 = vdwg.mxu0
        %v1476 = vadd.f32 %v1473, %v615
        %v1477 = vld [vmem:[%s8] sm:$0x1]
        %v1478 = vld [vmem:[%s9] sm:$0x1]
        %v1479 = vsel %vm587, %v1476, 0.0
        %1480 = vadd.xlane.f32.xlu0 %v1479
        %v1481 = vpop.xlane.xlu0 %1480
        %v1482 = vmul.f32 %v1481, %v591
        %v1483 = vsub.f32 %v1476, %v1482
        %v1484 = vmul.f32 %v1483, %v1483
        %v1485 = vsel %vm587, %v1484, 0.0
        %1486 = vadd.xlane.f32.xlu0 %v1485
        %v1487 = vpop.xlane.xlu0 %1486
        %v1488 = vmul.f32 %v1487, %v591
        %v1489 = vadd.f32 %v1488, 1e-12
        %v1490 = vrsqrt.pop %v1489
        %v1491 = vmul.f32 %v1483, %v1490
        %v1493 = vlaneseq
        %v1494 = vshrl.u32 %v1493, 7
        %v1495 = vsub.s32 0, %v1494
        %v1496 = vrot.slane %v1477, %v1495
        %v1498 = vmul.f32 %v1491, %v1496
        %v1500 = vlaneseq
        %v1501 = vshrl.u32 %v1500, 7
        %v1502 = vsub.s32 0, %v1501
        %v1503 = vrot.slane %v1478, %v1502
        %v1505 = vadd.f32 %v1498, %v1503
        %v1506 = vld [vmem:[%s10] sm:$0xff]
        %v1507 = vld [vmem:[%s10 + $0x8] sm:$0xff]
        %v1508 = vld [vmem:[%s10 + $0x10] sm:$0xff]
        %v1509 = vld [vmem:[%s10 + $0x18] sm:$0xff]
        %v1510 = vld [vmem:[%s11] sm:$0x1]
        %v1512 = vlaneseq
        %v1513 = vshrl.u32 %v1512, 7
        %v1514 = vsub.s32 0, %v1513
        %v1515 = vrot.slane %v1510, %v1514
        %v1518 = vsel %vm587, %v1505, 0
        %1520 = vmatprep.subr.mxu0 0.0
        %1521 = vmatpush1.msra.mxu0 0.0
        %1522 = vmatprep.subr.mxu0 0.0
        %1523 = vmatpush1.msra.mxu0 0.0
        %1524 = vmatprep.subr.mxu0 0.0
        %1525 = vmatpush1.msra.mxu0 0.0
        %1526 = vmatprep.subr.mxu0 0.0
        %1527 = vmatpush1.msra.mxu0 0.0
        %1528 = vmatprep.subr.mxu0 0.0
        %1529 = vmatpush1.msra.mxu0 0.0
        %1530 = vmatprep.subr.mxu0 0.0
        %1531 = vmatpush1.msra.mxu0 0.0
        %1532 = vmatprep.subr.mxu0 0.0
        %1533 = vmatpush1.msra.mxu0 0.0
        %1534 = vmatprep.subr.mxu0 0.0
        %1535 = vmatpush1.msra.mxu0 0.0
        %1536 = vmatprep.subr.mxu0 0.0
        %1537 = vmatpush1.msra.mxu0 0.0
        %1538 = vmatprep.subr.mxu0 0.0
        %1539 = vmatpush1.msra.mxu0 0.0
        %1540 = vmatprep.subr.mxu0 0.0
        %1541 = vmatpush1.msra.mxu0 0.0
        %1542 = vmatprep.subr.mxu0 0.0
        %1543 = vmatpush1.msra.mxu0 0.0
        %1544 = vmatprep.subr.mxu0 0.0
        %1545 = vmatpush1.msra.mxu0 %v1509
        %1546 = vmatprep.subr.mxu0 0.0
        %1547 = vmatpush1.msra.mxu0 %v1508
        %1548 = vmatprep.subr.mxu0 0.0
        %1549 = vmatpush1.msra.mxu0 %v1507
        %1550 = vmatprep.subr.mxu0 0.0
        %1551 = vmatpush1.msra.mxu0 %v1506
        %1552 = vmatprep.subr.mxu0 0.0
        %1553 = vmatpush2.msra.mxu0 0.0
        %1554 = vmatprep.subr.mxu0 0.0
        %1555 = vmatpush2.msra.mxu0 0.0
        %1556 = vmatprep.subr.mxu0 0.0
        %1557 = vmatpush2.msra.mxu0 0.0
        %1558 = vmatprep.subr.mxu0 0.0
        %1559 = vmatpush2.msra.mxu0 0.0
        %1560 = vmatprep.subr.mxu0 0.0
        %1561 = vmatpush2.msra.mxu0 0.0
        %1562 = vmatprep.subr.mxu0 0.0
        %1563 = vmatpush2.msra.mxu0 0.0
        %1564 = vmatprep.subr.mxu0 0.0
        %1565 = vmatpush2.msra.mxu0 0.0
        %1566 = vmatprep.subr.mxu0 0.0
        %1567 = vmatpush2.msra.mxu0 0.0
        %1568 = vmatprep.subr.mxu0 0.0
        %1569 = vmatpush2.msra.mxu0 0.0
        %1570 = vmatprep.subr.mxu0 0.0
        %1571 = vmatpush2.msra.mxu0 0.0
        %1572 = vmatprep.subr.mxu0 0.0
        %1573 = vmatpush2.msra.mxu0 0.0
        %1574 = vmatprep.subr.mxu0 0.0
        %1575 = vmatpush2.msra.mxu0 0.0
        %1576 = vmatprep.subr.mxu0 0.0
        %1577 = vmatpush2.msra.mxu0 0.0
        %1578 = vmatprep.subr.mxu0 0.0
        %1579 = vmatpush2.msra.mxu0 0.0
        %1580 = vmatprep.subr.mxu0 0.0
        %1581 = vmatpush2.msra.mxu0 0.0
        %1582 = vmatprep.subr.mxu0 0.0
        %1583 = vmatpush2.msra.mxu0 0.0
        %1584 = vmatprep.mubr.f32.mxu0 0.0
        %1585 = vmatmul.mubr.f32.gmra.mxu0 %v1518
        %v1586 = vpop.f32.mrf.mxu0
        %v1587 = vadd.f32 %v1515, %v1586
        %v1588 = vpop.f32.mrf.mxu0
        %1589 = vdwg.mxu0
        %v1590 = vmul.f32 %v1587, 0.5
        %v1591 = vmul.f32 %v1587, 0.70710677
        %v1592 = verf.f32.pop %v1591
        %v1593 = vadd.f32 %v1592, 1.0
        %v1594 = vmul.f32 %v1590, %v1593
        %v1595 = vld [vmem:[%s12] sm:$0xff]
        %v1596 = vld [vmem:[%s12 + $0x8] sm:$0xff]
        %v1597 = vld [vmem:[%s12 + $0x10] sm:$0xff]
        %v1598 = vld [vmem:[%s12 + $0x18] sm:$0xff]
        %v1599 = vld [vmem:[%s12 + $0x20] sm:$0xff]
        %v1600 = vld [vmem:[%s12 + $0x28] sm:$0xff]
        %v1601 = vld [vmem:[%s12 + $0x30] sm:$0xff]
        %v1602 = vld [vmem:[%s12 + $0x38] sm:$0xff]
        %v1603 = vld [vmem:[%s13] sm:$0x1]
        %v1605 = vlaneseq
        %v1606 = vshrl.u32 %v1605, 7
        %v1607 = vsub.s32 0, %v1606
        %v1608 = vrot.slane %v1603, %v1607
        %vm1610 = vcmask 523264
        %v1612 = vsel %vm1610, %v1594, 0
        %1614 = vmatprep.subr.mxu0 0.0
        %1615 = vmatpush1.msra.mxu0 0.0
        %1616 = vmatprep.subr.mxu0 0.0
        %1617 = vmatpush1.msra.mxu0 0.0
        %1618 = vmatprep.subr.mxu0 0.0
        %1619 = vmatpush1.msra.mxu0 0.0
        %1620 = vmatprep.subr.mxu0 0.0
        %1621 = vmatpush1.msra.mxu0 0.0
        %1622 = vmatprep.subr.mxu0 0.0
        %1623 = vmatpush1.msra.mxu0 0.0
        %1624 = vmatprep.subr.mxu0 0.0
        %1625 = vmatpush1.msra.mxu0 0.0
        %1626 = vmatprep.subr.mxu0 0.0
        %1627 = vmatpush1.msra.mxu0 0.0
        %1628 = vmatprep.subr.mxu0 0.0
        %1629 = vmatpush1.msra.mxu0 0.0
        %1630 = vmatprep.subr.mxu0 0.0
        %1631 = vmatpush1.msra.mxu0 %v1602
        %1632 = vmatprep.subr.mxu0 0.0
        %1633 = vmatpush1.msra.mxu0 %v1601
        %1634 = vmatprep.subr.mxu0 0.0
        %1635 = vmatpush1.msra.mxu0 %v1600
        %1636 = vmatprep.subr.mxu0 0.0
        %1637 = vmatpush1.msra.mxu0 %v1599
        %1638 = vmatprep.subr.mxu0 0.0
        %1639 = vmatpush1.msra.mxu0 %v1598
        %1640 = vmatprep.subr.mxu0 0.0
        %1641 = vmatpush1.msra.mxu0 %v1597
        %1642 = vmatprep.subr.mxu0 0.0
        %1643 = vmatpush1.msra.mxu0 %v1596
        %1644 = vmatprep.subr.mxu0 0.0
        %1645 = vmatpush1.msra.mxu0 %v1595
        %1646 = vmatprep.subr.mxu0 0.0
        %1647 = vmatpush2.msra.mxu0 0.0
        %1648 = vmatprep.subr.mxu0 0.0
        %1649 = vmatpush2.msra.mxu0 0.0
        %1650 = vmatprep.subr.mxu0 0.0
        %1651 = vmatpush2.msra.mxu0 0.0
        %1652 = vmatprep.subr.mxu0 0.0
        %1653 = vmatpush2.msra.mxu0 0.0
        %1654 = vmatprep.subr.mxu0 0.0
        %1655 = vmatpush2.msra.mxu0 0.0
        %1656 = vmatprep.subr.mxu0 0.0
        %1657 = vmatpush2.msra.mxu0 0.0
        %1658 = vmatprep.subr.mxu0 0.0
        %1659 = vmatpush2.msra.mxu0 0.0
        %1660 = vmatprep.subr.mxu0 0.0
        %1661 = vmatpush2.msra.mxu0 0.0
        %1662 = vmatprep.subr.mxu0 0.0
        %1663 = vmatpush2.msra.mxu0 0.0
        %1664 = vmatprep.subr.mxu0 0.0
        %1665 = vmatpush2.msra.mxu0 0.0
        %1666 = vmatprep.subr.mxu0 0.0
        %1667 = vmatpush2.msra.mxu0 0.0
        %1668 = vmatprep.subr.mxu0 0.0
        %1669 = vmatpush2.msra.mxu0 0.0
        %1670 = vmatprep.subr.mxu0 0.0
        %1671 = vmatpush2.msra.mxu0 0.0
        %1672 = vmatprep.subr.mxu0 0.0
        %1673 = vmatpush2.msra.mxu0 0.0
        %1674 = vmatprep.subr.mxu0 0.0
        %1675 = vmatpush2.msra.mxu0 0.0
        %1676 = vmatprep.subr.mxu0 0.0
        %1677 = vmatpush2.msra.mxu0 0.0
        %1678 = vmatprep.mubr.f32.mxu0 0.0
        %1679 = vmatmul.mubr.f32.gmra.mxu0 %v1612
        %v1680 = vpop.f32.mrf.mxu0
        %v1681 = vadd.f32 %v1608, %v1680
        %v1682 = vpop.f32.mrf.mxu0
        %1683 = vdwg.mxu0
        %v1684 = vadd.f32 %v1681, %v1505
        %v1685 = vld [vmem:[%s14] sm:$0x1]
        %v1686 = vld [vmem:[%s15] sm:$0x1]
        %v1687 = vsel %vm587, %v1684, 0.0
        %1688 = vadd.xlane.f32.xlu0 %v1687
        %v1689 = vpop.xlane.xlu0 %1688
        %v1690 = vmul.f32 %v1689, %v591
        %v1691 = vsub.f32 %v1684, %v1690
        %v1692 = vmul.f32 %v1691, %v1691
        %v1693 = vsel %vm587, %v1692, 0.0
        %1694 = vadd.xlane.f32.xlu0 %v1693
        %v1695 = vpop.xlane.xlu0 %1694
        %v1696 = vmul.f32 %v1695, %v591
        %v1697 = vadd.f32 %v1696, 1e-12
        %v1698 = vrsqrt.pop %v1697
        %v1699 = vmul.f32 %v1691, %v1698
        %v1701 = vlaneseq
        %v1702 = vshrl.u32 %v1701, 7
        %v1703 = vsub.s32 0, %v1702
        %v1704 = vrot.slane %v1685, %v1703
        %v1706 = vmul.f32 %v1699, %v1704
        %v1708 = vlaneseq
        %v1709 = vshrl.u32 %v1708, 7
        %v1710 = vsub.s32 0, %v1709
        %v1711 = vrot.slane %v1686, %v1710
        %v1713 = vadd.f32 %v1706, %v1711
        %s1714 = scalar_lea.vmem %s4, 32
        %v1715 = vld [vmem:[%s1714] sm:$0xff]
        %v1716 = vld [vmem:[%s1714 + $0x8] sm:$0xff]
        %v1717 = vld [vmem:[%s1714 + $0x10] sm:$0xff]
        %v1718 = vld [vmem:[%s1714 + $0x18] sm:$0xff]
        %s1719 = scalar_lea.vmem %s5, 1
        %v1720 = vld [vmem:[%s1719] sm:$0x1]
        %v1722 = vlaneseq
        %v1723 = vshrl.u32 %v1722, 7
        %v1724 = vsub.s32 0, %v1723
        %v1725 = vrot.slane %v1720, %v1724
        %v1728 = vsel %vm587, %v1713, 0
        %1730 = vmatprep.subr.mxu0 0.0
        %1731 = vmatpush1.msra.mxu0 0.0
        %1732 = vmatprep.subr.mxu0 0.0
        %1733 = vmatpush1.msra.mxu0 0.0
        %1734 = vmatprep.subr.mxu0 0.0
        %1735 = vmatpush1.msra.mxu0 0.0
        %1736 = vmatprep.subr.mxu0 0.0
        %1737 = vmatpush1.msra.mxu0 0.0
        %1738 = vmatprep.subr.mxu0 0.0
        %1739 = vmatpush1.msra.mxu0 0.0
        %1740 = vmatprep.subr.mxu0 0.0
        %1741 = vmatpush1.msra.mxu0 0.0
        %1742 = vmatprep.subr.mxu0 0.0
        %1743 = vmatpush1.msra.mxu0 0.0
        %1744 = vmatprep.subr.mxu0 0.0
        %1745 = vmatpush1.msra.mxu0 0.0
        %1746 = vmatprep.subr.mxu0 0.0
        %1747 = vmatpush1.msra.mxu0 0.0
        %1748 = vmatprep.subr.mxu0 0.0
        %1749 = vmatpush1.msra.mxu0 0.0
        %1750 = vmatprep.subr.mxu0 0.0
        %1751 = vmatpush1.msra.mxu0 0.0
        %1752 = vmatprep.subr.mxu0 0.0
        %1753 = vmatpush1.msra.mxu0 0.0
        %1754 = vmatprep.subr.mxu0 0.0
        %1755 = vmatpush1.msra.mxu0 %v1718
        %1756 = vmatprep.subr.mxu0 0.0
        %1757 = vmatpush1.msra.mxu0 %v1717
        %1758 = vmatprep.subr.mxu0 0.0
        %1759 = vmatpush1.msra.mxu0 %v1716
        %1760 = vmatprep.subr.mxu0 0.0
        %1761 = vmatpush1.msra.mxu0 %v1715
        %1762 = vmatprep.subr.mxu0 0.0
        %1763 = vmatpush2.msra.mxu0 0.0
        %1764 = vmatprep.subr.mxu0 0.0
        %1765 = vmatpush2.msra.mxu0 0.0
        %1766 = vmatprep.subr.mxu0 0.0
        %1767 = vmatpush2.msra.mxu0 0.0
        %1768 = vmatprep.subr.mxu0 0.0
        %1769 = vmatpush2.msra.mxu0 0.0
        %1770 = vmatprep.subr.mxu0 0.0
        %1771 = vmatpush2.msra.mxu0 0.0
        %1772 = vmatprep.subr.mxu0 0.0
        %1773 = vmatpush2.msra.mxu0 0.0
        %1774 = vmatprep.subr.mxu0 0.0
        %1775 = vmatpush2.msra.mxu0 0.0
        %1776 = vmatprep.subr.mxu0 0.0
        %1777 = vmatpush2.msra.mxu0 0.0
        %1778 = vmatprep.subr.mxu0 0.0
        %1779 = vmatpush2.msra.mxu0 0.0
        %1780 = vmatprep.subr.mxu0 0.0
        %1781 = vmatpush2.msra.mxu0 0.0
        %1782 = vmatprep.subr.mxu0 0.0
        %1783 = vmatpush2.msra.mxu0 0.0
        %1784 = vmatprep.subr.mxu0 0.0
        %1785 = vmatpush2.msra.mxu0 0.0
        %1786 = vmatprep.subr.mxu0 0.0
        %1787 = vmatpush2.msra.mxu0 0.0
        %1788 = vmatprep.subr.mxu0 0.0
        %1789 = vmatpush2.msra.mxu0 0.0
        %1790 = vmatprep.subr.mxu0 0.0
        %1791 = vmatpush2.msra.mxu0 0.0
        %1792 = vmatprep.subr.mxu0 0.0
        %1793 = vmatpush2.msra.mxu0 0.0
        %1794 = vmatprep.mubr.f32.mxu0 0.0
        %1795 = vmatmul.mubr.f32.gmra.mxu0 %v1728
        %v1796 = vpop.f32.mrf.mxu0
        %v1797 = vadd.f32 %v1725, %v1796
        %v1798 = vpop.f32.mrf.mxu0
        %1799 = vdwg.mxu0
        %1801 = vrot.lane.b32.xlu0 %v1797, 96
        %v1802 = vpop.permute.xlu0 %1801
        %v1803 = vsel %vm704, %v1797, 0
        %v1805 = vsel %vm704, %v1802, 0
        %1807 = vmatprep.subr.mxu0 0.0
        %1808 = vmatpush1.xpose.msra.mxu0 0.0
        %1809 = vmatprep.subr.mxu0 0.0
        %1810 = vmatpush1.xpose.msra.mxu0 0.0
        %1811 = vmatprep.subr.mxu0 0.0
        %1812 = vmatpush1.xpose.msra.mxu0 0.0
        %1813 = vmatprep.subr.mxu0 0.0
        %1814 = vmatpush1.xpose.msra.mxu0 0.0
        %1815 = vmatprep.subr.mxu0 0.0
        %1816 = vmatpush1.xpose.msra.mxu0 0.0
        %1817 = vmatprep.subr.mxu0 0.0
        %1818 = vmatpush1.xpose.msra.mxu0 0.0
        %1819 = vmatprep.subr.mxu0 0.0
        %1820 = vmatpush1.xpose.msra.mxu0 0.0
        %1821 = vmatprep.subr.mxu0 0.0
        %1822 = vmatpush1.xpose.msra.mxu0 0.0
        %1823 = vmatprep.subr.mxu0 0.0
        %1824 = vmatpush1.xpose.msra.mxu0 0.0
        %1825 = vmatprep.subr.mxu0 0.0
        %1826 = vmatpush1.xpose.msra.mxu0 0.0
        %1827 = vmatprep.subr.mxu0 0.0
        %1828 = vmatpush1.xpose.msra.mxu0 0.0
        %1829 = vmatprep.subr.mxu0 0.0
        %1830 = vmatpush1.xpose.msra.mxu0 0.0
        %1831 = vmatprep.subr.mxu0 0.0
        %1832 = vmatpush1.xpose.msra.mxu0 0.0
        %1833 = vmatprep.subr.mxu0 0.0
        %1834 = vmatpush1.xpose.msra.mxu0 0.0
        %1835 = vmatprep.subr.mxu0 0.0
        %1836 = vmatpush1.xpose.msra.mxu0 0.0
        %1837 = vmatprep.subr.mxu0 0.0
        %1838 = vmatpush1.xpose.msra.mxu0 %v1805
        %1839 = vmatprep.subr.mxu0 0.0
        %1840 = vmatpush2.xpose.msra.mxu0 0.0
        %1841 = vmatprep.subr.mxu0 0.0
        %1842 = vmatpush2.xpose.msra.mxu0 0.0
        %1843 = vmatprep.subr.mxu0 0.0
        %1844 = vmatpush2.xpose.msra.mxu0 0.0
        %1845 = vmatprep.subr.mxu0 0.0
        %1846 = vmatpush2.xpose.msra.mxu0 0.0
        %1847 = vmatprep.subr.mxu0 0.0
        %1848 = vmatpush2.xpose.msra.mxu0 0.0
        %1849 = vmatprep.subr.mxu0 0.0
        %1850 = vmatpush2.xpose.msra.mxu0 0.0
        %1851 = vmatprep.subr.mxu0 0.0
        %1852 = vmatpush2.xpose.msra.mxu0 0.0
        %1853 = vmatprep.subr.mxu0 0.0
        %1854 = vmatpush2.xpose.msra.mxu0 0.0
        %1855 = vmatprep.subr.mxu0 0.0
        %1856 = vmatpush2.xpose.msra.mxu0 0.0
        %1857 = vmatprep.subr.mxu0 0.0
        %1858 = vmatpush2.xpose.msra.mxu0 0.0
        %1859 = vmatprep.subr.mxu0 0.0
        %1860 = vmatpush2.xpose.msra.mxu0 0.0
        %1861 = vmatprep.subr.mxu0 0.0
        %1862 = vmatpush2.xpose.msra.mxu0 0.0
        %1863 = vmatprep.subr.mxu0 0.0
        %1864 = vmatpush2.xpose.msra.mxu0 0.0
        %1865 = vmatprep.subr.mxu0 0.0
        %1866 = vmatpush2.xpose.msra.mxu0 0.0
        %1867 = vmatprep.subr.mxu0 0.0
        %1868 = vmatpush2.xpose.msra.mxu0 0.0
        %1869 = vmatprep.subr.mxu0 0.0
        %1870 = vmatpush2.xpose.msra.mxu0 0.0
        %1871 = vmatprep.mubr.f32.mxu0 0.0
        %1872 = vmatmul.mubr.f32.gmra.mxu0 %v1803
        %v1873 = vpop.f32.mrf.mxu0
        %v1874 = vadd.f32 0.0, %v1873
        %v1875 = vpop.f32.mrf.mxu0
        %1876 = vdwg.mxu0
        %v1877 = vmul.f32 %v1874, 0.35355338
        %v1878 = vadd.f32 %v1877, %v784
        %v1879 = vsel %vm704, %v1878, -inf
        %1880 = vmax.xlane.f32.xlu0 %v1879
        %v1881 = vpop.xlane.xlu0 %1880
        %v1882 = vsub.f32 %v1878, %v1881
        %v1883 = vmul.f32 %v1882, 1.442695
        %v1884 = vpow.pop %v1883
        %v1885 = vsel %vm704, %v1884, 0.0
        %1886 = vadd.xlane.f32.xlu0 %v1885
        %v1887 = vpop.xlane.xlu0 %1886
        %v1888 = vrcp.pop %v1887
        %v1889 = vmul.f32 %v1884, %v1888
        %1890 = vrot.lane.b32.xlu0 %v1797, 64
        %v1891 = vpop.permute.xlu0 %1890
        %v1894 = vsel %vm704, %v1889, 0
        %1896 = vmatprep.subr.mxu0 0.0
        %1897 = vmatpush1.msra.mxu0 0.0
        %1898 = vmatprep.subr.mxu0 0.0
        %1899 = vmatpush1.msra.mxu0 0.0
        %1900 = vmatprep.subr.mxu0 0.0
        %1901 = vmatpush1.msra.mxu0 0.0
        %1902 = vmatprep.subr.mxu0 0.0
        %1903 = vmatpush1.msra.mxu0 0.0
        %1904 = vmatprep.subr.mxu0 0.0
        %1905 = vmatpush1.msra.mxu0 0.0
        %1906 = vmatprep.subr.mxu0 0.0
        %1907 = vmatpush1.msra.mxu0 0.0
        %1908 = vmatprep.subr.mxu0 0.0
        %1909 = vmatpush1.msra.mxu0 0.0
        %1910 = vmatprep.subr.mxu0 0.0
        %1911 = vmatpush1.msra.mxu0 0.0
        %1912 = vmatprep.subr.mxu0 0.0
        %1913 = vmatpush1.msra.mxu0 0.0
        %1914 = vmatprep.subr.mxu0 0.0
        %1915 = vmatpush1.msra.mxu0 0.0
        %1916 = vmatprep.subr.mxu0 0.0
        %1917 = vmatpush1.msra.mxu0 0.0
        %1918 = vmatprep.subr.mxu0 0.0
        %1919 = vmatpush1.msra.mxu0 0.0
        %1920 = vmatprep.subr.mxu0 0.0
        %1921 = vmatpush1.msra.mxu0 0.0
        %1922 = vmatprep.subr.mxu0 0.0
        %1923 = vmatpush1.msra.mxu0 0.0
        %1924 = vmatprep.subr.mxu0 0.0
        %1925 = vmatpush1.msra.mxu0 0.0
        %1926 = vmatprep.subr.mxu0 0.0
        %1927 = vmatpush1.msra.mxu0 %v1891
        %1928 = vmatprep.subr.mxu0 0.0
        %1929 = vmatpush2.msra.mxu0 0.0
        %1930 = vmatprep.subr.mxu0 0.0
        %1931 = vmatpush2.msra.mxu0 0.0
        %1932 = vmatprep.subr.mxu0 0.0
        %1933 = vmatpush2.msra.mxu0 0.0
        %1934 = vmatprep.subr.mxu0 0.0
        %1935 = vmatpush2.msra.mxu0 0.0
        %1936 = vmatprep.subr.mxu0 0.0
        %1937 = vmatpush2.msra.mxu0 0.0
        %1938 = vmatprep.subr.mxu0 0.0
        %1939 = vmatpush2.msra.mxu0 0.0
        %1940 = vmatprep.subr.mxu0 0.0
        %1941 = vmatpush2.msra.mxu0 0.0
        %1942 = vmatprep.subr.mxu0 0.0
        %1943 = vmatpush2.msra.mxu0 0.0
        %1944 = vmatprep.subr.mxu0 0.0
        %1945 = vmatpush2.msra.mxu0 0.0
        %1946 = vmatprep.subr.mxu0 0.0
        %1947 = vmatpush2.msra.mxu0 0.0
        %1948 = vmatprep.subr.mxu0 0.0
        %1949 = vmatpush2.msra.mxu0 0.0
        %1950 = vmatprep.subr.mxu0 0.0
        %1951 = vmatpush2.msra.mxu0 0.0
        %1952 = vmatprep.subr.mxu0 0.0
        %1953 = vmatpush2.msra.mxu0 0.0
        %1954 = vmatprep.subr.mxu0 0.0
        %1955 = vmatpush2.msra.mxu0 0.0
        %1956 = vmatprep.subr.mxu0 0.0
        %1957 = vmatpush2.msra.mxu0 0.0
        %1958 = vmatprep.subr.mxu0 0.0
        %1959 = vmatpush2.msra.mxu0 0.0
        %1960 = vmatprep.mubr.f32.mxu0 0.0
        %1961 = vmatmul.mubr.f32.gmra.mxu0 %v1894
        %v1962 = vpop.f32.mrf.mxu0
        %v1963 = vadd.f32 0.0, %v1962
        %v1964 = vpop.f32.mrf.mxu0
        %1965 = vdwg.mxu0
        %1966 = vrot.lane.b32.xlu0 %v1797, 120
        %v1967 = vpop.permute.xlu0 %1966
        %1968 = vrot.lane.b32.xlu0 %v1797, 88
        %v1969 = vpop.permute.xlu0 %1968
        %v1970 = vsel %vm704, %v1967, 0
        %v1972 = vsel %vm704, %v1969, 0
        %1974 = vmatprep.subr.mxu0 0.0
        %1975 = vmatpush1.xpose.msra.mxu0 0.0
        %1976 = vmatprep.subr.mxu0 0.0
        %1977 = vmatpush1.xpose.msra.mxu0 0.0
        %1978 = vmatprep.subr.mxu0 0.0
        %1979 = vmatpush1.xpose.msra.mxu0 0.0
        %1980 = vmatprep.subr.mxu0 0.0
        %1981 = vmatpush1.xpose.msra.mxu0 0.0
        %1982 = vmatprep.subr.mxu0 0.0
        %1983 = vmatpush1.xpose.msra.mxu0 0.0
        %1984 = vmatprep.subr.mxu0 0.0
        %1985 = vmatpush1.xpose.msra.mxu0 0.0
        %1986 = vmatprep.subr.mxu0 0.0
        %1987 = vmatpush1.xpose.msra.mxu0 0.0
        %1988 = vmatprep.subr.mxu0 0.0
        %1989 = vmatpush1.xpose.msra.mxu0 0.0
        %1990 = vmatprep.subr.mxu0 0.0
        %1991 = vmatpush1.xpose.msra.mxu0 0.0
        %1992 = vmatprep.subr.mxu0 0.0
        %1993 = vmatpush1.xpose.msra.mxu0 0.0
        %1994 = vmatprep.subr.mxu0 0.0
        %1995 = vmatpush1.xpose.msra.mxu0 0.0
        %1996 = vmatprep.subr.mxu0 0.0
        %1997 = vmatpush1.xpose.msra.mxu0 0.0
        %1998 = vmatprep.subr.mxu0 0.0
        %1999 = vmatpush1.xpose.msra.mxu0 0.0
        %2000 = vmatprep.subr.mxu0 0.0
        %2001 = vmatpush1.xpose.msra.mxu0 0.0
        %2002 = vmatprep.subr.mxu0 0.0
        %2003 = vmatpush1.xpose.msra.mxu0 0.0
        %2004 = vmatprep.subr.mxu0 0.0
        %2005 = vmatpush1.xpose.msra.mxu0 %v1972
        %2006 = vmatprep.subr.mxu0 0.0
        %2007 = vmatpush2.xpose.msra.mxu0 0.0
        %2008 = vmatprep.subr.mxu0 0.0
        %2009 = vmatpush2.xpose.msra.mxu0 0.0
        %2010 = vmatprep.subr.mxu0 0.0
        %2011 = vmatpush2.xpose.msra.mxu0 0.0
        %2012 = vmatprep.subr.mxu0 0.0
        %2013 = vmatpush2.xpose.msra.mxu0 0.0
        %2014 = vmatprep.subr.mxu0 0.0
        %2015 = vmatpush2.xpose.msra.mxu0 0.0
        %2016 = vmatprep.subr.mxu0 0.0
        %2017 = vmatpush2.xpose.msra.mxu0 0.0
        %2018 = vmatprep.subr.mxu0 0.0
        %2019 = vmatpush2.xpose.msra.mxu0 0.0
        %2020 = vmatprep.subr.mxu0 0.0
        %2021 = vmatpush2.xpose.msra.mxu0 0.0
        %2022 = vmatprep.subr.mxu0 0.0
        %2023 = vmatpush2.xpose.msra.mxu0 0.0
        %2024 = vmatprep.subr.mxu0 0.0
        %2025 = vmatpush2.xpose.msra.mxu0 0.0
        %2026 = vmatprep.subr.mxu0 0.0
        %2027 = vmatpush2.xpose.msra.mxu0 0.0
        %2028 = vmatprep.subr.mxu0 0.0
        %2029 = vmatpush2.xpose.msra.mxu0 0.0
        %2030 = vmatprep.subr.mxu0 0.0
        %2031 = vmatpush2.xpose.msra.mxu0 0.0
        %2032 = vmatprep.subr.mxu0 0.0
        %2033 = vmatpush2.xpose.msra.mxu0 0.0
        %2034 = vmatprep.subr.mxu0 0.0
        %2035 = vmatpush2.xpose.msra.mxu0 0.0
        %2036 = vmatprep.subr.mxu0 0.0
        %2037 = vmatpush2.xpose.msra.mxu0 0.0
        %2038 = vmatprep.mubr.f32.mxu0 0.0
        %2039 = vmatmul.mubr.f32.gmra.mxu0 %v1970
        %v2040 = vpop.f32.mrf.mxu0
        %v2041 = vadd.f32 0.0, %v2040
        %v2042 = vpop.f32.mrf.mxu0
        %2043 = vdwg.mxu0
        %v2044 = vmul.f32 %v2041, 0.35355338
        %v2045 = vadd.f32 %v2044, %v784
        %v2046 = vsel %vm704, %v2045, -inf
        %2047 = vmax.xlane.f32.xlu0 %v2046
        %v2048 = vpop.xlane.xlu0 %2047
        %v2049 = vsub.f32 %v2045, %v2048
        %v2050 = vmul.f32 %v2049, 1.442695
        %v2051 = vpow.pop %v2050
        %v2052 = vsel %vm704, %v2051, 0.0
        %2053 = vadd.xlane.f32.xlu0 %v2052
        %v2054 = vpop.xlane.xlu0 %2053
        %v2055 = vrcp.pop %v2054
        %v2056 = vmul.f32 %v2051, %v2055
        %2057 = vrot.lane.b32.xlu0 %v1797, 56
        %v2058 = vpop.permute.xlu0 %2057
        %v2061 = vsel %vm704, %v2056, 0
        %2063 = vmatprep.subr.mxu0 0.0
        %2064 = vmatpush1.msra.mxu0 0.0
        %2065 = vmatprep.subr.mxu0 0.0
        %2066 = vmatpush1.msra.mxu0 0.0
        %2067 = vmatprep.subr.mxu0 0.0
        %2068 = vmatpush1.msra.mxu0 0.0
        %2069 = vmatprep.subr.mxu0 0.0
        %2070 = vmatpush1.msra.mxu0 0.0
        %2071 = vmatprep.subr.mxu0 0.0
        %2072 = vmatpush1.msra.mxu0 0.0
        %2073 = vmatprep.subr.mxu0 0.0
        %2074 = vmatpush1.msra.mxu0 0.0
        %2075 = vmatprep.subr.mxu0 0.0
        %2076 = vmatpush1.msra.mxu0 0.0
        %2077 = vmatprep.subr.mxu0 0.0
        %2078 = vmatpush1.msra.mxu0 0.0
        %2079 = vmatprep.subr.mxu0 0.0
        %2080 = vmatpush1.msra.mxu0 0.0
        %2081 = vmatprep.subr.mxu0 0.0
        %2082 = vmatpush1.msra.mxu0 0.0
        %2083 = vmatprep.subr.mxu0 0.0
        %2084 = vmatpush1.msra.mxu0 0.0
        %2085 = vmatprep.subr.mxu0 0.0
        %2086 = vmatpush1.msra.mxu0 0.0
        %2087 = vmatprep.subr.mxu0 0.0
        %2088 = vmatpush1.msra.mxu0 0.0
        %2089 = vmatprep.subr.mxu0 0.0
        %2090 = vmatpush1.msra.mxu0 0.0
        %2091 = vmatprep.subr.mxu0 0.0
        %2092 = vmatpush1.msra.mxu0 0.0
        %2093 = vmatprep.subr.mxu0 0.0
        %2094 = vmatpush1.msra.mxu0 %v2058
        %2095 = vmatprep.subr.mxu0 0.0
        %2096 = vmatpush2.msra.mxu0 0.0
        %2097 = vmatprep.subr.mxu0 0.0
        %2098 = vmatpush2.msra.mxu0 0.0
        %2099 = vmatprep.subr.mxu0 0.0
        %2100 = vmatpush2.msra.mxu0 0.0
        %2101 = vmatprep.subr.mxu0 0.0
        %2102 = vmatpush2.msra.mxu0 0.0
        %2103 = vmatprep.subr.mxu0 0.0
        %2104 = vmatpush2.msra.mxu0 0.0
        %2105 = vmatprep.subr.mxu0 0.0
        %2106 = vmatpush2.msra.mxu0 0.0
        %2107 = vmatprep.subr.mxu0 0.0
        %2108 = vmatpush2.msra.mxu0 0.0
        %2109 = vmatprep.subr.mxu0 0.0
        %2110 = vmatpush2.msra.mxu0 0.0
        %2111 = vmatprep.subr.mxu0 0.0
        %2112 = vmatpush2.msra.mxu0 0.0
        %2113 = vmatprep.subr.mxu0 0.0
        %2114 = vmatpush2.msra.mxu0 0.0
        %2115 = vmatprep.subr.mxu0 0.0
        %2116 = vmatpush2.msra.mxu0 0.0
        %2117 = vmatprep.subr.mxu0 0.0
        %2118 = vmatpush2.msra.mxu0 0.0
        %2119 = vmatprep.subr.mxu0 0.0
        %2120 = vmatpush2.msra.mxu0 0.0
        %2121 = vmatprep.subr.mxu0 0.0
        %2122 = vmatpush2.msra.mxu0 0.0
        %2123 = vmatprep.subr.mxu0 0.0
        %2124 = vmatpush2.msra.mxu0 0.0
        %2125 = vmatprep.subr.mxu0 0.0
        %2126 = vmatpush2.msra.mxu0 0.0
        %2127 = vmatprep.mubr.f32.mxu0 0.0
        %2128 = vmatmul.mubr.f32.gmra.mxu0 %v2061
        %v2129 = vpop.f32.mrf.mxu0
        %v2130 = vadd.f32 0.0, %v2129
        %v2131 = vpop.f32.mrf.mxu0
        %2132 = vdwg.mxu0
        %2133 = vrot.lane.b32.xlu0 %v1797, 112
        %v2134 = vpop.permute.xlu0 %2133
        %2135 = vrot.lane.b32.xlu0 %v1797, 80
        %v2136 = vpop.permute.xlu0 %2135
        %v2137 = vsel %vm704, %v2134, 0
        %v2139 = vsel %vm704, %v2136, 0
        %2141 = vmatprep.subr.mxu0 0.0
        %2142 = vmatpush1.xpose.msra.mxu0 0.0
        %2143 = vmatprep.subr.mxu0 0.0
        %2144 = vmatpush1.xpose.msra.mxu0 0.0
        %2145 = vmatprep.subr.mxu0 0.0
        %2146 = vmatpush1.xpose.msra.mxu0 0.0
        %2147 = vmatprep.subr.mxu0 0.0
        %2148 = vmatpush1.xpose.msra.mxu0 0.0
        %2149 = vmatprep.subr.mxu0 0.0
        %2150 = vmatpush1.xpose.msra.mxu0 0.0
        %2151 = vmatprep.subr.mxu0 0.0
        %2152 = vmatpush1.xpose.msra.mxu0 0.0
        %2153 = vmatprep.subr.mxu0 0.0
        %2154 = vmatpush1.xpose.msra.mxu0 0.0
        %2155 = vmatprep.subr.mxu0 0.0
        %2156 = vmatpush1.xpose.msra.mxu0 0.0
        %2157 = vmatprep.subr.mxu0 0.0
        %2158 = vmatpush1.xpose.msra.mxu0 0.0
        %2159 = vmatprep.subr.mxu0 0.0
        %2160 = vmatpush1.xpose.msra.mxu0 0.0
        %2161 = vmatprep.subr.mxu0 0.0
        %2162 = vmatpush1.xpose.msra.mxu0 0.0
        %2163 = vmatprep.subr.mxu0 0.0
        %2164 = vmatpush1.xpose.msra.mxu0 0.0
        %2165 = vmatprep.subr.mxu0 0.0
        %2166 = vmatpush1.xpose.msra.mxu0 0.0
        %2167 = vmatprep.subr.mxu0 0.0
        %2168 = vmatpush1.xpose.msra.mxu0 0.0
        %2169 = vmatprep.subr.mxu0 0.0
        %2170 = vmatpush1.xpose.msra.mxu0 0.0
        %2171 = vmatprep.subr.mxu0 0.0
        %2172 = vmatpush1.xpose.msra.mxu0 %v2139
        %2173 = vmatprep.subr.mxu0 0.0
        %2174 = vmatpush2.xpose.msra.mxu0 0.0
        %2175 = vmatprep.subr.mxu0 0.0
        %2176 = vmatpush2.xpose.msra.mxu0 0.0
        %2177 = vmatprep.subr.mxu0 0.0
        %2178 = vmatpush2.xpose.msra.mxu0 0.0
        %2179 = vmatprep.subr.mxu0 0.0
        %2180 = vmatpush2.xpose.msra.mxu0 0.0
        %2181 = vmatprep.subr.mxu0 0.0
        %2182 = vmatpush2.xpose.msra.mxu0 0.0
        %2183 = vmatprep.subr.mxu0 0.0
        %2184 = vmatpush2.xpose.msra.mxu0 0.0
        %2185 = vmatprep.subr.mxu0 0.0
        %2186 = vmatpush2.xpose.msra.mxu0 0.0
        %2187 = vmatprep.subr.mxu0 0.0
        %2188 = vmatpush2.xpose.msra.mxu0 0.0
        %2189 = vmatprep.subr.mxu0 0.0
        %2190 = vmatpush2.xpose.msra.mxu0 0.0
        %2191 = vmatprep.subr.mxu0 0.0
        %2192 = vmatpush2.xpose.msra.mxu0 0.0
        %2193 = vmatprep.subr.mxu0 0.0
        %2194 = vmatpush2.xpose.msra.mxu0 0.0
        %2195 = vmatprep.subr.mxu0 0.0
        %2196 = vmatpush2.xpose.msra.mxu0 0.0
        %2197 = vmatprep.subr.mxu0 0.0
        %2198 = vmatpush2.xpose.msra.mxu0 0.0
        %2199 = vmatprep.subr.mxu0 0.0
        %2200 = vmatpush2.xpose.msra.mxu0 0.0
        %2201 = vmatprep.subr.mxu0 0.0
        %2202 = vmatpush2.xpose.msra.mxu0 0.0
        %2203 = vmatprep.subr.mxu0 0.0
        %2204 = vmatpush2.xpose.msra.mxu0 0.0
        %2205 = vmatprep.mubr.f32.mxu0 0.0
        %2206 = vmatmul.mubr.f32.gmra.mxu0 %v2137
        %v2207 = vpop.f32.mrf.mxu0
        %v2208 = vadd.f32 0.0, %v2207
        %v2209 = vpop.f32.mrf.mxu0
        %2210 = vdwg.mxu0
        %v2211 = vmul.f32 %v2208, 0.35355338
        %v2212 = vadd.f32 %v2211, %v784
        %v2213 = vsel %vm704, %v2212, -inf
        %2214 = vmax.xlane.f32.xlu0 %v2213
        %v2215 = vpop.xlane.xlu0 %2214
        %v2216 = vsub.f32 %v2212, %v2215
        %v2217 = vmul.f32 %v2216, 1.442695
        %v2218 = vpow.pop %v2217
        %v2219 = vsel %vm704, %v2218, 0.0
        %2220 = vadd.xlane.f32.xlu0 %v2219
        %v2221 = vpop.xlane.xlu0 %2220
        %v2222 = vrcp.pop %v2221
        %v2223 = vmul.f32 %v2218, %v2222
        %2224 = vrot.lane.b32.xlu0 %v1797, 48
        %v2225 = vpop.permute.xlu0 %2224
        %v2228 = vsel %vm704, %v2223, 0
        %2230 = vmatprep.subr.mxu0 0.0
        %2231 = vmatpush1.msra.mxu0 0.0
        %2232 = vmatprep.subr.mxu0 0.0
        %2233 = vmatpush1.msra.mxu0 0.0
        %2234 = vmatprep.subr.mxu0 0.0
        %2235 = vmatpush1.msra.mxu0 0.0
        %2236 = vmatprep.subr.mxu0 0.0
        %2237 = vmatpush1.msra.mxu0 0.0
        %2238 = vmatprep.subr.mxu0 0.0
        %2239 = vmatpush1.msra.mxu0 0.0
        %2240 = vmatprep.subr.mxu0 0.0
        %2241 = vmatpush1.msra.mxu0 0.0
        %2242 = vmatprep.subr.mxu0 0.0
        %2243 = vmatpush1.msra.mxu0 0.0
        %2244 = vmatprep.subr.mxu0 0.0
        %2245 = vmatpush1.msra.mxu0 0.0
        %2246 = vmatprep.subr.mxu0 0.0
        %2247 = vmatpush1.msra.mxu0 0.0
        %2248 = vmatprep.subr.mxu0 0.0
        %2249 = vmatpush1.msra.mxu0 0.0
        %2250 = vmatprep.subr.mxu0 0.0
        %2251 = vmatpush1.msra.mxu0 0.0
        %2252 = vmatprep.subr.mxu0 0.0
        %2253 = vmatpush1.msra.mxu0 0.0
        %2254 = vmatprep.subr.mxu0 0.0
        %2255 = vmatpush1.msra.mxu0 0.0
        %2256 = vmatprep.subr.mxu0 0.0
        %2257 = vmatpush1.msra.mxu0 0.0
        %2258 = vmatprep.subr.mxu0 0.0
        %2259 = vmatpush1.msra.mxu0 0.0
        %2260 = vmatprep.subr.mxu0 0.0
        %2261 = vmatpush1.msra.mxu0 %v2225
        %2262 = vmatprep.subr.mxu0 0.0
        %2263 = vmatpush2.msra.mxu0 0.0
        %2264 = vmatprep.subr.mxu0 0.0
        %2265 = vmatpush2.msra.mxu0 0.0
        %2266 = vmatprep.subr.mxu0 0.0
        %2267 = vmatpush2.msra.mxu0 0.0
        %2268 = vmatprep.subr.mxu0 0.0
        %2269 = vmatpush2.msra.mxu0 0.0
        %2270 = vmatprep.subr.mxu0 0.0
        %2271 = vmatpush2.msra.mxu0 0.0
        %2272 = vmatprep.subr.mxu0 0.0
        %2273 = vmatpush2.msra.mxu0 0.0
        %2274 = vmatprep.subr.mxu0 0.0
        %2275 = vmatpush2.msra.mxu0 0.0
        %2276 = vmatprep.subr.mxu0 0.0
        %2277 = vmatpush2.msra.mxu0 0.0
        %2278 = vmatprep.subr.mxu0 0.0
        %2279 = vmatpush2.msra.mxu0 0.0
        %2280 = vmatprep.subr.mxu0 0.0
        %2281 = vmatpush2.msra.mxu0 0.0
        %2282 = vmatprep.subr.mxu0 0.0
        %2283 = vmatpush2.msra.mxu0 0.0
        %2284 = vmatprep.subr.mxu0 0.0
        %2285 = vmatpush2.msra.mxu0 0.0
        %2286 = vmatprep.subr.mxu0 0.0
        %2287 = vmatpush2.msra.mxu0 0.0
        %2288 = vmatprep.subr.mxu0 0.0
        %2289 = vmatpush2.msra.mxu0 0.0
        %2290 = vmatprep.subr.mxu0 0.0
        %2291 = vmatpush2.msra.mxu0 0.0
        %2292 = vmatprep.subr.mxu0 0.0
        %2293 = vmatpush2.msra.mxu0 0.0
        %2294 = vmatprep.mubr.f32.mxu0 0.0
        %2295 = vmatmul.mubr.f32.gmra.mxu0 %v2228
        %v2296 = vpop.f32.mrf.mxu0
        %v2297 = vadd.f32 0.0, %v2296
        %v2298 = vpop.f32.mrf.mxu0
        %2299 = vdwg.mxu0
        %2300 = vrot.lane.b32.xlu0 %v1797, 104
        %v2301 = vpop.permute.xlu0 %2300
        %2302 = vrot.lane.b32.xlu0 %v1797, 72
        %v2303 = vpop.permute.xlu0 %2302
        %v2304 = vsel %vm704, %v2301, 0
        %v2306 = vsel %vm704, %v2303, 0
        %2308 = vmatprep.subr.mxu0 0.0
        %2309 = vmatpush1.xpose.msra.mxu0 0.0
        %2310 = vmatprep.subr.mxu0 0.0
        %2311 = vmatpush1.xpose.msra.mxu0 0.0
        %2312 = vmatprep.subr.mxu0 0.0
        %2313 = vmatpush1.xpose.msra.mxu0 0.0
        %2314 = vmatprep.subr.mxu0 0.0
        %2315 = vmatpush1.xpose.msra.mxu0 0.0
        %2316 = vmatprep.subr.mxu0 0.0
        %2317 = vmatpush1.xpose.msra.mxu0 0.0
        %2318 = vmatprep.subr.mxu0 0.0
        %2319 = vmatpush1.xpose.msra.mxu0 0.0
        %2320 = vmatprep.subr.mxu0 0.0
        %2321 = vmatpush1.xpose.msra.mxu0 0.0
        %2322 = vmatprep.subr.mxu0 0.0
        %2323 = vmatpush1.xpose.msra.mxu0 0.0
        %2324 = vmatprep.subr.mxu0 0.0
        %2325 = vmatpush1.xpose.msra.mxu0 0.0
        %2326 = vmatprep.subr.mxu0 0.0
        %2327 = vmatpush1.xpose.msra.mxu0 0.0
        %2328 = vmatprep.subr.mxu0 0.0
        %2329 = vmatpush1.xpose.msra.mxu0 0.0
        %2330 = vmatprep.subr.mxu0 0.0
        %2331 = vmatpush1.xpose.msra.mxu0 0.0
        %2332 = vmatprep.subr.mxu0 0.0
        %2333 = vmatpush1.xpose.msra.mxu0 0.0
        %2334 = vmatprep.subr.mxu0 0.0
        %2335 = vmatpush1.xpose.msra.mxu0 0.0
        %2336 = vmatprep.subr.mxu0 0.0
        %2337 = vmatpush1.xpose.msra.mxu0 0.0
        %2338 = vmatprep.subr.mxu0 0.0
        %2339 = vmatpush1.xpose.msra.mxu0 %v2306
        %2340 = vmatprep.subr.mxu0 0.0
        %2341 = vmatpush2.xpose.msra.mxu0 0.0
        %2342 = vmatprep.subr.mxu0 0.0
        %2343 = vmatpush2.xpose.msra.mxu0 0.0
        %2344 = vmatprep.subr.mxu0 0.0
        %2345 = vmatpush2.xpose.msra.mxu0 0.0
        %2346 = vmatprep.subr.mxu0 0.0
        %2347 = vmatpush2.xpose.msra.mxu0 0.0
        %2348 = vmatprep.subr.mxu0 0.0
        %2349 = vmatpush2.xpose.msra.mxu0 0.0
        %2350 = vmatprep.subr.mxu0 0.0
        %2351 = vmatpush2.xpose.msra.mxu0 0.0
        %2352 = vmatprep.subr.mxu0 0.0
        %2353 = vmatpush2.xpose.msra.mxu0 0.0
        %2354 = vmatprep.subr.mxu0 0.0
        %2355 = vmatpush2.xpose.msra.mxu0 0.0
        %2356 = vmatprep.subr.mxu0 0.0
        %2357 = vmatpush2.xpose.msra.mxu0 0.0
        %2358 = vmatprep.subr.mxu0 0.0
        %2359 = vmatpush2.xpose.msra.mxu0 0.0
        %2360 = vmatprep.subr.mxu0 0.0
        %2361 = vmatpush2.xpose.msra.mxu0 0.0
        %2362 = vmatprep.subr.mxu0 0.0
        %2363 = vmatpush2.xpose.msra.mxu0 0.0
        %2364 = vmatprep.subr.mxu0 0.0
        %2365 = vmatpush2.xpose.msra.mxu0 0.0
        %2366 = vmatprep.subr.mxu0 0.0
        %2367 = vmatpush2.xpose.msra.mxu0 0.0
        %2368 = vmatprep.subr.mxu0 0.0
        %2369 = vmatpush2.xpose.msra.mxu0 0.0
        %2370 = vmatprep.subr.mxu0 0.0
        %2371 = vmatpush2.xpose.msra.mxu0 0.0
        %2372 = vmatprep.mubr.f32.mxu0 0.0
        %2373 = vmatmul.mubr.f32.gmra.mxu0 %v2304
        %v2374 = vpop.f32.mrf.mxu0
        %v2375 = vadd.f32 0.0, %v2374
        %v2376 = vpop.f32.mrf.mxu0
        %2377 = vdwg.mxu0
        %v2378 = vmul.f32 %v2375, 0.35355338
        %v2379 = vadd.f32 %v2378, %v784
        %v2380 = vsel %vm704, %v2379, -inf
        %2381 = vmax.xlane.f32.xlu0 %v2380
        %v2382 = vpop.xlane.xlu0 %2381
        %v2383 = vsub.f32 %v2379, %v2382
        %v2384 = vmul.f32 %v2383, 1.442695
        %v2385 = vpow.pop %v2384
        %v2386 = vsel %vm704, %v2385, 0.0
        %2387 = vadd.xlane.f32.xlu0 %v2386
        %v2388 = vpop.xlane.xlu0 %2387
        %v2389 = vrcp.pop %v2388
        %v2390 = vmul.f32 %v2385, %v2389
        %2391 = vrot.lane.b32.xlu0 %v1797, 40
        %v2392 = vpop.permute.xlu0 %2391
        %v2395 = vsel %vm704, %v2390, 0
        %2397 = vmatprep.subr.mxu0 0.0
        %2398 = vmatpush1.msra.mxu0 0.0
        %2399 = vmatprep.subr.mxu0 0.0
        %2400 = vmatpush1.msra.mxu0 0.0
        %2401 = vmatprep.subr.mxu0 0.0
        %2402 = vmatpush1.msra.mxu0 0.0
        %2403 = vmatprep.subr.mxu0 0.0
        %2404 = vmatpush1.msra.mxu0 0.0
        %2405 = vmatprep.subr.mxu0 0.0
        %2406 = vmatpush1.msra.mxu0 0.0
        %2407 = vmatprep.subr.mxu0 0.0
        %2408 = vmatpush1.msra.mxu0 0.0
        %2409 = vmatprep.subr.mxu0 0.0
        %2410 = vmatpush1.msra.mxu0 0.0
        %2411 = vmatprep.subr.mxu0 0.0
        %2412 = vmatpush1.msra.mxu0 0.0
        %2413 = vmatprep.subr.mxu0 0.0
        %2414 = vmatpush1.msra.mxu0 0.0
        %2415 = vmatprep.subr.mxu0 0.0
        %2416 = vmatpush1.msra.mxu0 0.0
        %2417 = vmatprep.subr.mxu0 0.0
        %2418 = vmatpush1.msra.mxu0 0.0
        %2419 = vmatprep.subr.mxu0 0.0
        %2420 = vmatpush1.msra.mxu0 0.0
        %2421 = vmatprep.subr.mxu0 0.0
        %2422 = vmatpush1.msra.mxu0 0.0
        %2423 = vmatprep.subr.mxu0 0.0
        %2424 = vmatpush1.msra.mxu0 0.0
        %2425 = vmatprep.subr.mxu0 0.0
        %2426 = vmatpush1.msra.mxu0 0.0
        %2427 = vmatprep.subr.mxu0 0.0
        %2428 = vmatpush1.msra.mxu0 %v2392
        %2429 = vmatprep.subr.mxu0 0.0
        %2430 = vmatpush2.msra.mxu0 0.0
        %2431 = vmatprep.subr.mxu0 0.0
        %2432 = vmatpush2.msra.mxu0 0.0
        %2433 = vmatprep.subr.mxu0 0.0
        %2434 = vmatpush2.msra.mxu0 0.0
        %2435 = vmatprep.subr.mxu0 0.0
        %2436 = vmatpush2.msra.mxu0 0.0
        %2437 = vmatprep.subr.mxu0 0.0
        %2438 = vmatpush2.msra.mxu0 0.0
        %2439 = vmatprep.subr.mxu0 0.0
        %2440 = vmatpush2.msra.mxu0 0.0
        %2441 = vmatprep.subr.mxu0 0.0
        %2442 = vmatpush2.msra.mxu0 0.0
        %2443 = vmatprep.subr.mxu0 0.0
        %2444 = vmatpush2.msra.mxu0 0.0
        %2445 = vmatprep.subr.mxu0 0.0
        %2446 = vmatpush2.msra.mxu0 0.0
        %2447 = vmatprep.subr.mxu0 0.0
        %2448 = vmatpush2.msra.mxu0 0.0
        %2449 = vmatprep.subr.mxu0 0.0
        %2450 = vmatpush2.msra.mxu0 0.0
        %2451 = vmatprep.subr.mxu0 0.0
        %2452 = vmatpush2.msra.mxu0 0.0
        %2453 = vmatprep.subr.mxu0 0.0
        %2454 = vmatpush2.msra.mxu0 0.0
        %2455 = vmatprep.subr.mxu0 0.0
        %2456 = vmatpush2.msra.mxu0 0.0
        %2457 = vmatprep.subr.mxu0 0.0
        %2458 = vmatpush2.msra.mxu0 0.0
        %2459 = vmatprep.subr.mxu0 0.0
        %2460 = vmatpush2.msra.mxu0 0.0
        %2461 = vmatprep.mubr.f32.mxu0 0.0
        %2462 = vmatmul.mubr.f32.gmra.mxu0 %v2395
        %v2463 = vpop.f32.mrf.mxu0
        %v2464 = vadd.f32 0.0, %v2463
        %v2465 = vpop.f32.mrf.mxu0
        %2466 = vdwg.mxu0
        %2468 = vrot.lane.b32.xlu0 %v2130, 8
        %v2469 = vpop.permute.xlu0 %2468
        %2472 = vrot.lane.b32.xlu0 %v2297, 16
        %v2473 = vpop.permute.xlu0 %2472
        %2476 = vrot.lane.b32.xlu0 %v2464, 24
        %v2477 = vpop.permute.xlu0 %2476
        %v2479 = vsel %vm704, %v1963, %v2469
        %v2480 = vsel %vm1388, %v2479, %v2473
        %v2481 = vsel %vm1390, %v2480, %v2477
        %s2482 = scalar_lea.vmem %s6, 32
        %v2483 = vld [vmem:[%s2482] sm:$0xff]
        %v2484 = vld [vmem:[%s2482 + $0x8] sm:$0xff]
        %v2485 = vld [vmem:[%s2482 + $0x10] sm:$0xff]
        %v2486 = vld [vmem:[%s2482 + $0x18] sm:$0xff]
        %s2487 = scalar_lea.vmem %s7, 1
        %v2488 = vld [vmem:[%s2487] sm:$0x1]
        %v2490 = vlaneseq
        %v2491 = vshrl.u32 %v2490, 7
        %v2492 = vsub.s32 0, %v2491
        %v2493 = vrot.slane %v2488, %v2492
        %v2496 = vsel %vm587, %v2481, 0
        %2498 = vmatprep.subr.mxu0 0.0
        %2499 = vmatpush1.msra.mxu0 0.0
        %2500 = vmatprep.subr.mxu0 0.0
        %2501 = vmatpush1.msra.mxu0 0.0
        %2502 = vmatprep.subr.mxu0 0.0
        %2503 = vmatpush1.msra.mxu0 0.0
        %2504 = vmatprep.subr.mxu0 0.0
        %2505 = vmatpush1.msra.mxu0 0.0
        %2506 = vmatprep.subr.mxu0 0.0
        %2507 = vmatpush1.msra.mxu0 0.0
        %2508 = vmatprep.subr.mxu0 0.0
        %2509 = vmatpush1.msra.mxu0 0.0
        %2510 = vmatprep.subr.mxu0 0.0
        %2511 = vmatpush1.msra.mxu0 0.0
        %2512 = vmatprep.subr.mxu0 0.0
        %2513 = vmatpush1.msra.mxu0 0.0
        %2514 = vmatprep.subr.mxu0 0.0
        %2515 = vmatpush1.msra.mxu0 0.0
        %2516 = vmatprep.subr.mxu0 0.0
        %2517 = vmatpush1.msra.mxu0 0.0
        %2518 = vmatprep.subr.mxu0 0.0
        %2519 = vmatpush1.msra.mxu0 0.0
        %2520 = vmatprep.subr.mxu0 0.0
        %2521 = vmatpush1.msra.mxu0 0.0
        %2522 = vmatprep.subr.mxu0 0.0
        %2523 = vmatpush1.msra.mxu0 %v2486
        %2524 = vmatprep.subr.mxu0 0.0
        %2525 = vmatpush1.msra.mxu0 %v2485
        %2526 = vmatprep.subr.mxu0 0.0
        %2527 = vmatpush1.msra.mxu0 %v2484
        %2528 = vmatprep.subr.mxu0 0.0
        %2529 = vmatpush1.msra.mxu0 %v2483
        %2530 = vmatprep.subr.mxu0 0.0
        %2531 = vmatpush2.msra.mxu0 0.0
        %2532 = vmatprep.subr.mxu0 0.0
        %2533 = vmatpush2.msra.mxu0 0.0
        %2534 = vmatprep.subr.mxu0 0.0
        %2535 = vmatpush2.msra.mxu0 0.0
        %2536 = vmatprep.subr.mxu0 0.0
        %2537 = vmatpush2.msra.mxu0 0.0
        %2538 = vmatprep.subr.mxu0 0.0
        %2539 = vmatpush2.msra.mxu0 0.0
        %2540 = vmatprep.subr.mxu0 0.0
        %2541 = vmatpush2.msra.mxu0 0.0
        %2542 = vmatprep.subr.mxu0 0.0
        %2543 = vmatpush2.msra.mxu0 0.0
        %2544 = vmatprep.subr.mxu0 0.0
        %2545 = vmatpush2.msra.mxu0 0.0
        %2546 = vmatprep.subr.mxu0 0.0
        %2547 = vmatpush2.msra.mxu0 0.0
        %2548 = vmatprep.subr.mxu0 0.0
        %2549 = vmatpush2.msra.mxu0 0.0
        %2550 = vmatprep.subr.mxu0 0.0
        %2551 = vmatpush2.msra.mxu0 0.0
        %2552 = vmatprep.subr.mxu0 0.0
        %2553 = vmatpush2.msra.mxu0 0.0
        %2554 = vmatprep.subr.mxu0 0.0
        %2555 = vmatpush2.msra.mxu0 0.0
        %2556 = vmatprep.subr.mxu0 0.0
        %2557 = vmatpush2.msra.mxu0 0.0
        %2558 = vmatprep.subr.mxu0 0.0
        %2559 = vmatpush2.msra.mxu0 0.0
        %2560 = vmatprep.subr.mxu0 0.0
        %2561 = vmatpush2.msra.mxu0 0.0
        %2562 = vmatprep.mubr.f32.mxu0 0.0
        %2563 = vmatmul.mubr.f32.gmra.mxu0 %v2496
        %v2564 = vpop.f32.mrf.mxu0
        %v2565 = vadd.f32 %v2493, %v2564
        %v2566 = vpop.f32.mrf.mxu0
        %2567 = vdwg.mxu0
        %v2568 = vadd.f32 %v2565, %v1713
        %s2569 = scalar_lea.vmem %s8, 1
        %v2570 = vld [vmem:[%s2569] sm:$0x1]
        %s2571 = scalar_lea.vmem %s9, 1
        %v2572 = vld [vmem:[%s2571] sm:$0x1]
        %v2573 = vsel %vm587, %v2568, 0.0
        %2574 = vadd.xlane.f32.xlu0 %v2573
        %v2575 = vpop.xlane.xlu0 %2574
        %v2576 = vmul.f32 %v2575, %v591
        %v2577 = vsub.f32 %v2568, %v2576
        %v2578 = vmul.f32 %v2577, %v2577
        %v2579 = vsel %vm587, %v2578, 0.0
        %2580 = vadd.xlane.f32.xlu0 %v2579
        %v2581 = vpop.xlane.xlu0 %2580
        %v2582 = vmul.f32 %v2581, %v591
        %v2583 = vadd.f32 %v2582, 1e-12
        %v2584 = vrsqrt.pop %v2583
        %v2585 = vmul.f32 %v2577, %v2584
        %v2587 = vlaneseq
        %v2588 = vshrl.u32 %v2587, 7
        %v2589 = vsub.s32 0, %v2588
        %v2590 = vrot.slane %v2570, %v2589
        %v2592 = vmul.f32 %v2585, %v2590
        %v2594 = vlaneseq
        %v2595 = vshrl.u32 %v2594, 7
        %v2596 = vsub.s32 0, %v2595
        %v2597 = vrot.slane %v2572, %v2596
        %v2599 = vadd.f32 %v2592, %v2597
        %s2600 = scalar_lea.vmem %s10, 32
        %v2601 = vld [vmem:[%s2600] sm:$0xff]
        %v2602 = vld [vmem:[%s2600 + $0x8] sm:$0xff]
        %v2603 = vld [vmem:[%s2600 + $0x10] sm:$0xff]
        %v2604 = vld [vmem:[%s2600 + $0x18] sm:$0xff]
        %s2605 = scalar_lea.vmem %s11, 1
        %v2606 = vld [vmem:[%s2605] sm:$0x1]
        %v2608 = vlaneseq
        %v2609 = vshrl.u32 %v2608, 7
        %v2610 = vsub.s32 0, %v2609
        %v2611 = vrot.slane %v2606, %v2610
        %v2614 = vsel %vm587, %v2599, 0
        %2616 = vmatprep.subr.mxu0 0.0
        %2617 = vmatpush1.msra.mxu0 0.0
        %2618 = vmatprep.subr.mxu0 0.0
        %2619 = vmatpush1.msra.mxu0 0.0
        %2620 = vmatprep.subr.mxu0 0.0
        %2621 = vmatpush1.msra.mxu0 0.0
        %2622 = vmatprep.subr.mxu0 0.0
        %2623 = vmatpush1.msra.mxu0 0.0
        %2624 = vmatprep.subr.mxu0 0.0
        %2625 = vmatpush1.msra.mxu0 0.0
        %2626 = vmatprep.subr.mxu0 0.0
        %2627 = vmatpush1.msra.mxu0 0.0
        %2628 = vmatprep.subr.mxu0 0.0
        %2629 = vmatpush1.msra.mxu0 0.0
        %2630 = vmatprep.subr.mxu0 0.0
        %2631 = vmatpush1.msra.mxu0 0.0
        %2632 = vmatprep.subr.mxu0 0.0
        %2633 = vmatpush1.msra.mxu0 0.0
        %2634 = vmatprep.subr.mxu0 0.0
        %2635 = vmatpush1.msra.mxu0 0.0
        %2636 = vmatprep.subr.mxu0 0.0
        %2637 = vmatpush1.msra.mxu0 0.0
        %2638 = vmatprep.subr.mxu0 0.0
        %2639 = vmatpush1.msra.mxu0 0.0
        %2640 = vmatprep.subr.mxu0 0.0
        %2641 = vmatpush1.msra.mxu0 %v2604
        %2642 = vmatprep.subr.mxu0 0.0
        %2643 = vmatpush1.msra.mxu0 %v2603
        %2644 = vmatprep.subr.mxu0 0.0
        %2645 = vmatpush1.msra.mxu0 %v2602
        %2646 = vmatprep.subr.mxu0 0.0
        %2647 = vmatpush1.msra.mxu0 %v2601
        %2648 = vmatprep.subr.mxu0 0.0
        %2649 = vmatpush2.msra.mxu0 0.0
        %2650 = vmatprep.subr.mxu0 0.0
        %2651 = vmatpush2.msra.mxu0 0.0
        %2652 = vmatprep.subr.mxu0 0.0
        %2653 = vmatpush2.msra.mxu0 0.0
        %2654 = vmatprep.subr.mxu0 0.0
        %2655 = vmatpush2.msra.mxu0 0.0
        %2656 = vmatprep.subr.mxu0 0.0
        %2657 = vmatpush2.msra.mxu0 0.0
        %2658 = vmatprep.subr.mxu0 0.0
        %2659 = vmatpush2.msra.mxu0 0.0
        %2660 = vmatprep.subr.mxu0 0.0
        %2661 = vmatpush2.msra.mxu0 0.0
        %2662 = vmatprep.subr.mxu0 0.0
        %2663 = vmatpush2.msra.mxu0 0.0
        %2664 = vmatprep.subr.mxu0 0.0
        %2665 = vmatpush2.msra.mxu0 0.0
        %2666 = vmatprep.subr.mxu0 0.0
        %2667 = vmatpush2.msra.mxu0 0.0
        %2668 = vmatprep.subr.mxu0 0.0
        %2669 = vmatpush2.msra.mxu0 0.0
        %2670 = vmatprep.subr.mxu0 0.0
        %2671 = vmatpush2.msra.mxu0 0.0
        %2672 = vmatprep.subr.mxu0 0.0
        %2673 = vmatpush2.msra.mxu0 0.0
        %2674 = vmatprep.subr.mxu0 0.0
        %2675 = vmatpush2.msra.mxu0 0.0
        %2676 = vmatprep.subr.mxu0 0.0
        %2677 = vmatpush2.msra.mxu0 0.0
        %2678 = vmatprep.subr.mxu0 0.0
        %2679 = vmatpush2.msra.mxu0 0.0
        %2680 = vmatprep.mubr.f32.mxu0 0.0
        %2681 = vmatmul.mubr.f32.gmra.mxu0 %v2614
        %v2682 = vpop.f32.mrf.mxu0
        %v2683 = vadd.f32 %v2611, %v2682
        %v2684 = vpop.f32.mrf.mxu0
        %2685 = vdwg.mxu0
        %v2686 = vmul.f32 %v2683, 0.5
        %v2687 = vmul.f32 %v2683, 0.70710677
        %v2688 = verf.f32.pop %v2687
        %v2689 = vadd.f32 %v2688, 1.0
        %v2690 = vmul.f32 %v2686, %v2689
        %s2691 = scalar_lea.vmem %s12, 64
        %v2692 = vld [vmem:[%s2691] sm:$0xff]
        %v2693 = vld [vmem:[%s2691 + $0x8] sm:$0xff]
        %v2694 = vld [vmem:[%s2691 + $0x10] sm:$0xff]
        %v2695 = vld [vmem:[%s2691 + $0x18] sm:$0xff]
        %v2696 = vld [vmem:[%s2691 + $0x20] sm:$0xff]
        %v2697 = vld [vmem:[%s2691 + $0x28] sm:$0xff]
        %v2698 = vld [vmem:[%s2691 + $0x30] sm:$0xff]
        %v2699 = vld [vmem:[%s2691 + $0x38] sm:$0xff]
        %s2700 = scalar_lea.vmem %s13, 1
        %v2701 = vld [vmem:[%s2700] sm:$0x1]
        %v2703 = vlaneseq
        %v2704 = vshrl.u32 %v2703, 7
        %v2705 = vsub.s32 0, %v2704
        %v2706 = vrot.slane %v2701, %v2705
        %v2709 = vsel %vm1610, %v2690, 0
        %2711 = vmatprep.subr.mxu0 0.0
        %2712 = vmatpush1.msra.mxu0 0.0
        %2713 = vmatprep.subr.mxu0 0.0
        %2714 = vmatpush1.msra.mxu0 0.0
        %2715 = vmatprep.subr.mxu0 0.0
        %2716 = vmatpush1.msra.mxu0 0.0
        %2717 = vmatprep.subr.mxu0 0.0
        %2718 = vmatpush1.msra.mxu0 0.0
        %2719 = vmatprep.subr.mxu0 0.0
        %2720 = vmatpush1.msra.mxu0 0.0
        %2721 = vmatprep.subr.mxu0 0.0
        %2722 = vmatpush1.msra.mxu0 0.0
        %2723 = vmatprep.subr.mxu0 0.0
        %2724 = vmatpush1.msra.mxu0 0.0
        %2725 = vmatprep.subr.mxu0 0.0
        %2726 = vmatpush1.msra.mxu0 0.0
        %2727 = vmatprep.subr.mxu0 0.0
        %2728 = vmatpush1.msra.mxu0 %v2699
        %2729 = vmatprep.subr.mxu0 0.0
        %2730 = vmatpush1.msra.mxu0 %v2698
        %2731 = vmatprep.subr.mxu0 0.0
        %2732 = vmatpush1.msra.mxu0 %v2697
        %2733 = vmatprep.subr.mxu0 0.0
        %2734 = vmatpush1.msra.mxu0 %v2696
        %2735 = vmatprep.subr.mxu0 0.0
        %2736 = vmatpush1.msra.mxu0 %v2695
        %2737 = vmatprep.subr.mxu0 0.0
        %2738 = vmatpush1.msra.mxu0 %v2694
        %2739 = vmatprep.subr.mxu0 0.0
        %2740 = vmatpush1.msra.mxu0 %v2693
        %2741 = vmatprep.subr.mxu0 0.0
        %2742 = vmatpush1.msra.mxu0 %v2692
        %2743 = vmatprep.subr.mxu0 0.0
        %2744 = vmatpush2.msra.mxu0 0.0
        %2745 = vmatprep.subr.mxu0 0.0
        %2746 = vmatpush2.msra.mxu0 0.0
        %2747 = vmatprep.subr.mxu0 0.0
        %2748 = vmatpush2.msra.mxu0 0.0
        %2749 = vmatprep.subr.mxu0 0.0
        %2750 = vmatpush2.msra.mxu0 0.0
        %2751 = vmatprep.subr.mxu0 0.0
        %2752 = vmatpush2.msra.mxu0 0.0
        %2753 = vmatprep.subr.mxu0 0.0
        %2754 = vmatpush2.msra.mxu0 0.0
        %2755 = vmatprep.subr.mxu0 0.0
        %2756 = vmatpush2.msra.mxu0 0.0
        %2757 = vmatprep.subr.mxu0 0.0
        %2758 = vmatpush2.msra.mxu0 0.0
        %2759 = vmatprep.subr.mxu0 0.0
        %2760 = vmatpush2.msra.mxu0 0.0
        %2761 = vmatprep.subr.mxu0 0.0
        %2762 = vmatpush2.msra.mxu0 0.0
        %2763 = vmatprep.subr.mxu0 0.0
        %2764 = vmatpush2.msra.mxu0 0.0
        %2765 = vmatprep.subr.mxu0 0.0
        %2766 = vmatpush2.msra.mxu0 0.0
        %2767 = vmatprep.subr.mxu0 0.0
        %2768 = vmatpush2.msra.mxu0 0.0
        %2769 = vmatprep.subr.mxu0 0.0
        %2770 = vmatpush2.msra.mxu0 0.0
        %2771 = vmatprep.subr.mxu0 0.0
        %2772 = vmatpush2.msra.mxu0 0.0
        %2773 = vmatprep.subr.mxu0 0.0
        %2774 = vmatpush2.msra.mxu0 0.0
        %2775 = vmatprep.mubr.f32.mxu0 0.0
        %2776 = vmatmul.mubr.f32.gmra.mxu0 %v2709
        %v2777 = vpop.f32.mrf.mxu0
        %v2778 = vadd.f32 %v2706, %v2777
        %v2779 = vpop.f32.mrf.mxu0
        %2780 = vdwg.mxu0
        %v2781 = vadd.f32 %v2778, %v2599
        %s2782 = scalar_lea.vmem %s14, 1
        %v2783 = vld [vmem:[%s2782] sm:$0x1]
        %s2784 = scalar_lea.vmem %s15, 1
        %v2785 = vld [vmem:[%s2784] sm:$0x1]
        %v2786 = vsel %vm587, %v2781, 0.0
        %2787 = vadd.xlane.f32.xlu0 %v2786
        %v2788 = vpop.xlane.xlu0 %2787
        %v2789 = vmul.f32 %v2788, %v591
        %v2790 = vsub.f32 %v2781, %v2789
        %v2791 = vmul.f32 %v2790, %v2790
        %v2792 = vsel %vm587, %v2791, 0.0
        %2793 = vadd.xlane.f32.xlu0 %v2792
        %v2794 = vpop.xlane.xlu0 %2793
        %v2795 = vmul.f32 %v2794, %v591
        %v2796 = vadd.f32 %v2795, 1e-12
        %v2797 = vrsqrt.pop %v2796
        %v2798 = vmul.f32 %v2790, %v2797
        %v2800 = vlaneseq
        %v2801 = vshrl.u32 %v2800, 7
        %v2802 = vsub.s32 0, %v2801
        %v2803 = vrot.slane %v2783, %v2802
        %v2805 = vmul.f32 %v2798, %v2803
        %v2807 = vlaneseq
        %v2808 = vshrl.u32 %v2807, 7
        %v2809 = vsub.s32 0, %v2808
        %v2810 = vrot.slane %v2785, %v2809
        %v2812 = vadd.f32 %v2805, %v2810
        %v2813 = vld [vmem:[%s16] sm:$0xff]
        %v2814 = vld [vmem:[%s16 + $0x8] sm:$0xff]
        %v2815 = vld [vmem:[%s16 + $0x10] sm:$0xff]
        %v2816 = vld [vmem:[%s16 + $0x18] sm:$0xff]
        %v2817 = vld [vmem:[%s17] sm:$0x1]
        %v2819 = vsel %vm587, %v2812, 0
        %2821 = vmatprep.subr.mxu0 0.0
        %2822 = vmatpush1.msra.mxu0 0.0
        %2823 = vmatprep.subr.mxu0 0.0
        %2824 = vmatpush1.msra.mxu0 0.0
        %2825 = vmatprep.subr.mxu0 0.0
        %2826 = vmatpush1.msra.mxu0 0.0
        %2827 = vmatprep.subr.mxu0 0.0
        %2828 = vmatpush1.msra.mxu0 0.0
        %2829 = vmatprep.subr.mxu0 0.0
        %2830 = vmatpush1.msra.mxu0 0.0
        %2831 = vmatprep.subr.mxu0 0.0
        %2832 = vmatpush1.msra.mxu0 0.0
        %2833 = vmatprep.subr.mxu0 0.0
        %2834 = vmatpush1.msra.mxu0 0.0
        %2835 = vmatprep.subr.mxu0 0.0
        %2836 = vmatpush1.msra.mxu0 0.0
        %2837 = vmatprep.subr.mxu0 0.0
        %2838 = vmatpush1.msra.mxu0 0.0
        %2839 = vmatprep.subr.mxu0 0.0
        %2840 = vmatpush1.msra.mxu0 0.0
        %2841 = vmatprep.subr.mxu0 0.0
        %2842 = vmatpush1.msra.mxu0 0.0
        %2843 = vmatprep.subr.mxu0 0.0
        %2844 = vmatpush1.msra.mxu0 0.0
        %2845 = vmatprep.subr.mxu0 0.0
        %2846 = vmatpush1.msra.mxu0 %v2816
        %2847 = vmatprep.subr.mxu0 0.0
        %2848 = vmatpush1.msra.mxu0 %v2815
        %2849 = vmatprep.subr.mxu0 0.0
        %2850 = vmatpush1.msra.mxu0 %v2814
        %2851 = vmatprep.subr.mxu0 0.0
        %2852 = vmatpush1.msra.mxu0 %v2813
        %2853 = vmatprep.subr.mxu0 0.0
        %2854 = vmatpush2.msra.mxu0 0.0
        %2855 = vmatprep.subr.mxu0 0.0
        %2856 = vmatpush2.msra.mxu0 0.0
        %2857 = vmatprep.subr.mxu0 0.0
        %2858 = vmatpush2.msra.mxu0 0.0
        %2859 = vmatprep.subr.mxu0 0.0
        %2860 = vmatpush2.msra.mxu0 0.0
        %2861 = vmatprep.subr.mxu0 0.0
        %2862 = vmatpush2.msra.mxu0 0.0
        %2863 = vmatprep.subr.mxu0 0.0
        %2864 = vmatpush2.msra.mxu0 0.0
        %2865 = vmatprep.subr.mxu0 0.0
        %2866 = vmatpush2.msra.mxu0 0.0
        %2867 = vmatprep.subr.mxu0 0.0
        %2868 = vmatpush2.msra.mxu0 0.0
        %2869 = vmatprep.subr.mxu0 0.0
        %2870 = vmatpush2.msra.mxu0 0.0
        %2871 = vmatprep.subr.mxu0 0.0
        %2872 = vmatpush2.msra.mxu0 0.0
        %2873 = vmatprep.subr.mxu0 0.0
        %2874 = vmatpush2.msra.mxu0 0.0
        %2875 = vmatprep.subr.mxu0 0.0
        %2876 = vmatpush2.msra.mxu0 0.0
        %2877 = vmatprep.subr.mxu0 0.0
        %2878 = vmatpush2.msra.mxu0 0.0
        %2879 = vmatprep.subr.mxu0 0.0
        %2880 = vmatpush2.msra.mxu0 0.0
        %2881 = vmatprep.subr.mxu0 0.0
        %2882 = vmatpush2.msra.mxu0 0.0
        %2883 = vmatprep.subr.mxu0 0.0
        %2884 = vmatpush2.msra.mxu0 0.0
        %2885 = vmatprep.mubr.f32.mxu0 0.0
        %2886 = vmatmul.mubr.f32.gmra.mxu0 %v2819
        %v2887 = vpop.f32.mrf.mxu0
        %v2888 = vadd.f32 %v2817, %v2887
        %v2889 = vpop.f32.mrf.mxu0
        %2890 = vdwg.mxu0
        %2891 = vst [vmem:[%s576] sm:$0x1] %v2888
        %s2892 = sand.u32 %s428, 1
        %s2893 = scalar_lea.sflag [#allocation3], %s2892
        %s2894 = sand.u32 %s428, 1
        %s2895 = scalar_lea.vmem [#allocation2], %s2894
        // Predicated region
        $region93: #{bert_classifier_forward.1} parent=91 // pred_check
          %p2896 = pneg %p438
        $region94: #{bert_classifier_forward.1} parent=91 // pred_check_branch
          %2898 = sbr.rel (%p2896) target = $region96
        $region95: #{bert_classifier_forward.1} parent=91 // pred_region
          %s2900 = ssub.s32 16, 16
          %2901 = vsyncadd %s2893, %s2900
          %s2902 = smul.addr %s32, 16
          %s2903 = scalar_lea.hbm %s18, %s2902
          %s2905 = sshll.u32 %s2895, 4
          %s2906 = int_to_ptr.vmem [resolvable:$true] %s2905
          %2908 = dma.vmem_to_hbm [thread:$0]  %s2906, 16, %s2903, %s2893
        $region96: #{bert_classifier_forward.1} parent=91 // pred_fallthru
          _
      $region92: #{bert_classifier_forward.1} parent=5 // pred_fallthru
        _
      %p2909 = scmp.le.s32.totalorder 2, %s27
      // Predicated region
      $region97: #{bert_classifier_forward.1} parent=5 // pred_check
        %p2910 = pneg %p2909
      $region98: #{bert_classifier_forward.1} parent=5 // pred_check_branch
        %2912 = sbr.rel (%p2910) target = $region100
      $region99: #{bert_classifier_forward.1} parent=5 // pred_region
        %s2913 = ssub.s32 %s27, 2
        // Predicated region
        $region101: #{bert_classifier_forward.1} parent=99 // pred_check
          %p2914 = pneg %p444
        $region102: #{bert_classifier_forward.1} parent=99 // pred_check_branch
          %2916 = sbr.rel (%p2914) target = $region104
        $region103: #{bert_classifier_forward.1} parent=99 // pred_region
          %s2917 = sand.u32 %s429, 1
          %s2918 = scalar_lea.sflag [#allocation3], %s2917
          %s2919 = sand.u32 %s429, 1
          %s2920 = scalar_lea.vmem [#allocation2], %s2919
          %2921 = dma.done %s2918, 16
        $region104: #{bert_classifier_forward.1} parent=99 // pred_fallthru
          _
      $region100: #{bert_classifier_forward.1} parent=5 // pred_fallthru
        _
    $region6: #{bert_classifier_forward.1} parent=1 // loop_footer
      %s31 = sadd.s32 1, %s27
    $region7: #{bert_classifier_forward.1} parent=1 // loop_footer_branch
      %26 = sbr.rel target = $region3
    $region8: #{bert_classifier_forward.1} parent=1 // loop_exit
      _
    %2922 = vsyncpa [#allocation3], 1
    %s2923 = scalar_lea.sflag [#allocation3], 1
    %2924 = vsyncpa %s2923, 1

</llo_original>
